<compile_context>
chip_gen: v7x
topology: tpu7x:2x2x1
jax: 0.10.0
libtpu: 0.0.40
codegen_flags: <defaults>
</compile_context>

<pallas_src>
import jax
import jax.numpy as jnp
from jax import lax
from jax.experimental import pallas as pl
from jax.experimental.pallas import tpu as pltpu


def _round_up(x, m):
    return (x + m - 1) // m * m


# ----------------------------- Pallas kernels -----------------------------

def _conv_pool_relu_kernel(p_ref, w_ref, b_ref, o_ref):
    """Fused conv (9 window-tap matmuls) + bias + 3x3/3 maxpool + ReLU.

    p_ref: (9, tm, Kf)  bf16 im2col patches, grouped by pooling-window tap
    w_ref: (Kf, Cp)     bf16 reshaped HWIO conv weights (Cout zero-padded to 128)
    b_ref: (1, Cp)      f32 bias (zero-padded)
    o_ref: (tm, Cp)     bf16 pooled+ReLU activations (lane-dense store)
    """
    w = w_ref[...]
    m = None
    for k in range(9):  # static unroll: one MXU matmul per pooling-window tap
        yk = jnp.dot(p_ref[k], w, preferred_element_type=jnp.float32)
        m = yk if m is None else jnp.maximum(m, yk)
    # bias is per-channel, so max(y + b) == max(y) + b ; ReLU after the pool.
    o_ref[...] = jnp.maximum(m + b_ref[...], 0.0).astype(o_ref.dtype)


def _conv_pool_relu_mlp_kernel(p_ref, w_ref, b_ref, fw1_ref, fb1_ref,
                               fw2_ref, fb2_ref, o_ref):
    """Layer-2 conv+pool+ReLU fused with the fc1->fc2 head.

    The pooled map is 1x1, so the pooled channel vector equals the flattened
    feature vector consumed by fc1. Logits are stored zero-padded to 128 lanes.
    """
    w = w_ref[...]
    m = None
    for k in range(9):
        yk = jnp.dot(p_ref[k], w, preferred_element_type=jnp.float32)
        m = yk if m is None else jnp.maximum(m, yk)
    feat = jnp.maximum(m + b_ref[...], 0.0)                            # (tm, C2)
    h = jnp.dot(feat.astype(fw1_ref.dtype), fw1_ref[...],
                preferred_element_type=jnp.float32) + fb1_ref[...]     # (tm, H)
    o = jnp.dot(h.astype(fw2_ref.dtype), fw2_ref[...],
                preferred_element_type=jnp.float32) + fb2_ref[...]     # (tm, Op)
    o_ref[...] = o.astype(o_ref.dtype)


# ------------------------------ JAX glue ----------------------------------

def _pooled_patches(x, K):
    """x: (B,H,W,C) -> (9, B*PH*PW, K*K*C) window-tap-major im2col patches.

    Tap k = 3*py + px of pooled cell (b, ph, pw) is the conv patch at conv
    output position (3*ph+py, 3*pw+px). Feature flatten order is (kh, kw, cin),
    matching w.reshape(K*K*Cin, Cout) of HWIO weights. Pooling is floor-mode
    (rows/cols beyond PH*3 / PW*3 are dropped), matching nn.MaxPool2d.
    """
    B, H, W, C = x.shape
    OH, OW = H - K + 1, W - K + 1
    PH, PW = OH // 3, OW // 3
    taps = [x[:, dy:dy + OH, dx:dx + OW, :] for dy in range(K) for dx in range(K)]
    p = jnp.stack(taps, axis=3).reshape(B, OH, OW, K * K * C)
    p = p[:, :PH * 3, :PW * 3, :]
    p = p.reshape(B, PH, 3, PW, 3, K * K * C).transpose(2, 4, 0, 1, 3, 5)
    return p.reshape(9, B * PH * PW, K * K * C), (B, PH, PW)


def conv_pool_relu_layer(x, w, b, *, tm_max=512):
    """conv(KxK, valid) + bias -> maxpool(3,3) -> relu, one fused Pallas kernel."""
    K, _, Cin, Cout = w.shape
    # TODO(synk): build the KxK taps inside the kernel from the raw NHWC block
    # instead of materializing im2col patches in HBM (K*K-fold read inflation).
    patches, (B, PH, PW) = _pooled_patches(x, K)
    M, Kf = patches.shape[1], patches.shape[2]
    Cp = _round_up(Cout, 128)                       # lane-dense (unmasked) stores
    tm = min(tm_max, _round_up(M, 8))               # row tile, multiple of 8
    Mp = _round_up(M, tm)

    patches = jnp.pad(patches.astype(jnp.bfloat16), ((0, 0), (0, Mp - M), (0, 0)))
    wp = jnp.pad(w.reshape(K * K * Cin, Cout).astype(jnp.bfloat16),
                 ((0, 0), (0, Cp - Cout)))
    bp = jnp.pad(b.astype(jnp.float32), (0, Cp - Cout)).reshape(1, Cp)

    flops = 2 * Mp * 9 * Kf * Cp
    bytes_accessed = patches.size * 2 + wp.size * 2 + bp.size * 4 + Mp * Cp * 2

    out = pl.pallas_call(
        _conv_pool_relu_kernel,
        out_shape=jax.ShapeDtypeStruct((Mp, Cp), jnp.bfloat16),
        grid=(Mp // tm,),
        in_specs=[pl.BlockSpec((9, tm, Kf), lambda i: (0, i, 0)),
                  pl.BlockSpec((Kf, Cp), lambda i: (0, 0)),
                  pl.BlockSpec((1, Cp), lambda i: (0, 0))],
        out_specs=pl.BlockSpec((tm, Cp), lambda i: (i, 0)),
        compiler_params=pltpu.CompilerParams(
            dimension_semantics=("parallel",)),
        cost_estimate=pl.CostEstimate(flops=flops, transcendentals=0,
                                      bytes_accessed=bytes_accessed),
    )(patches, wp, bp)
    return out[:M, :Cout].reshape(B, PH, PW, Cout)


def conv_pool_relu_fc_layer(x, w, b, fw1, fb1, fw2, fb2, *, tm_max=128):
    """Second conv layer + pool + relu + fc1 + fc2, fully fused in one kernel."""
    K, _, Cin, Cout = w.shape
    patches, (B, PH, PW) = _pooled_patches(x, K)
    assert PH == 1 and PW == 1, "head fusion assumes the pooled map is 1x1"
    M, Kf = patches.shape[1], patches.shape[2]
    H = fw1.shape[1]
    O = fw2.shape[1]
    Op = _round_up(O, 128)                          # lane-dense logits store
    tm = min(tm_max, _round_up(M, 8))
    Mp = _round_up(M, tm)

    patches = jnp.pad(patches.astype(jnp.bfloat16), ((0, 0), (0, Mp - M), (0, 0)))
    wp = w.reshape(K * K * Cin, Cout).astype(jnp.bfloat16)
    bp = b.astype(jnp.float32).reshape(1, Cout)
    fw1b = fw1.astype(jnp.bfloat16)
    fb1b = fb1.astype(jnp.float32).reshape(1, H)
    fw2p = jnp.pad(fw2.astype(jnp.bfloat16), ((0, 0), (0, Op - O)))
    fb2p = jnp.pad(fb2.astype(jnp.float32), (0, Op - O)).reshape(1, Op)

    flops = 2 * Mp * (9 * Kf * Cout + Cout * H + H * Op)
    bytes_accessed = (patches.size * 2 + wp.size * 2 + bp.size * 4
                      + fw1b.size * 2 + fb1b.size * 4
                      + fw2p.size * 2 + fb2p.size * 4 + Mp * Op * 4)

    out = pl.pallas_call(
        _conv_pool_relu_mlp_kernel,
        out_shape=jax.ShapeDtypeStruct((Mp, Op), jnp.float32),
        grid=(Mp // tm,),
        in_specs=[pl.BlockSpec((9, tm, Kf), lambda i: (0, i, 0)),
                  pl.BlockSpec((Kf, Cout), lambda i: (0, 0)),
                  pl.BlockSpec((1, Cout), lambda i: (0, 0)),
                  pl.BlockSpec((Cout, H), lambda i: (0, 0)),
                  pl.BlockSpec((1, H), lambda i: (0, 0)),
                  pl.BlockSpec((H, Op), lambda i: (0, 0)),
                  pl.BlockSpec((1, Op), lambda i: (0, 0))],
        out_specs=pl.BlockSpec((tm, Op), lambda i: (i, 0)),
        compiler_params=pltpu.CompilerParams(
            dimension_semantics=("parallel",)),
        cost_estimate=pl.CostEstimate(flops=flops, transcendentals=0,
                                      bytes_accessed=bytes_accessed),
    )(patches, wp, bp, fw1b, fb1b, fw2p, fb2p)
    return out[:M, :O]                               # (B, 10) f32 logits


@jax.jit
def classifier_forward(params, x_nchw):
    x = jnp.transpose(x_nchw, (0, 2, 3, 1)).astype(jnp.float32)        # NCHW -> NHWC
    x = conv_pool_relu_layer(x, params["w1"], params["b1"], tm_max=512)  # (B,8,8,32)
    return conv_pool_relu_fc_layer(x, params["w2"], params["b2"],
                                   params["fw1"], params["fb1"],
                                   params["fw2"], params["fb2"],
                                   tm_max=128)                            # (B,10)


# --------------------------- pure-JAX reference ----------------------------

def reference_forward(params, x_nchw):
    x = jnp.transpose(x_nchw, (0, 2, 3, 1))
    for w, b in ((params["w1"], params["b1"]), (params["w2"], params["b2"])):
        x = lax.conv_general_dilated(
            x, w, window_strides=(1, 1), padding="VALID",
            dimension_numbers=("NHWC", "HWIO", "NHWC"),
            precision=lax.Precision.HIGHEST) + b
        x = lax.reduce_window(x, -jnp.inf, lax.max,
                              (1, 3, 3, 1), (1, 3, 3, 1), "VALID")
        x = jnp.maximum(x, 0.0)
    x = x.reshape(x.shape[0], -1)
    x = jnp.dot(x, params["fw1"], precision=lax.Precision.HIGHEST) + params["fb1"]
    x = jnp.dot(x, params["fw2"], precision=lax.Precision.HIGHEST) + params["fb2"]
    return x


# --------------------------------- main ------------------------------------

if __name__ == "__main__":
    key = jax.random.PRNGKey(0)
    ks = jax.random.split(key, 9)

    def u(k, shape, fan_in):
        bound = 1.0 / (fan_in ** 0.5)
        return jax.random.uniform(k, shape, jnp.float32, -bound, bound)

    # Parameters (PyTorch-equivalent shapes, re-laid out):
    #  conv1: torch (32,1,5,5)  -> (5,5,1,32) HWIO  ; bias (32,)
    #  conv2: torch (64,32,5,5) -> (5,5,32,64) HWIO ; bias (64,)
    #  fc1:   torch (32,64)     -> (64,32)          ; bias (32,)
    #  fc2:   torch (10,32)     -> (32,10)          ; bias (10,)
    params = dict(
        w1=u(ks[0], (5, 5, 1, 32), 25),    b1=u(ks[1], (32,), 25),
        w2=u(ks[2], (5, 5, 32, 64), 800),  b2=u(ks[3], (64,), 800),
        fw1=u(ks[4], (64, 32), 64),        fb1=u(ks[5], (32,), 64),
        fw2=u(ks[6], (32, 10), 32),        fb2=u(ks[7], (10,), 32),
    )

    # Input: NCHW like the PyTorch module; 28x28 is required so flatten gives 64.
    x = jax.random.normal(ks[8], (2, 1, 28, 28), jnp.float32)

    out = jax.block_until_ready(classifier_forward(params, x))
    ref = reference_forward(params, x)

    assert out.shape == (2, 10), out.shape
    # bf16 MXU operands (per perf review) vs f32-HIGHEST reference -> loose tol.
    assert jnp.allclose(out, ref, atol=2e-2, rtol=2e-2), \
        f"mismatch: max abs err {jnp.max(jnp.abs(out - ref))}"

    print("KERNEL_OK")
</pallas_src>

<mosaic_0001>
module attributes {stable_mosaic.version = 11 : i64} {
  func.func @_conv_pool_relu_kernel(%arg0: i32, %arg1: memref<9x128x25xbf16, #tpu.memory_space<vmem>>, %arg2: memref<25x128xbf16, #tpu.memory_space<vmem>>, %arg3: memref<1x128xf32, #tpu.memory_space<vmem>>, %arg4: memref<128x128xbf16, #tpu.memory_space<vmem>>) attributes {dimension_semantics = [#tpu.dimension_semantics<parallel>], iteration_bounds = array<i64: 1>, scalar_prefetch = 0 : i64, scratch_operands = 0 : i64, tpu.core_type = #tpu.core_type<tc>, window_params = [{transform_indices = @transform_0, window_bounds = array<i64: 9, 128, 25>}, {pipeline_mode = #tpu.pipeline_mode<synchronous>, transform_indices = @transform_1, window_bounds = array<i64: 25, 128>}, {pipeline_mode = #tpu.pipeline_mode<synchronous>, transform_indices = @transform_2, window_bounds = array<i64: 1, 128>}, {transform_indices = @transform_3, window_bounds = array<i64: 128, 128>}]} {
    %c0 = arith.constant 0 : index
    %c0_0 = arith.constant 0 : index
    %0 = vector.load %arg2[%c0, %c0_0] : memref<25x128xbf16, #tpu.memory_space<vmem>>, vector<25x128xbf16>
    %c0_1 = arith.constant 0 : index
    %c0_2 = arith.constant 0 : index
    %c0_3 = arith.constant 0 : index
    %1 = vector.load %arg1[%c0_1, %c0_2, %c0_3] : memref<9x128x25xbf16, #tpu.memory_space<vmem>>, vector<1x128x25xbf16>
    %2 = vector.shape_cast %1 : vector<1x128x25xbf16> to vector<128x25xbf16>
    %cst = arith.constant dense<0.000000e+00> : vector<128x128xf32>
    %3 = tpu.matmul %2, %0, %cst {dimension_numbers = #tpu.dot_dimension_numbers<[1], [0], [0], [1], [0, 0, 1, 1], [], []>} : vector<128x25xbf16>, vector<25x128xbf16>, vector<128x128xf32> -> vector<128x128xf32>
    %c1 = arith.constant 1 : index
    %c0_4 = arith.constant 0 : index
    %c0_5 = arith.constant 0 : index
    %4 = vector.load %arg1[%c1, %c0_4, %c0_5] : memref<9x128x25xbf16, #tpu.memory_space<vmem>>, vector<1x128x25xbf16>
    %5 = vector.shape_cast %4 : vector<1x128x25xbf16> to vector<128x25xbf16>
    %cst_6 = arith.constant dense<0.000000e+00> : vector<128x128xf32>
    %6 = tpu.matmul %5, %0, %cst_6 {dimension_numbers = #tpu.dot_dimension_numbers<[1], [0], [0], [1], [0, 0, 1, 1], [], []>} : vector<128x25xbf16>, vector<25x128xbf16>, vector<128x128xf32> -> vector<128x128xf32>
    %7 = arith.maximumf %3, %6 : vector<128x128xf32>
    %c2 = arith.constant 2 : index
    %c0_7 = arith.constant 0 : index
    %c0_8 = arith.constant 0 : index
    %8 = vector.load %arg1[%c2, %c0_7, %c0_8] : memref<9x128x25xbf16, #tpu.memory_space<vmem>>, vector<1x128x25xbf16>
    %9 = vector.shape_cast %8 : vector<1x128x25xbf16> to vector<128x25xbf16>
    %cst_9 = arith.constant dense<0.000000e+00> : vector<128x128xf32>
    %10 = tpu.matmul %9, %0, %cst_9 {dimension_numbers = #tpu.dot_dimension_numbers<[1], [0], [0], [1], [0, 0, 1, 1], [], []>} : vector<128x25xbf16>, vector<25x128xbf16>, vector<128x128xf32> -> vector<128x128xf32>
    %11 = arith.maximumf %7, %10 : vector<128x128xf32>
    %c3 = arith.constant 3 : index
    %c0_10 = arith.constant 0 : index
    %c0_11 = arith.constant 0 : index
    %12 = vector.load %arg1[%c3, %c0_10, %c0_11] : memref<9x128x25xbf16, #tpu.memory_space<vmem>>, vector<1x128x25xbf16>
    %13 = vector.shape_cast %12 : vector<1x128x25xbf16> to vector<128x25xbf16>
    %cst_12 = arith.constant dense<0.000000e+00> : vector<128x128xf32>
    %14 = tpu.matmul %13, %0, %cst_12 {dimension_numbers = #tpu.dot_dimension_numbers<[1], [0], [0], [1], [0, 0, 1, 1], [], []>} : vector<128x25xbf16>, vector<25x128xbf16>, vector<128x128xf32> -> vector<128x128xf32>
    %15 = arith.maximumf %11, %14 : vector<128x128xf32>
    %c4 = arith.constant 4 : index
    %c0_13 = arith.constant 0 : index
    %c0_14 = arith.constant 0 : index
    %16 = vector.load %arg1[%c4, %c0_13, %c0_14] : memref<9x128x25xbf16, #tpu.memory_space<vmem>>, vector<1x128x25xbf16>
    %17 = vector.shape_cast %16 : vector<1x128x25xbf16> to vector<128x25xbf16>
    %cst_15 = arith.constant dense<0.000000e+00> : vector<128x128xf32>
    %18 = tpu.matmul %17, %0, %cst_15 {dimension_numbers = #tpu.dot_dimension_numbers<[1], [0], [0], [1], [0, 0, 1, 1], [], []>} : vector<128x25xbf16>, vector<25x128xbf16>, vector<128x128xf32> -> vector<128x128xf32>
    %19 = arith.maximumf %15, %18 : vector<128x128xf32>
    %c5 = arith.constant 5 : index
    %c0_16 = arith.constant 0 : index
    %c0_17 = arith.constant 0 : index
    %20 = vector.load %arg1[%c5, %c0_16, %c0_17] : memref<9x128x25xbf16, #tpu.memory_space<vmem>>, vector<1x128x25xbf16>
    %21 = vector.shape_cast %20 : vector<1x128x25xbf16> to vector<128x25xbf16>
    %cst_18 = arith.constant dense<0.000000e+00> : vector<128x128xf32>
    %22 = tpu.matmul %21, %0, %cst_18 {dimension_numbers = #tpu.dot_dimension_numbers<[1], [0], [0], [1], [0, 0, 1, 1], [], []>} : vector<128x25xbf16>, vector<25x128xbf16>, vector<128x128xf32> -> vector<128x128xf32>
    %23 = arith.maximumf %19, %22 : vector<128x128xf32>
    %c6 = arith.constant 6 : index
    %c0_19 = arith.constant 0 : index
    %c0_20 = arith.constant 0 : index
    %24 = vector.load %arg1[%c6, %c0_19, %c0_20] : memref<9x128x25xbf16, #tpu.memory_space<vmem>>, vector<1x128x25xbf16>
    %25 = vector.shape_cast %24 : vector<1x128x25xbf16> to vector<128x25xbf16>
    %cst_21 = arith.constant dense<0.000000e+00> : vector<128x128xf32>
    %26 = tpu.matmul %25, %0, %cst_21 {dimension_numbers = #tpu.dot_dimension_numbers<[1], [0], [0], [1], [0, 0, 1, 1], [], []>} : vector<128x25xbf16>, vector<25x128xbf16>, vector<128x128xf32> -> vector<128x128xf32>
    %27 = arith.maximumf %23, %26 : vector<128x128xf32>
    %c7 = arith.constant 7 : index
    %c0_22 = arith.constant 0 : index
    %c0_23 = arith.constant 0 : index
    %28 = vector.load %arg1[%c7, %c0_22, %c0_23] : memref<9x128x25xbf16, #tpu.memory_space<vmem>>, vector<1x128x25xbf16>
    %29 = vector.shape_cast %28 : vector<1x128x25xbf16> to vector<128x25xbf16>
    %cst_24 = arith.constant dense<0.000000e+00> : vector<128x128xf32>
    %30 = tpu.matmul %29, %0, %cst_24 {dimension_numbers = #tpu.dot_dimension_numbers<[1], [0], [0], [1], [0, 0, 1, 1], [], []>} : vector<128x25xbf16>, vector<25x128xbf16>, vector<128x128xf32> -> vector<128x128xf32>
    %31 = arith.maximumf %27, %30 : vector<128x128xf32>
    %c8 = arith.constant 8 : index
    %c0_25 = arith.constant 0 : index
    %c0_26 = arith.constant 0 : index
    %32 = vector.load %arg1[%c8, %c0_25, %c0_26] : memref<9x128x25xbf16, #tpu.memory_space<vmem>>, vector<1x128x25xbf16>
    %33 = vector.shape_cast %32 : vector<1x128x25xbf16> to vector<128x25xbf16>
    %cst_27 = arith.constant dense<0.000000e+00> : vector<128x128xf32>
    %34 = tpu.matmul %33, %0, %cst_27 {dimension_numbers = #tpu.dot_dimension_numbers<[1], [0], [0], [1], [0, 0, 1, 1], [], []>} : vector<128x25xbf16>, vector<25x128xbf16>, vector<128x128xf32> -> vector<128x128xf32>
    %35 = arith.maximumf %31, %34 : vector<128x128xf32>
    %c0_28 = arith.constant 0 : index
    %c0_29 = arith.constant 0 : index
    %36 = vector.load %arg3[%c0_28, %c0_29] : memref<1x128xf32, #tpu.memory_space<vmem>>, vector<1x128xf32>
    %37 = vector.broadcast %36 : vector<1x128xf32> to vector<128x128xf32>
    %38 = arith.addf %35, %37 : vector<128x128xf32>
    %cst_30 = arith.constant 0.000000e+00 : f32
    %39 = vector.broadcast %cst_30 : f32 to vector<128x128xf32>
    %40 = arith.maximumf %38, %39 : vector<128x128xf32>
    %41 = arith.truncf %40 : vector<128x128xf32> to vector<128x128xbf16>
    %c0_31 = arith.constant 0 : index
    %c0_32 = arith.constant 0 : index
    %42 = vector.load %arg4[%c0_31, %c0_32] : memref<128x128xbf16, #tpu.memory_space<vmem>>, vector<128x128xbf16>
    tpu.vector_store %arg4[%c0_31, %c0_32], %41 {strides = array<i32>} : memref<128x128xbf16, #tpu.memory_space<vmem>>, vector<128x128xbf16>,
    return
  }
  func.func @transform_0(%arg0: i32) -> (i32, i32, i32) {
    %c0_i32 = arith.constant 0 : i32
    %c0_i32_0 = arith.constant 0 : i32
    %c0_i32_1 = arith.constant 0 : i32
    return %c0_i32, %arg0, %c0_i32_0 : i32, i32, i32
  }
  func.func @transform_1(%arg0: i32) -> (i32, i32) {
    %c0_i32 = arith.constant 0 : i32
    %c0_i32_0 = arith.constant 0 : i32
    %c0_i32_1 = arith.constant 0 : i32
    return %c0_i32, %c0_i32_0 : i32, i32
  }
  func.func @transform_2(%arg0: i32) -> (i32, i32) {
    %c0_i32 = arith.constant 0 : i32
    %c0_i32_0 = arith.constant 0 : i32
    %c0_i32_1 = arith.constant 0 : i32
    return %c0_i32, %c0_i32_0 : i32, i32
  }
  func.func @transform_3(%arg0: i32) -> (i32, i32) {
    %c0_i32 = arith.constant 0 : i32
    %c0_i32_0 = arith.constant 0 : i32
    return %arg0, %c0_i32 : i32, i32
  }
}

module attributes {stable_mosaic.version = 11 : i64} {
  func.func @_conv_pool_relu_mlp_kernel(%arg0: i32, %arg1: memref<9x8x800xbf16, #tpu.memory_space<vmem>>, %arg2: memref<800x64xbf16, #tpu.memory_space<vmem>>, %arg3: memref<1x64xf32, #tpu.memory_space<vmem>>, %arg4: memref<64x32xbf16, #tpu.memory_space<vmem>>, %arg5: memref<1x32xf32, #tpu.memory_space<vmem>>, %arg6: memref<32x128xbf16, #tpu.memory_space<vmem>>, %arg7: memref<1x128xf32, #tpu.memory_space<vmem>>, %arg8: memref<8x128xf32, #tpu.memory_space<vmem>>) attributes {dimension_semantics = [#tpu.dimension_semantics<parallel>], iteration_bounds = array<i64: 1>, scalar_prefetch = 0 : i64, scratch_operands = 0 : i64, tpu.core_type = #tpu.core_type<tc>, window_params = [{transform_indices = @transform_0, window_bounds = array<i64: 9, 8, 800>}, {pipeline_mode = #tpu.pipeline_mode<synchronous>, transform_indices = @transform_1, window_bounds = array<i64: 800, 64>}, {pipeline_mode = #tpu.pipeline_mode<synchronous>, transform_indices = @transform_2, window_bounds = array<i64: 1, 64>}, {pipeline_mode = #tpu.pipeline_mode<synchronous>, transform_indices = @transform_3, window_bounds = array<i64: 64, 32>}, {pipeline_mode = #tpu.pipeline_mode<synchronous>, transform_indices = @transform_4, window_bounds = array<i64: 1, 32>}, {pipeline_mode = #tpu.pipeline_mode<synchronous>, transform_indices = @transform_5, window_bounds = array<i64: 32, 128>}, {pipeline_mode = #tpu.pipeline_mode<synchronous>, transform_indices = @transform_6, window_bounds = array<i64: 1, 128>}, {transform_indices = @transform_7, window_bounds = array<i64: 8, 128>}]} {
    %c0 = arith.constant 0 : index
    %c0_0 = arith.constant 0 : index
    %0 = vector.load %arg2[%c0, %c0_0] : memref<800x64xbf16, #tpu.memory_space<vmem>>, vector<800x64xbf16>
    %c0_1 = arith.constant 0 : index
    %c0_2 = arith.constant 0 : index
    %c0_3 = arith.constant 0 : index
    %1 = vector.load %arg1[%c0_1, %c0_2, %c0_3] : memref<9x8x800xbf16, #tpu.memory_space<vmem>>, vector<1x8x800xbf16>
    %2 = vector.shape_cast %1 : vector<1x8x800xbf16> to vector<8x800xbf16>
    %cst = arith.constant dense<0.000000e+00> : vector<8x64xf32>
    %3 = tpu.matmul %2, %0, %cst {dimension_numbers = #tpu.dot_dimension_numbers<[1], [0], [0], [1], [0, 0, 1, 1], [], []>} : vector<8x800xbf16>, vector<800x64xbf16>, vector<8x64xf32> -> vector<8x64xf32>
    %c1 = arith.constant 1 : index
    %c0_4 = arith.constant 0 : index
    %c0_5 = arith.constant 0 : index
    %4 = vector.load %arg1[%c1, %c0_4, %c0_5] : memref<9x8x800xbf16, #tpu.memory_space<vmem>>, vector<1x8x800xbf16>
    %5 = vector.shape_cast %4 : vector<1x8x800xbf16> to vector<8x800xbf16>
    %cst_6 = arith.constant dense<0.000000e+00> : vector<8x64xf32>
    %6 = tpu.matmul %5, %0, %cst_6 {dimension_numbers = #tpu.dot_dimension_numbers<[1], [0], [0], [1], [0, 0, 1, 1], [], []>} : vector<8x800xbf16>, vector<800x64xbf16>, vector<8x64xf32> -> vector<8x64xf32>
    %7 = arith.maximumf %3, %6 : vector<8x64xf32>
    %c2 = arith.constant 2 : index
    %c0_7 = arith.constant 0 : index
    %c0_8 = arith.constant 0 : index
    %8 = vector.load %arg1[%c2, %c0_7, %c0_8] : memref<9x8x800xbf16, #tpu.memory_space<vmem>>, vector<1x8x800xbf16>
    %9 = vector.shape_cast %8 : vector<1x8x800xbf16> to vector<8x800xbf16>
    %cst_9 = arith.constant dense<0.000000e+00> : vector<8x64xf32>
    %10 = tpu.matmul %9, %0, %cst_9 {dimension_numbers = #tpu.dot_dimension_numbers<[1], [0], [0], [1], [0, 0, 1, 1], [], []>} : vector<8x800xbf16>, vector<800x64xbf16>, vector<8x64xf32> -> vector<8x64xf32>
    %11 = arith.maximumf %7, %10 : vector<8x64xf32>
    %c3 = arith.constant 3 : index
    %c0_10 = arith.constant 0 : index
    %c0_11 = arith.constant 0 : index
    %12 = vector.load %arg1[%c3, %c0_10, %c0_11] : memref<9x8x800xbf16, #tpu.memory_space<vmem>>, vector<1x8x800xbf16>
    %13 = vector.shape_cast %12 : vector<1x8x800xbf16> to vector<8x800xbf16>
    %cst_12 = arith.constant dense<0.000000e+00> : vector<8x64xf32>
    %14 = tpu.matmul %13, %0, %cst_12 {dimension_numbers = #tpu.dot_dimension_numbers<[1], [0], [0], [1], [0, 0, 1, 1], [], []>} : vector<8x800xbf16>, vector<800x64xbf16>, vector<8x64xf32> -> vector<8x64xf32>
    %15 = arith.maximumf %11, %14 : vector<8x64xf32>
    %c4 = arith.constant 4 : index
    %c0_13 = arith.constant 0 : index
    %c0_14 = arith.constant 0 : index
    %16 = vector.load %arg1[%c4, %c0_13, %c0_14] : memref<9x8x800xbf16, #tpu.memory_space<vmem>>, vector<1x8x800xbf16>
    %17 = vector.shape_cast %16 : vector<1x8x800xbf16> to vector<8x800xbf16>
    %cst_15 = arith.constant dense<0.000000e+00> : vector<8x64xf32>
    %18 = tpu.matmul %17, %0, %cst_15 {dimension_numbers = #tpu.dot_dimension_numbers<[1], [0], [0], [1], [0, 0, 1, 1], [], []>} : vector<8x800xbf16>, vector<800x64xbf16>, vector<8x64xf32> -> vector<8x64xf32>
    %19 = arith.maximumf %15, %18 : vector<8x64xf32>
    %c5 = arith.constant 5 : index
    %c0_16 = arith.constant 0 : index
    %c0_17 = arith.constant 0 : index
    %20 = vector.load %arg1[%c5, %c0_16, %c0_17] : memref<9x8x800xbf16, #tpu.memory_space<vmem>>, vector<1x8x800xbf16>
    %21 = vector.shape_cast %20 : vector<1x8x800xbf16> to vector<8x800xbf16>
    %cst_18 = arith.constant dense<0.000000e+00> : vector<8x64xf32>
    %22 = tpu.matmul %21, %0, %cst_18 {dimension_numbers = #tpu.dot_dimension_numbers<[1], [0], [0], [1], [0, 0, 1, 1], [], []>} : vector<8x800xbf16>, vector<800x64xbf16>, vector<8x64xf32> -> vector<8x64xf32>
    %23 = arith.maximumf %19, %22 : vector<8x64xf32>
    %c6 = arith.constant 6 : index
    %c0_19 = arith.constant 0 : index
    %c0_20 = arith.constant 0 : index
    %24 = vector.load %arg1[%c6, %c0_19, %c0_20] : memref<9x8x800xbf16, #tpu.memory_space<vmem>>, vector<1x8x800xbf16>
    %25 = vector.shape_cast %24 : vector<1x8x800xbf16> to vector<8x800xbf16>
    %cst_21 = arith.constant dense<0.000000e+00> : vector<8x64xf32>
    %26 = tpu.matmul %25, %0, %cst_21 {dimension_numbers = #tpu.dot_dimension_numbers<[1], [0], [0], [1], [0, 0, 1, 1], [], []>} : vector<8x800xbf16>, vector<800x64xbf16>, vector<8x64xf32> -> vector<8x64xf32>
    %27 = arith.maximumf %23, %26 : vector<8x64xf32>
    %c7 = arith.constant 7 : index
    %c0_22 = arith.constant 0 : index
    %c0_23 = arith.constant 0 : index
    %28 = vector.load %arg1[%c7, %c0_22, %c0_23] : memref<9x8x800xbf16, #tpu.memory_space<vmem>>, vector<1x8x800xbf16>
    %29 = vector.shape_cast %28 : vector<1x8x800xbf16> to vector<8x800xbf16>
    %cst_24 = arith.constant dense<0.000000e+00> : vector<8x64xf32>
    %30 = tpu.matmul %29, %0, %cst_24 {dimension_numbers = #tpu.dot_dimension_numbers<[1], [0], [0], [1], [0, 0, 1, 1], [], []>} : vector<8x800xbf16>, vector<800x64xbf16>, vector<8x64xf32> -> vector<8x64xf32>
    %31 = arith.maximumf %27, %30 : vector<8x64xf32>
    %c8 = arith.constant 8 : index
    %c0_25 = arith.constant 0 : index
    %c0_26 = arith.constant 0 : index
    %32 = vector.load %arg1[%c8, %c0_25, %c0_26] : memref<9x8x800xbf16, #tpu.memory_space<vmem>>, vector<1x8x800xbf16>
    %33 = vector.shape_cast %32 : vector<1x8x800xbf16> to vector<8x800xbf16>
    %cst_27 = arith.constant dense<0.000000e+00> : vector<8x64xf32>
    %34 = tpu.matmul %33, %0, %cst_27 {dimension_numbers = #tpu.dot_dimension_numbers<[1], [0], [0], [1], [0, 0, 1, 1], [], []>} : vector<8x800xbf16>, vector<800x64xbf16>, vector<8x64xf32> -> vector<8x64xf32>
    %35 = arith.maximumf %31, %34 : vector<8x64xf32>
    %c0_28 = arith.constant 0 : index
    %c0_29 = arith.constant 0 : index
    %36 = vector.load %arg3[%c0_28, %c0_29] : memref<1x64xf32, #tpu.memory_space<vmem>>, vector<1x64xf32>
    %37 = vector.broadcast %36 : vector<1x64xf32> to vector<8x64xf32>
    %38 = arith.addf %35, %37 : vector<8x64xf32>
    %cst_30 = arith.constant 0.000000e+00 : f32
    %39 = vector.broadcast %cst_30 : f32 to vector<8x64xf32>
    %40 = arith.maximumf %38, %39 : vector<8x64xf32>
    %41 = arith.truncf %40 : vector<8x64xf32> to vector<8x64xbf16>
    %c0_31 = arith.constant 0 : index
    %c0_32 = arith.constant 0 : index
    %42 = vector.load %arg4[%c0_31, %c0_32] : memref<64x32xbf16, #tpu.memory_space<vmem>>, vector<64x32xbf16>
    %cst_33 = arith.constant dense<0.000000e+00> : vector<8x32xf32>
    %43 = tpu.matmul %41, %42, %cst_33 {dimension_numbers = #tpu.dot_dimension_numbers<[1], [0], [0], [1], [0, 0, 1, 1], [], []>} : vector<8x64xbf16>, vector<64x32xbf16>, vector<8x32xf32> -> vector<8x32xf32>
    %c0_34 = arith.constant 0 : index
    %c0_35 = arith.constant 0 : index
    %44 = vector.load %arg5[%c0_34, %c0_35] : memref<1x32xf32, #tpu.memory_space<vmem>>, vector<1x32xf32>
    %45 = vector.broadcast %44 : vector<1x32xf32> to vector<8x32xf32>
    %46 = arith.addf %43, %45 : vector<8x32xf32>
    %47 = arith.truncf %46 : vector<8x32xf32> to vector<8x32xbf16>
    %c0_36 = arith.constant 0 : index
    %c0_37 = arith.constant 0 : index
    %48 = vector.load %arg6[%c0_36, %c0_37] : memref<32x128xbf16, #tpu.memory_space<vmem>>, vector<32x128xbf16>
    %cst_38 = arith.constant dense<0.000000e+00> : vector<8x128xf32>
    %49 = tpu.matmul %47, %48, %cst_38 {dimension_numbers = #tpu.dot_dimension_numbers<[1], [0], [0], [1], [0, 0, 1, 1], [], []>} : vector<8x32xbf16>, vector<32x128xbf16>, vector<8x128xf32> -> vector<8x128xf32>
    %c0_39 = arith.constant 0 : index
    %c0_40 = arith.constant 0 : index
    %50 = vector.load %arg7[%c0_39, %c0_40] : memref<1x128xf32, #tpu.memory_space<vmem>>, vector<1x128xf32>
    %51 = vector.broadcast %50 : vector<1x128xf32> to vector<8x128xf32>
    %52 = arith.addf %49, %51 : vector<8x128xf32>
    %c0_41 = arith.constant 0 : index
    %c0_42 = arith.constant 0 : index
    %53 = vector.load %arg8[%c0_41, %c0_42] : memref<8x128xf32, #tpu.memory_space<vmem>>, vector<8x128xf32>
    tpu.vector_store %arg8[%c0_41, %c0_42], %52 {strides = array<i32>} : memref<8x128xf32, #tpu.memory_space<vmem>>, vector<8x128xf32>,
    return
  }
  func.func @transform_0(%arg0: i32) -> (i32, i32, i32) {
    %c0_i32 = arith.constant 0 : i32
    %c0_i32_0 = arith.constant 0 : i32
    %c0_i32_1 = arith.constant 0 : i32
    return %c0_i32, %arg0, %c0_i32_0 : i32, i32, i32
  }
  func.func @transform_1(%arg0: i32) -> (i32, i32) {
    %c0_i32 = arith.constant 0 : i32
    %c0_i32_0 = arith.constant 0 : i32
    %c0_i32_1 = arith.constant 0 : i32
    return %c0_i32, %c0_i32_0 : i32, i32
  }
  func.func @transform_2(%arg0: i32) -> (i32, i32) {
    %c0_i32 = arith.constant 0 : i32
    %c0_i32_0 = arith.constant 0 : i32
    %c0_i32_1 = arith.constant 0 : i32
    return %c0_i32, %c0_i32_0 : i32, i32
  }
  func.func @transform_3(%arg0: i32) -> (i32, i32) {
    %c0_i32 = arith.constant 0 : i32
    %c0_i32_0 = arith.constant 0 : i32
    %c0_i32_1 = arith.constant 0 : i32
    return %c0_i32, %c0_i32_0 : i32, i32
  }
  func.func @transform_4(%arg0: i32) -> (i32, i32) {
    %c0_i32 = arith.constant 0 : i32
    %c0_i32_0 = arith.constant 0 : i32
    %c0_i32_1 = arith.constant 0 : i32
    return %c0_i32, %c0_i32_0 : i32, i32
  }
  func.func @transform_5(%arg0: i32) -> (i32, i32) {
    %c0_i32 = arith.constant 0 : i32
    %c0_i32_0 = arith.constant 0 : i32
    %c0_i32_1 = arith.constant 0 : i32
    return %c0_i32, %c0_i32_0 : i32, i32
  }
  func.func @transform_6(%arg0: i32) -> (i32, i32) {
    %c0_i32 = arith.constant 0 : i32
    %c0_i32_0 = arith.constant 0 : i32
    %c0_i32_1 = arith.constant 0 : i32
    return %c0_i32, %c0_i32_0 : i32, i32
  }
  func.func @transform_7(%arg0: i32) -> (i32, i32) {
    %c0_i32 = arith.constant 0 : i32
    %c0_i32_0 = arith.constant 0 : i32
    return %arg0, %c0_i32 : i32, i32
  }
}

</mosaic_0001>

<llo_original>
// kernel: classifier_forward.2
$region0: #{classifier_forward.2}
  #allocation0 [shape = 'u32[]', space=smem, size = 0x4, offset = 0x4, fixed_abs, tag = 'smem constant byte address 0x4 - core index']
  #allocation1 [shape = 'u32[144,128]{1,0:T(1,128)}', space=vmem, size = 0x12000, scoped, tag = 'internal scratch']
  %s0 = inlined_call_operand.vmem [shape: bf16[9,128,25], index: 0, kind: input, shape index: {}]
  %s1 = inlined_call_operand.vmem [shape: bf16[25,128], index: 1, kind: input, shape index: {}]
  %s2 = inlined_call_operand.vmem [shape: f32[1,128], index: 2, kind: input, shape index: {}]
  %s3 = inlined_call_operand.vmem [shape: bf16[128,128], index: 3, kind: output, shape index: {}]
  %s4 = sld [smem:[#allocation0]]
  $region22: #{classifier_forward.2} parent=0
    _
  %s6 = ssub.s32 1, %s4
  %s7 = scalar_select 0, %s6, %s4
  // Predicated region
  $region2: #{classifier_forward.2} parent=0 // pred_check
    _
  $region3: #{classifier_forward.2} parent=0 // pred_check_branch
    %9 = sbr.rel (0) target = $region5
  $region4: #{classifier_forward.2} parent=0 // pred_region
    _
  $region5: #{classifier_forward.2} parent=0 // pred_fallthru
    _
  // Predicated region
  $region6: #{classifier_forward.2} parent=0 // pred_check
    _
  $region7: #{classifier_forward.2} parent=0 // pred_check_branch
    %11 = sbr.rel (0) target = $region9
  $region8: #{classifier_forward.2} parent=0 // pred_region
    _
  $region9: #{classifier_forward.2} parent=0 // pred_fallthru
    _
  // Predicated region
  $region10: #{classifier_forward.2} parent=0 // pred_check
    _
  $region11: #{classifier_forward.2} parent=0 // pred_check_branch
    %13 = sbr.rel (0) target = $region13
  $region12: #{classifier_forward.2} parent=0 // pred_region
    _
  $region13: #{classifier_forward.2} parent=0 // pred_fallthru
    _
  %v15 = vld [vmem:[%s1] sm:$0xf]
  %v16 = vld [vmem:[%s1 + $0x4] sm:$0xf]
  %v17 = vld [vmem:[%s1 + $0x8] sm:$0xf]
  %v18 = vld [vmem:[%s1 + $0xc] sm:$0x1]
  %v19 = vld [vmem:[%s0] sm:$0xf]
  %v20 = vld [vmem:[%s0 + $0x4] sm:$0xf]
  %v21 = vld [vmem:[%s0 + $0x8] sm:$0xf]
  %v22 = vld [vmem:[%s0 + $0xc] sm:$0xf]
  %v23 = vld [vmem:[%s0 + $0x10] sm:$0xf]
  %v24 = vld [vmem:[%s0 + $0x14] sm:$0xf]
  %v25 = vld [vmem:[%s0 + $0x18] sm:$0xf]
  %v26 = vld [vmem:[%s0 + $0x1c] sm:$0xf]
  %v27 = vld [vmem:[%s0 + $0x20] sm:$0xf]
  %v28 = vld [vmem:[%s0 + $0x24] sm:$0xf]
  %v29 = vld [vmem:[%s0 + $0x28] sm:$0xf]
  %v30 = vld [vmem:[%s0 + $0x2c] sm:$0xf]
  %v31 = vld [vmem:[%s0 + $0x30] sm:$0xf]
  %v32 = vld [vmem:[%s0 + $0x34] sm:$0xf]
  %v33 = vld [vmem:[%s0 + $0x38] sm:$0xf]
  %v34 = vld [vmem:[%s0 + $0x3c] sm:$0xf]
  %v51 = vunpack.c.l.b16 %v19
  %v52 = vunpack.c.l.b16 %v20
  %v53 = vunpack.c.l.b16 %v21
  %v54 = vunpack.c.l.b16 %v22
  %v55 = vunpack.c.l.b16 %v23
  %v56 = vunpack.c.l.b16 %v24
  %v57 = vunpack.c.l.b16 %v25
  %v58 = vunpack.c.l.b16 %v26
  %v59 = vunpack.c.l.b16 %v27
  %v60 = vunpack.c.l.b16 %v28
  %v61 = vunpack.c.l.b16 %v29
  %v62 = vunpack.c.l.b16 %v30
  %v63 = vunpack.c.l.b16 %v31
  %v64 = vunpack.c.l.b16 %v32
  %v65 = vunpack.c.l.b16 %v33
  %v66 = vunpack.c.l.b16 %v34
  %v67 = vpack.c.b16 %v52, %v51
  %v68 = vpack.c.b16 %v54, %v53
  %v69 = vpack.c.b16 %v56, %v55
  %v70 = vpack.c.b16 %v58, %v57
  %v71 = vpack.c.b16 %v60, %v59
  %v72 = vpack.c.b16 %v62, %v61
  %v73 = vpack.c.b16 %v64, %v63
  %v74 = vpack.c.b16 %v66, %v65
  %v79 = vunpack.c.l.b16 %v15
  %v80 = vunpack.c.l.b16 %v16
  %v81 = vunpack.c.l.b16 %v17
  %v82 = vunpack.c.l.b16 %v18
  %v83 = vpack.c.b16 %v80, %v79
  %v84 = vpack.c.b16 %v82, %v81
  %vm86 = vcmask 203776
  %v88 = vsel %vm86, %v67, 0
  %v91 = vsel %vm86, %v68, 0
  %v94 = vsel %vm86, %v69, 0
  %v97 = vsel %vm86, %v70, 0
  %v100 = vsel %vm86, %v71, 0
  %v103 = vsel %vm86, %v72, 0
  %v106 = vsel %vm86, %v73, 0
  %v109 = vsel %vm86, %v74, 0
  %vm111 = vcmask 1043456
  %vm112 = vcmask 1044480
  %v113 = vsel %vm111, 4294967295, 65535
  %v114 = vsel %vm112, %v113, 0
  %v116 = vand.u32 %v84, %v114
  %118 = vmatprep.subr.bf16.mxu0 0
  %119 = vmatpush1.bf16.msra.mxu0 %v83
  %120 = vmatprep.subr.bf16.mxu0 0
  %121 = vmatpush1.bf16.msra.mxu0 %v116
  %122 = vmatprep.subr.bf16.mxu0 0
  %123 = vmatpush1.bf16.msra.mxu0 0
  %124 = vmatprep.subr.bf16.mxu0 0
  %125 = vmatpush1.bf16.msra.mxu0 0
  %126 = vmatprep.subr.bf16.mxu0 0
  %127 = vmatpush1.bf16.msra.mxu0 0
  %128 = vmatprep.subr.bf16.mxu0 0
  %129 = vmatpush1.bf16.msra.mxu0 0
  %130 = vmatprep.subr.bf16.mxu0 0
  %131 = vmatpush1.bf16.msra.mxu0 0
  %132 = vmatprep.subr.bf16.mxu0 0
  %133 = vmatpush1.bf16.msra.mxu0 0
  %134 = vmatprep.subr.bf16.mxu0 0
  %135 = vmatpush1.bf16.msra.mxu0 0
  %136 = vmatprep.subr.bf16.mxu0 0
  %137 = vmatpush1.bf16.msra.mxu0 0
  %138 = vmatprep.subr.bf16.mxu0 0
  %139 = vmatpush1.bf16.msra.mxu0 0
  %140 = vmatprep.subr.bf16.mxu0 0
  %141 = vmatpush1.bf16.msra.mxu0 0
  %142 = vmatprep.subr.bf16.mxu0 0
  %143 = vmatpush1.bf16.msra.mxu0 0
  %144 = vmatprep.subr.bf16.mxu0 0
  %145 = vmatpush1.bf16.msra.mxu0 0
  %146 = vmatprep.subr.bf16.mxu0 0
  %147 = vmatpush1.bf16.msra.mxu0 0
  %148 = vmatprep.subr.bf16.mxu0 0
  %149 = vmatpush1.bf16.msra.mxu0 0
  %150 = vmatprep.mubr.bf16.mxu0 0
  %151 = vmatmul.mubr.bf16.gmra.mrb[0].mxu0 %v88
  %v152 = vpop.f32.mrb[0].mxu0
  %v153 = vadd.f32 0.0, %v152
  %v154 = vpop.f32.mrb[0].mxu0
  %v155 = vpop.f32.mrb[0].mxu0
  %v156 = vadd.f32 0.0, %v155
  %v157 = vpop.f32.mrb[0].mxu0
  %158 = vmatprep.mubr.bf16.mxu0 0
  %159 = vmatmul.mubr.bf16.gmra.mrb[0].mxu0 %v91
  %v160 = vpop.f32.mrb[0].mxu0
  %v161 = vadd.f32 0.0, %v160
  %v162 = vpop.f32.mrb[0].mxu0
  %v163 = vpop.f32.mrb[0].mxu0
  %v164 = vadd.f32 0.0, %v163
  %v165 = vpop.f32.mrb[0].mxu0
  %166 = vmatprep.mubr.bf16.mxu0 0
  %167 = vmatmul.mubr.bf16.gmra.mrb[0].mxu0 %v94
  %v168 = vpop.f32.mrb[0].mxu0
  %v169 = vadd.f32 0.0, %v168
  %v170 = vpop.f32.mrb[0].mxu0
  %v171 = vpop.f32.mrb[0].mxu0
  %v172 = vadd.f32 0.0, %v171
  %v173 = vpop.f32.mrb[0].mxu0
  %174 = vmatprep.mubr.bf16.mxu0 0
  %175 = vmatmul.mubr.bf16.gmra.mrb[0].mxu0 %v97
  %v176 = vpop.f32.mrb[0].mxu0
  %v177 = vadd.f32 0.0, %v176
  %v178 = vpop.f32.mrb[0].mxu0
  %v179 = vpop.f32.mrb[0].mxu0
  %v180 = vadd.f32 0.0, %v179
  %v181 = vpop.f32.mrb[0].mxu0
  %182 = vmatprep.mubr.bf16.mxu0 0
  %183 = vmatmul.mubr.bf16.gmra.mrb[0].mxu0 %v100
  %v184 = vpop.f32.mrb[0].mxu0
  %v185 = vadd.f32 0.0, %v184
  %v186 = vpop.f32.mrb[0].mxu0
  %v187 = vpop.f32.mrb[0].mxu0
  %v188 = vadd.f32 0.0, %v187
  %v189 = vpop.f32.mrb[0].mxu0
  %190 = vmatprep.mubr.bf16.mxu0 0
  %191 = vmatmul.mubr.bf16.gmra.mrb[0].mxu0 %v103
  %v192 = vpop.f32.mrb[0].mxu0
  %v193 = vadd.f32 0.0, %v192
  %v194 = vpop.f32.mrb[0].mxu0
  %v195 = vpop.f32.mrb[0].mxu0
  %v196 = vadd.f32 0.0, %v195
  %v197 = vpop.f32.mrb[0].mxu0
  %198 = vmatprep.mubr.bf16.mxu0 0
  %199 = vmatmul.mubr.bf16.gmra.mrb[0].mxu0 %v106
  %v200 = vpop.f32.mrb[0].mxu0
  %v201 = vadd.f32 0.0, %v200
  %v202 = vpop.f32.mrb[0].mxu0
  %v203 = vpop.f32.mrb[0].mxu0
  %v204 = vadd.f32 0.0, %v203
  %v205 = vpop.f32.mrb[0].mxu0
  %206 = vmatprep.mubr.bf16.mxu0 0
  %207 = vmatmul.mubr.bf16.gmra.mrb[0].mxu0 %v109
  %v208 = vpop.f32.mrb[0].mxu0
  %v209 = vadd.f32 0.0, %v208
  %v210 = vpop.f32.mrb[0].mxu0
  %v211 = vpop.f32.mrb[0].mxu0
  %v212 = vadd.f32 0.0, %v211
  %v213 = vpop.f32.mrb[0].mxu0
  %214 = vdwg.mxu0
  %s215 = scalar_lea.vmem %s0, 64
  %v216 = vld [vmem:[%s215] sm:$0xf]
  %v217 = vld [vmem:[%s215 + $0x4] sm:$0xf]
  %v218 = vld [vmem:[%s215 + $0x8] sm:$0xf]
  %v219 = vld [vmem:[%s215 + $0xc] sm:$0xf]
  %v220 = vld [vmem:[%s215 + $0x10] sm:$0xf]
  %v221 = vld [vmem:[%s215 + $0x14] sm:$0xf]
  %v222 = vld [vmem:[%s215 + $0x18] sm:$0xf]
  %v223 = vld [vmem:[%s215 + $0x1c] sm:$0xf]
  %v224 = vld [vmem:[%s215 + $0x20] sm:$0xf]
  %v225 = vld [vmem:[%s215 + $0x24] sm:$0xf]
  %v226 = vld [vmem:[%s215 + $0x28] sm:$0xf]
  %v227 = vld [vmem:[%s215 + $0x2c] sm:$0xf]
  %v228 = vld [vmem:[%s215 + $0x30] sm:$0xf]
  %v229 = vld [vmem:[%s215 + $0x34] sm:$0xf]
  %v230 = vld [vmem:[%s215 + $0x38] sm:$0xf]
  %v231 = vld [vmem:[%s215 + $0x3c] sm:$0xf]
  %v248 = vunpack.c.l.b16 %v216
  %v249 = vunpack.c.l.b16 %v217
  %v250 = vunpack.c.l.b16 %v218
  %v251 = vunpack.c.l.b16 %v219
  %v252 = vunpack.c.l.b16 %v220
  %v253 = vunpack.c.l.b16 %v221
  %v254 = vunpack.c.l.b16 %v222
  %v255 = vunpack.c.l.b16 %v223
  %v256 = vunpack.c.l.b16 %v224
  %v257 = vunpack.c.l.b16 %v225
  %v258 = vunpack.c.l.b16 %v226
  %v259 = vunpack.c.l.b16 %v227
  %v260 = vunpack.c.l.b16 %v228
  %v261 = vunpack.c.l.b16 %v229
  %v262 = vunpack.c.l.b16 %v230
  %v263 = vunpack.c.l.b16 %v231
  %v264 = vpack.c.b16 %v249, %v248
  %v265 = vpack.c.b16 %v251, %v250
  %v266 = vpack.c.b16 %v253, %v252
  %v267 = vpack.c.b16 %v255, %v254
  %v268 = vpack.c.b16 %v257, %v256
  %v269 = vpack.c.b16 %v259, %v258
  %v270 = vpack.c.b16 %v261, %v260
  %v271 = vpack.c.b16 %v263, %v262
  %v273 = vsel %vm86, %v264, 0
  %v276 = vsel %vm86, %v265, 0
  %v279 = vsel %vm86, %v266, 0
  %v282 = vsel %vm86, %v267, 0
  %v285 = vsel %vm86, %v268, 0
  %v288 = vsel %vm86, %v269, 0
  %v291 = vsel %vm86, %v270, 0
  %v294 = vsel %vm86, %v271, 0
  %296 = vmatprep.subr.bf16.mxu0 0
  %297 = vmatpush1.bf16.msra.mxu0 %v83
  %298 = vmatprep.subr.bf16.mxu0 0
  %299 = vmatpush1.bf16.msra.mxu0 %v116
  %300 = vmatprep.subr.bf16.mxu0 0
  %301 = vmatpush1.bf16.msra.mxu0 0
  %302 = vmatprep.subr.bf16.mxu0 0
  %303 = vmatpush1.bf16.msra.mxu0 0
  %304 = vmatprep.subr.bf16.mxu0 0
  %305 = vmatpush1.bf16.msra.mxu0 0
  %306 = vmatprep.subr.bf16.mxu0 0
  %307 = vmatpush1.bf16.msra.mxu0 0
  %308 = vmatprep.subr.bf16.mxu0 0
  %309 = vmatpush1.bf16.msra.mxu0 0
  %310 = vmatprep.subr.bf16.mxu0 0
  %311 = vmatpush1.bf16.msra.mxu0 0
  %312 = vmatprep.subr.bf16.mxu0 0
  %313 = vmatpush1.bf16.msra.mxu0 0
  %314 = vmatprep.subr.bf16.mxu0 0
  %315 = vmatpush1.bf16.msra.mxu0 0
  %316 = vmatprep.subr.bf16.mxu0 0
  %317 = vmatpush1.bf16.msra.mxu0 0
  %318 = vmatprep.subr.bf16.mxu0 0
  %319 = vmatpush1.bf16.msra.mxu0 0
  %320 = vmatprep.subr.bf16.mxu0 0
  %321 = vmatpush1.bf16.msra.mxu0 0
  %322 = vmatprep.subr.bf16.mxu0 0
  %323 = vmatpush1.bf16.msra.mxu0 0
  %324 = vmatprep.subr.bf16.mxu0 0
  %325 = vmatpush1.bf16.msra.mxu0 0
  %326 = vmatprep.subr.bf16.mxu0 0
  %327 = vmatpush1.bf16.msra.mxu0 0
  %328 = vmatprep.mubr.bf16.mxu0 0
  %329 = vmatmul.mubr.bf16.gmra.mrb[0].mxu0 %v273
  %v330 = vpop.f32.mrb[0].mxu0
  %v331 = vadd.f32 0.0, %v330
  %v332 = vpop.f32.mrb[0].mxu0
  %v333 = vpop.f32.mrb[0].mxu0
  %v334 = vadd.f32 0.0, %v333
  %v335 = vpop.f32.mrb[0].mxu0
  %336 = vmatprep.mubr.bf16.mxu0 0
  %337 = vmatmul.mubr.bf16.gmra.mrb[0].mxu0 %v276
  %v338 = vpop.f32.mrb[0].mxu0
  %v339 = vadd.f32 0.0, %v338
  %v340 = vpop.f32.mrb[0].mxu0
  %v341 = vpop.f32.mrb[0].mxu0
  %v342 = vadd.f32 0.0, %v341
  %v343 = vpop.f32.mrb[0].mxu0
  %344 = vmatprep.mubr.bf16.mxu0 0
  %345 = vmatmul.mubr.bf16.gmra.mrb[0].mxu0 %v279
  %v346 = vpop.f32.mrb[0].mxu0
  %v347 = vadd.f32 0.0, %v346
  %v348 = vpop.f32.mrb[0].mxu0
  %v349 = vpop.f32.mrb[0].mxu0
  %v350 = vadd.f32 0.0, %v349
  %v351 = vpop.f32.mrb[0].mxu0
  %352 = vmatprep.mubr.bf16.mxu0 0
  %353 = vmatmul.mubr.bf16.gmra.mrb[0].mxu0 %v282
  %v354 = vpop.f32.mrb[0].mxu0
  %v355 = vadd.f32 0.0, %v354
  %v356 = vpop.f32.mrb[0].mxu0
  %v357 = vpop.f32.mrb[0].mxu0
  %v358 = vadd.f32 0.0, %v357
  %v359 = vpop.f32.mrb[0].mxu0
  %360 = vmatprep.mubr.bf16.mxu0 0
  %361 = vmatmul.mubr.bf16.gmra.mrb[0].mxu0 %v285
  %v362 = vpop.f32.mrb[0].mxu0
  %v363 = vadd.f32 0.0, %v362
  %v364 = vpop.f32.mrb[0].mxu0
  %v365 = vpop.f32.mrb[0].mxu0
  %v366 = vadd.f32 0.0, %v365
  %v367 = vpop.f32.mrb[0].mxu0
  %368 = vmatprep.mubr.bf16.mxu0 0
  %369 = vmatmul.mubr.bf16.gmra.mrb[0].mxu0 %v288
  %v370 = vpop.f32.mrb[0].mxu0
  %v371 = vadd.f32 0.0, %v370
  %v372 = vpop.f32.mrb[0].mxu0
  %v373 = vpop.f32.mrb[0].mxu0
  %v374 = vadd.f32 0.0, %v373
  %v375 = vpop.f32.mrb[0].mxu0
  %376 = vmatprep.mubr.bf16.mxu0 0
  %377 = vmatmul.mubr.bf16.gmra.mrb[0].mxu0 %v291
  %v378 = vpop.f32.mrb[0].mxu0
  %v379 = vadd.f32 0.0, %v378
  %v380 = vpop.f32.mrb[0].mxu0
  %v381 = vpop.f32.mrb[0].mxu0
  %v382 = vadd.f32 0.0, %v381
  %v383 = vpop.f32.mrb[0].mxu0
  %384 = vmatprep.mubr.bf16.mxu0 0
  %385 = vmatmul.mubr.bf16.gmra.mrb[0].mxu0 %v294
  %v386 = vpop.f32.mrb[0].mxu0
  %v387 = vadd.f32 0.0, %v386
  %v388 = vpop.f32.mrb[0].mxu0
  %v389 = vpop.f32.mrb[0].mxu0
  %v390 = vadd.f32 0.0, %v389
  %v391 = vpop.f32.mrb[0].mxu0
  %392 = vdwg.mxu0
  %v393 = vmax.f32 %v153, %v331
  %v394 = vmax.f32 %v156, %v334
  %v395 = vmax.f32 %v161, %v339
  %v396 = vmax.f32 %v164, %v342
  %v397 = vmax.f32 %v169, %v347
  %v398 = vmax.f32 %v172, %v350
  %v399 = vmax.f32 %v177, %v355
  %v400 = vmax.f32 %v180, %v358
  %v401 = vmax.f32 %v185, %v363
  %v402 = vmax.f32 %v188, %v366
  %v403 = vmax.f32 %v193, %v371
  %v404 = vmax.f32 %v196, %v374
  %v405 = vmax.f32 %v201, %v379
  %v406 = vmax.f32 %v204, %v382
  %v407 = vmax.f32 %v209, %v387
  %v408 = vmax.f32 %v212, %v390
  %s409 = scalar_lea.vmem %s0, 128
  %v410 = vld [vmem:[%s409] sm:$0xf]
  %v411 = vld [vmem:[%s409 + $0x4] sm:$0xf]
  %v412 = vld [vmem:[%s409 + $0x8] sm:$0xf]
  %v413 = vld [vmem:[%s409 + $0xc] sm:$0xf]
  %v414 = vld [vmem:[%s409 + $0x10] sm:$0xf]
  %v415 = vld [vmem:[%s409 + $0x14] sm:$0xf]
  %v416 = vld [vmem:[%s409 + $0x18] sm:$0xf]
  %v417 = vld [vmem:[%s409 + $0x1c] sm:$0xf]
  %v418 = vld [vmem:[%s409 + $0x20] sm:$0xf]
  %v419 = vld [vmem:[%s409 + $0x24] sm:$0xf]
  %v420 = vld [vmem:[%s409 + $0x28] sm:$0xf]
  %v421 = vld [vmem:[%s409 + $0x2c] sm:$0xf]
  %v422 = vld [vmem:[%s409 + $0x30] sm:$0xf]
  %v423 = vld [vmem:[%s409 + $0x34] sm:$0xf]
  %v424 = vld [vmem:[%s409 + $0x38] sm:$0xf]
  %v425 = vld [vmem:[%s409 + $0x3c] sm:$0xf]
  %v442 = vunpack.c.l.b16 %v410
  %v443 = vunpack.c.l.b16 %v411
  %v444 = vunpack.c.l.b16 %v412
  %v445 = vunpack.c.l.b16 %v413
  %v446 = vunpack.c.l.b16 %v414
  %v447 = vunpack.c.l.b16 %v415
  %v448 = vunpack.c.l.b16 %v416
  %v449 = vunpack.c.l.b16 %v417
  %v450 = vunpack.c.l.b16 %v418
  %v451 = vunpack.c.l.b16 %v419
  %v452 = vunpack.c.l.b16 %v420
  %v453 = vunpack.c.l.b16 %v421
  %v454 = vunpack.c.l.b16 %v422
  %v455 = vunpack.c.l.b16 %v423
  %v456 = vunpack.c.l.b16 %v424
  %v457 = vunpack.c.l.b16 %v425
  %v458 = vpack.c.b16 %v443, %v442
  %v459 = vpack.c.b16 %v445, %v444
  %v460 = vpack.c.b16 %v447, %v446
  %v461 = vpack.c.b16 %v449, %v448
  %v462 = vpack.c.b16 %v451, %v450
  %v463 = vpack.c.b16 %v453, %v452
  %v464 = vpack.c.b16 %v455, %v454
  %v465 = vpack.c.b16 %v457, %v456
  %v467 = vsel %vm86, %v458, 0
  %v470 = vsel %vm86, %v459, 0
  %v473 = vsel %vm86, %v460, 0
  %v476 = vsel %vm86, %v461, 0
  %v479 = vsel %vm86, %v462, 0
  %v482 = vsel %vm86, %v463, 0
  %v485 = vsel %vm86, %v464, 0
  %v488 = vsel %vm86, %v465, 0
  %490 = vmatprep.subr.bf16.mxu0 0
  %491 = vmatpush1.bf16.msra.mxu0 %v83
  %492 = vmatprep.subr.bf16.mxu0 0
  %493 = vmatpush1.bf16.msra.mxu0 %v116
  %494 = vmatprep.subr.bf16.mxu0 0
  %495 = vmatpush1.bf16.msra.mxu0 0
  %496 = vmatprep.subr.bf16.mxu0 0
  %497 = vmatpush1.bf16.msra.mxu0 0
  %498 = vmatprep.subr.bf16.mxu0 0
  %499 = vmatpush1.bf16.msra.mxu0 0
  %500 = vmatprep.subr.bf16.mxu0 0
  %501 = vmatpush1.bf16.msra.mxu0 0
  %502 = vmatprep.subr.bf16.mxu0 0
  %503 = vmatpush1.bf16.msra.mxu0 0
  %504 = vmatprep.subr.bf16.mxu0 0
  %505 = vmatpush1.bf16.msra.mxu0 0
  %506 = vmatprep.subr.bf16.mxu0 0
  %507 = vmatpush1.bf16.msra.mxu0 0
  %508 = vmatprep.subr.bf16.mxu0 0
  %509 = vmatpush1.bf16.msra.mxu0 0
  %510 = vmatprep.subr.bf16.mxu0 0
  %511 = vmatpush1.bf16.msra.mxu0 0
  %512 = vmatprep.subr.bf16.mxu0 0
  %513 = vmatpush1.bf16.msra.mxu0 0
  %514 = vmatprep.subr.bf16.mxu0 0
  %515 = vmatpush1.bf16.msra.mxu0 0
  %516 = vmatprep.subr.bf16.mxu0 0
  %517 = vmatpush1.bf16.msra.mxu0 0
  %518 = vmatprep.subr.bf16.mxu0 0
  %519 = vmatpush1.bf16.msra.mxu0 0
  %520 = vmatprep.subr.bf16.mxu0 0
  %521 = vmatpush1.bf16.msra.mxu0 0
  %522 = vmatprep.mubr.bf16.mxu0 0
  %523 = vmatmul.mubr.bf16.gmra.mrb[0].mxu0 %v467
  %v524 = vpop.f32.mrb[0].mxu0
  %v525 = vadd.f32 0.0, %v524
  %v526 = vpop.f32.mrb[0].mxu0
  %v527 = vpop.f32.mrb[0].mxu0
  %v528 = vadd.f32 0.0, %v527
  %v529 = vpop.f32.mrb[0].mxu0
  %530 = vmatprep.mubr.bf16.mxu0 0
  %531 = vmatmul.mubr.bf16.gmra.mrb[0].mxu0 %v470
  %v532 = vpop.f32.mrb[0].mxu0
  %v533 = vadd.f32 0.0, %v532
  %v534 = vpop.f32.mrb[0].mxu0
  %v535 = vpop.f32.mrb[0].mxu0
  %v536 = vadd.f32 0.0, %v535
  %v537 = vpop.f32.mrb[0].mxu0
  %538 = vmatprep.mubr.bf16.mxu0 0
  %539 = vmatmul.mubr.bf16.gmra.mrb[0].mxu0 %v473
  %v540 = vpop.f32.mrb[0].mxu0
  %v541 = vadd.f32 0.0, %v540
  %v542 = vpop.f32.mrb[0].mxu0
  %v543 = vpop.f32.mrb[0].mxu0
  %v544 = vadd.f32 0.0, %v543
  %v545 = vpop.f32.mrb[0].mxu0
  %546 = vmatprep.mubr.bf16.mxu0 0
  %547 = vmatmul.mubr.bf16.gmra.mrb[0].mxu0 %v476
  %v548 = vpop.f32.mrb[0].mxu0
  %v549 = vadd.f32 0.0, %v548
  %v550 = vpop.f32.mrb[0].mxu0
  %v551 = vpop.f32.mrb[0].mxu0
  %v552 = vadd.f32 0.0, %v551
  %v553 = vpop.f32.mrb[0].mxu0
  %554 = vmatprep.mubr.bf16.mxu0 0
  %555 = vmatmul.mubr.bf16.gmra.mrb[0].mxu0 %v479
  %v556 = vpop.f32.mrb[0].mxu0
  %v557 = vadd.f32 0.0, %v556
  %v558 = vpop.f32.mrb[0].mxu0
  %v559 = vpop.f32.mrb[0].mxu0
  %v560 = vadd.f32 0.0, %v559
  %v561 = vpop.f32.mrb[0].mxu0
  %562 = vmatprep.mubr.bf16.mxu0 0
  %563 = vmatmul.mubr.bf16.gmra.mrb[0].mxu0 %v482
  %v564 = vpop.f32.mrb[0].mxu0
  %v565 = vadd.f32 0.0, %v564
  %v566 = vpop.f32.mrb[0].mxu0
  %v567 = vpop.f32.mrb[0].mxu0
  %v568 = vadd.f32 0.0, %v567
  %v569 = vpop.f32.mrb[0].mxu0
  %570 = vmatprep.mubr.bf16.mxu0 0
  %571 = vmatmul.mubr.bf16.gmra.mrb[0].mxu0 %v485
  %v572 = vpop.f32.mrb[0].mxu0
  %v573 = vadd.f32 0.0, %v572
  %v574 = vpop.f32.mrb[0].mxu0
  %v575 = vpop.f32.mrb[0].mxu0
  %v576 = vadd.f32 0.0, %v575
  %v577 = vpop.f32.mrb[0].mxu0
  %578 = vmatprep.mubr.bf16.mxu0 0
  %579 = vmatmul.mubr.bf16.gmra.mrb[0].mxu0 %v488
  %v580 = vpop.f32.mrb[0].mxu0
  %v581 = vadd.f32 0.0, %v580
  %v582 = vpop.f32.mrb[0].mxu0
  %v583 = vpop.f32.mrb[0].mxu0
  %v584 = vadd.f32 0.0, %v583
  %v585 = vpop.f32.mrb[0].mxu0
  %586 = vdwg.mxu0
  %v587 = vmax.f32 %v393, %v525
  %v588 = vmax.f32 %v394, %v528
  %v589 = vmax.f32 %v395, %v533
  %v590 = vmax.f32 %v396, %v536
  %v591 = vmax.f32 %v397, %v541
  %v592 = vmax.f32 %v398, %v544
  %v593 = vmax.f32 %v399, %v549
  %v594 = vmax.f32 %v400, %v552
  %v595 = vmax.f32 %v401, %v557
  %v596 = vmax.f32 %v402, %v560
  %v597 = vmax.f32 %v403, %v565
  %v598 = vmax.f32 %v404, %v568
  %v599 = vmax.f32 %v405, %v573
  %v600 = vmax.f32 %v406, %v576
  %v601 = vmax.f32 %v407, %v581
  %v602 = vmax.f32 %v408, %v584
  %s603 = scalar_lea.vmem %s0, 192
  %v604 = vld [vmem:[%s603] sm:$0xf]
  %v605 = vld [vmem:[%s603 + $0x4] sm:$0xf]
  %v606 = vld [vmem:[%s603 + $0x8] sm:$0xf]
  %v607 = vld [vmem:[%s603 + $0xc] sm:$0xf]
  %v608 = vld [vmem:[%s603 + $0x10] sm:$0xf]
  %v609 = vld [vmem:[%s603 + $0x14] sm:$0xf]
  %v610 = vld [vmem:[%s603 + $0x18] sm:$0xf]
  %v611 = vld [vmem:[%s603 + $0x1c] sm:$0xf]
  %v612 = vld [vmem:[%s603 + $0x20] sm:$0xf]
  %v613 = vld [vmem:[%s603 + $0x24] sm:$0xf]
  %v614 = vld [vmem:[%s603 + $0x28] sm:$0xf]
  %v615 = vld [vmem:[%s603 + $0x2c] sm:$0xf]
  %v616 = vld [vmem:[%s603 + $0x30] sm:$0xf]
  %v617 = vld [vmem:[%s603 + $0x34] sm:$0xf]
  %v618 = vld [vmem:[%s603 + $0x38] sm:$0xf]
  %v619 = vld [vmem:[%s603 + $0x3c] sm:$0xf]
  %v636 = vunpack.c.l.b16 %v604
  %v637 = vunpack.c.l.b16 %v605
  %v638 = vunpack.c.l.b16 %v606
  %v639 = vunpack.c.l.b16 %v607
  %v640 = vunpack.c.l.b16 %v608
  %v641 = vunpack.c.l.b16 %v609
  %v642 = vunpack.c.l.b16 %v610
  %v643 = vunpack.c.l.b16 %v611
  %v644 = vunpack.c.l.b16 %v612
  %v645 = vunpack.c.l.b16 %v613
  %v646 = vunpack.c.l.b16 %v614
  %v647 = vunpack.c.l.b16 %v615
  %v648 = vunpack.c.l.b16 %v616
  %v649 = vunpack.c.l.b16 %v617
  %v650 = vunpack.c.l.b16 %v618
  %v651 = vunpack.c.l.b16 %v619
  %v652 = vpack.c.b16 %v637, %v636
  %v653 = vpack.c.b16 %v639, %v638
  %v654 = vpack.c.b16 %v641, %v640
  %v655 = vpack.c.b16 %v643, %v642
  %v656 = vpack.c.b16 %v645, %v644
  %v657 = vpack.c.b16 %v647, %v646
  %v658 = vpack.c.b16 %v649, %v648
  %v659 = vpack.c.b16 %v651, %v650
  %v661 = vsel %vm86, %v652, 0
  %v664 = vsel %vm86, %v653, 0
  %v667 = vsel %vm86, %v654, 0
  %v670 = vsel %vm86, %v655, 0
  %v673 = vsel %vm86, %v656, 0
  %v676 = vsel %vm86, %v657, 0
  %v679 = vsel %vm86, %v658, 0
  %v682 = vsel %vm86, %v659, 0
  %684 = vmatprep.subr.bf16.mxu0 0
  %685 = vmatpush1.bf16.msra.mxu0 %v83
  %686 = vmatprep.subr.bf16.mxu0 0
  %687 = vmatpush1.bf16.msra.mxu0 %v116
  %688 = vmatprep.subr.bf16.mxu0 0
  %689 = vmatpush1.bf16.msra.mxu0 0
  %690 = vmatprep.subr.bf16.mxu0 0
  %691 = vmatpush1.bf16.msra.mxu0 0
  %692 = vmatprep.subr.bf16.mxu0 0
  %693 = vmatpush1.bf16.msra.mxu0 0
  %694 = vmatprep.subr.bf16.mxu0 0
  %695 = vmatpush1.bf16.msra.mxu0 0
  %696 = vmatprep.subr.bf16.mxu0 0
  %697 = vmatpush1.bf16.msra.mxu0 0
  %698 = vmatprep.subr.bf16.mxu0 0
  %699 = vmatpush1.bf16.msra.mxu0 0
  %700 = vmatprep.subr.bf16.mxu0 0
  %701 = vmatpush1.bf16.msra.mxu0 0
  %702 = vmatprep.subr.bf16.mxu0 0
  %703 = vmatpush1.bf16.msra.mxu0 0
  %704 = vmatprep.subr.bf16.mxu0 0
  %705 = vmatpush1.bf16.msra.mxu0 0
  %706 = vmatprep.subr.bf16.mxu0 0
  %707 = vmatpush1.bf16.msra.mxu0 0
  %708 = vmatprep.subr.bf16.mxu0 0
  %709 = vmatpush1.bf16.msra.mxu0 0
  %710 = vmatprep.subr.bf16.mxu0 0
  %711 = vmatpush1.bf16.msra.mxu0 0
  %712 = vmatprep.subr.bf16.mxu0 0
  %713 = vmatpush1.bf16.msra.mxu0 0
  %714 = vmatprep.subr.bf16.mxu0 0
  %715 = vmatpush1.bf16.msra.mxu0 0
  %716 = vmatprep.mubr.bf16.mxu0 0
  %717 = vmatmul.mubr.bf16.gmra.mrb[0].mxu0 %v661
  %v718 = vpop.f32.mrb[0].mxu0
  %v719 = vadd.f32 0.0, %v718
  %v720 = vpop.f32.mrb[0].mxu0
  %v721 = vpop.f32.mrb[0].mxu0
  %v722 = vadd.f32 0.0, %v721
  %v723 = vpop.f32.mrb[0].mxu0
  %724 = vmatprep.mubr.bf16.mxu0 0
  %725 = vmatmul.mubr.bf16.gmra.mrb[0].mxu0 %v664
  %v726 = vpop.f32.mrb[0].mxu0
  %v727 = vadd.f32 0.0, %v726
  %v728 = vpop.f32.mrb[0].mxu0
  %v729 = vpop.f32.mrb[0].mxu0
  %v730 = vadd.f32 0.0, %v729
  %v731 = vpop.f32.mrb[0].mxu0
  %732 = vmatprep.mubr.bf16.mxu0 0
  %733 = vmatmul.mubr.bf16.gmra.mrb[0].mxu0 %v667
  %v734 = vpop.f32.mrb[0].mxu0
  %v735 = vadd.f32 0.0, %v734
  %v736 = vpop.f32.mrb[0].mxu0
  %v737 = vpop.f32.mrb[0].mxu0
  %v738 = vadd.f32 0.0, %v737
  %v739 = vpop.f32.mrb[0].mxu0
  %740 = vmatprep.mubr.bf16.mxu0 0
  %741 = vmatmul.mubr.bf16.gmra.mrb[0].mxu0 %v670
  %v742 = vpop.f32.mrb[0].mxu0
  %v743 = vadd.f32 0.0, %v742
  %v744 = vpop.f32.mrb[0].mxu0
  %v745 = vpop.f32.mrb[0].mxu0
  %v746 = vadd.f32 0.0, %v745
  %v747 = vpop.f32.mrb[0].mxu0
  %748 = vmatprep.mubr.bf16.mxu0 0
  %749 = vmatmul.mubr.bf16.gmra.mrb[0].mxu0 %v673
  %v750 = vpop.f32.mrb[0].mxu0
  %v751 = vadd.f32 0.0, %v750
  %v752 = vpop.f32.mrb[0].mxu0
  %v753 = vpop.f32.mrb[0].mxu0
  %v754 = vadd.f32 0.0, %v753
  %v755 = vpop.f32.mrb[0].mxu0
  %756 = vmatprep.mubr.bf16.mxu0 0
  %757 = vmatmul.mubr.bf16.gmra.mrb[0].mxu0 %v676
  %v758 = vpop.f32.mrb[0].mxu0
  %v759 = vadd.f32 0.0, %v758
  %v760 = vpop.f32.mrb[0].mxu0
  %v761 = vpop.f32.mrb[0].mxu0
  %v762 = vadd.f32 0.0, %v761
  %v763 = vpop.f32.mrb[0].mxu0
  %764 = vmatprep.mubr.bf16.mxu0 0
  %765 = vmatmul.mubr.bf16.gmra.mrb[0].mxu0 %v679
  %v766 = vpop.f32.mrb[0].mxu0
  %v767 = vadd.f32 0.0, %v766
  %v768 = vpop.f32.mrb[0].mxu0
  %v769 = vpop.f32.mrb[0].mxu0
  %v770 = vadd.f32 0.0, %v769
  %v771 = vpop.f32.mrb[0].mxu0
  %772 = vmatprep.mubr.bf16.mxu0 0
  %773 = vmatmul.mubr.bf16.gmra.mrb[0].mxu0 %v682
  %v774 = vpop.f32.mrb[0].mxu0
  %v775 = vadd.f32 0.0, %v774
  %v776 = vpop.f32.mrb[0].mxu0
  %v777 = vpop.f32.mrb[0].mxu0
  %v778 = vadd.f32 0.0, %v777
  %v779 = vpop.f32.mrb[0].mxu0
  %780 = vdwg.mxu0
  %v781 = vmax.f32 %v587, %v719
  %v782 = vmax.f32 %v588, %v722
  %v783 = vmax.f32 %v589, %v727
  %v784 = vmax.f32 %v590, %v730
  %v785 = vmax.f32 %v591, %v735
  %v786 = vmax.f32 %v592, %v738
  %v787 = vmax.f32 %v593, %v743
  %v788 = vmax.f32 %v594, %v746
  %v789 = vmax.f32 %v595, %v751
  %v790 = vmax.f32 %v596, %v754
  %v791 = vmax.f32 %v597, %v759
  %v792 = vmax.f32 %v598, %v762
  %v793 = vmax.f32 %v599, %v767
  %v794 = vmax.f32 %v600, %v770
  %v795 = vmax.f32 %v601, %v775
  %v796 = vmax.f32 %v602, %v778
  %s797 = scalar_lea.vmem %s0, 256
  %v798 = vld [vmem:[%s797] sm:$0xf]
  %v799 = vld [vmem:[%s797 + $0x4] sm:$0xf]
  %v800 = vld [vmem:[%s797 + $0x8] sm:$0xf]
  %v801 = vld [vmem:[%s797 + $0xc] sm:$0xf]
  %v802 = vld [vmem:[%s797 + $0x10] sm:$0xf]
  %v803 = vld [vmem:[%s797 + $0x14] sm:$0xf]
  %v804 = vld [vmem:[%s797 + $0x18] sm:$0xf]
  %v805 = vld [vmem:[%s797 + $0x1c] sm:$0xf]
  %v806 = vld [vmem:[%s797 + $0x20] sm:$0xf]
  %v807 = vld [vmem:[%s797 + $0x24] sm:$0xf]
  %v808 = vld [vmem:[%s797 + $0x28] sm:$0xf]
  %v809 = vld [vmem:[%s797 + $0x2c] sm:$0xf]
  %v810 = vld [vmem:[%s797 + $0x30] sm:$0xf]
  %v811 = vld [vmem:[%s797 + $0x34] sm:$0xf]
  %v812 = vld [vmem:[%s797 + $0x38] sm:$0xf]
  %v813 = vld [vmem:[%s797 + $0x3c] sm:$0xf]
  %v830 = vunpack.c.l.b16 %v798
  %v831 = vunpack.c.l.b16 %v799
  %v832 = vunpack.c.l.b16 %v800
  %v833 = vunpack.c.l.b16 %v801
  %v834 = vunpack.c.l.b16 %v802
  %v835 = vunpack.c.l.b16 %v803
  %v836 = vunpack.c.l.b16 %v804
  %v837 = vunpack.c.l.b16 %v805
  %v838 = vunpack.c.l.b16 %v806
  %v839 = vunpack.c.l.b16 %v807
  %v840 = vunpack.c.l.b16 %v808
  %v841 = vunpack.c.l.b16 %v809
  %v842 = vunpack.c.l.b16 %v810
  %v843 = vunpack.c.l.b16 %v811
  %v844 = vunpack.c.l.b16 %v812
  %v845 = vunpack.c.l.b16 %v813
  %v846 = vpack.c.b16 %v831, %v830
  %v847 = vpack.c.b16 %v833, %v832
  %v848 = vpack.c.b16 %v835, %v834
  %v849 = vpack.c.b16 %v837, %v836
  %v850 = vpack.c.b16 %v839, %v838
  %v851 = vpack.c.b16 %v841, %v840
  %v852 = vpack.c.b16 %v843, %v842
  %v853 = vpack.c.b16 %v845, %v844
  %v855 = vsel %vm86, %v846, 0
  %v858 = vsel %vm86, %v847, 0
  %v861 = vsel %vm86, %v848, 0
  %v864 = vsel %vm86, %v849, 0
  %v867 = vsel %vm86, %v850, 0
  %v870 = vsel %vm86, %v851, 0
  %v873 = vsel %vm86, %v852, 0
  %v876 = vsel %vm86, %v853, 0
  %878 = vmatprep.subr.bf16.mxu0 0
  %879 = vmatpush1.bf16.msra.mxu0 %v83
  %880 = vmatprep.subr.bf16.mxu0 0
  %881 = vmatpush1.bf16.msra.mxu0 %v116
  %882 = vmatprep.subr.bf16.mxu0 0
  %883 = vmatpush1.bf16.msra.mxu0 0
  %884 = vmatprep.subr.bf16.mxu0 0
  %885 = vmatpush1.bf16.msra.mxu0 0
  %886 = vmatprep.subr.bf16.mxu0 0
  %887 = vmatpush1.bf16.msra.mxu0 0
  %888 = vmatprep.subr.bf16.mxu0 0
  %889 = vmatpush1.bf16.msra.mxu0 0
  %890 = vmatprep.subr.bf16.mxu0 0
  %891 = vmatpush1.bf16.msra.mxu0 0
  %892 = vmatprep.subr.bf16.mxu0 0
  %893 = vmatpush1.bf16.msra.mxu0 0
  %894 = vmatprep.subr.bf16.mxu0 0
  %895 = vmatpush1.bf16.msra.mxu0 0
  %896 = vmatprep.subr.bf16.mxu0 0
  %897 = vmatpush1.bf16.msra.mxu0 0
  %898 = vmatprep.subr.bf16.mxu0 0
  %899 = vmatpush1.bf16.msra.mxu0 0
  %900 = vmatprep.subr.bf16.mxu0 0
  %901 = vmatpush1.bf16.msra.mxu0 0
  %902 = vmatprep.subr.bf16.mxu0 0
  %903 = vmatpush1.bf16.msra.mxu0 0
  %904 = vmatprep.subr.bf16.mxu0 0
  %905 = vmatpush1.bf16.msra.mxu0 0
  %906 = vmatprep.subr.bf16.mxu0 0
  %907 = vmatpush1.bf16.msra.mxu0 0
  %908 = vmatprep.subr.bf16.mxu0 0
  %909 = vmatpush1.bf16.msra.mxu0 0
  %910 = vmatprep.mubr.bf16.mxu0 0
  %911 = vmatmul.mubr.bf16.gmra.mrb[0].mxu0 %v855
  %v912 = vpop.f32.mrb[0].mxu0
  %v913 = vadd.f32 0.0, %v912
  %v914 = vpop.f32.mrb[0].mxu0
  %v915 = vpop.f32.mrb[0].mxu0
  %v916 = vadd.f32 0.0, %v915
  %v917 = vpop.f32.mrb[0].mxu0
  %918 = vmatprep.mubr.bf16.mxu0 0
  %919 = vmatmul.mubr.bf16.gmra.mrb[0].mxu0 %v858
  %v920 = vpop.f32.mrb[0].mxu0
  %v921 = vadd.f32 0.0, %v920
  %v922 = vpop.f32.mrb[0].mxu0
  %v923 = vpop.f32.mrb[0].mxu0
  %v924 = vadd.f32 0.0, %v923
  %v925 = vpop.f32.mrb[0].mxu0
  %926 = vmatprep.mubr.bf16.mxu0 0
  %927 = vmatmul.mubr.bf16.gmra.mrb[0].mxu0 %v861
  %v928 = vpop.f32.mrb[0].mxu0
  %v929 = vadd.f32 0.0, %v928
  %v930 = vpop.f32.mrb[0].mxu0
  %v931 = vpop.f32.mrb[0].mxu0
  %v932 = vadd.f32 0.0, %v931
  %v933 = vpop.f32.mrb[0].mxu0
  %934 = vmatprep.mubr.bf16.mxu0 0
  %935 = vmatmul.mubr.bf16.gmra.mrb[0].mxu0 %v864
  %v936 = vpop.f32.mrb[0].mxu0
  %v937 = vadd.f32 0.0, %v936
  %v938 = vpop.f32.mrb[0].mxu0
  %v939 = vpop.f32.mrb[0].mxu0
  %v940 = vadd.f32 0.0, %v939
  %v941 = vpop.f32.mrb[0].mxu0
  %942 = vmatprep.mubr.bf16.mxu0 0
  %943 = vmatmul.mubr.bf16.gmra.mrb[0].mxu0 %v867
  %v944 = vpop.f32.mrb[0].mxu0
  %v945 = vadd.f32 0.0, %v944
  %v946 = vpop.f32.mrb[0].mxu0
  %v947 = vpop.f32.mrb[0].mxu0
  %v948 = vadd.f32 0.0, %v947
  %v949 = vpop.f32.mrb[0].mxu0
  %950 = vmatprep.mubr.bf16.mxu0 0
  %951 = vmatmul.mubr.bf16.gmra.mrb[0].mxu0 %v870
  %v952 = vpop.f32.mrb[0].mxu0
  %v953 = vadd.f32 0.0, %v952
  %v954 = vpop.f32.mrb[0].mxu0
  %v955 = vpop.f32.mrb[0].mxu0
  %v956 = vadd.f32 0.0, %v955
  %v957 = vpop.f32.mrb[0].mxu0
  %958 = vmatprep.mubr.bf16.mxu0 0
  %959 = vmatmul.mubr.bf16.gmra.mrb[0].mxu0 %v873
  %v960 = vpop.f32.mrb[0].mxu0
  %v961 = vadd.f32 0.0, %v960
  %v962 = vpop.f32.mrb[0].mxu0
  %v963 = vpop.f32.mrb[0].mxu0
  %v964 = vadd.f32 0.0, %v963
  %v965 = vpop.f32.mrb[0].mxu0
  %966 = vmatprep.mubr.bf16.mxu0 0
  %967 = vmatmul.mubr.bf16.gmra.mrb[0].mxu0 %v876
  %v968 = vpop.f32.mrb[0].mxu0
  %v969 = vadd.f32 0.0, %v968
  %v970 = vpop.f32.mrb[0].mxu0
  %v971 = vpop.f32.mrb[0].mxu0
  %v972 = vadd.f32 0.0, %v971
  %v973 = vpop.f32.mrb[0].mxu0
  %974 = vdwg.mxu0
  %v975 = vmax.f32 %v781, %v913
  %v976 = vmax.f32 %v782, %v916
  %v977 = vmax.f32 %v783, %v921
  %v978 = vmax.f32 %v784, %v924
  %v979 = vmax.f32 %v785, %v929
  %v980 = vmax.f32 %v786, %v932
  %v981 = vmax.f32 %v787, %v937
  %v982 = vmax.f32 %v788, %v940
  %v983 = vmax.f32 %v789, %v945
  %v984 = vmax.f32 %v790, %v948
  %v985 = vmax.f32 %v791, %v953
  %v986 = vmax.f32 %v792, %v956
  %v987 = vmax.f32 %v793, %v961
  %v988 = vmax.f32 %v794, %v964
  %v989 = vmax.f32 %v795, %v969
  %v990 = vmax.f32 %v796, %v972
  %s991 = scalar_lea.vmem %s0, 320
  %v992 = vld [vmem:[%s991] sm:$0xf]
  %v993 = vld [vmem:[%s991 + $0x4] sm:$0xf]
  %v994 = vld [vmem:[%s991 + $0x8] sm:$0xf]
  %v995 = vld [vmem:[%s991 + $0xc] sm:$0xf]
  %v996 = vld [vmem:[%s991 + $0x10] sm:$0xf]
  %v997 = vld [vmem:[%s991 + $0x14] sm:$0xf]
  %v998 = vld [vmem:[%s991 + $0x18] sm:$0xf]
  %v999 = vld [vmem:[%s991 + $0x1c] sm:$0xf]
  %v1000 = vld [vmem:[%s991 + $0x20] sm:$0xf]
  %v1001 = vld [vmem:[%s991 + $0x24] sm:$0xf]
  %v1002 = vld [vmem:[%s991 + $0x28] sm:$0xf]
  %v1003 = vld [vmem:[%s991 + $0x2c] sm:$0xf]
  %v1004 = vld [vmem:[%s991 + $0x30] sm:$0xf]
  %v1005 = vld [vmem:[%s991 + $0x34] sm:$0xf]
  %v1006 = vld [vmem:[%s991 + $0x38] sm:$0xf]
  %v1007 = vld [vmem:[%s991 + $0x3c] sm:$0xf]
  %v1024 = vunpack.c.l.b16 %v992
  %v1025 = vunpack.c.l.b16 %v993
  %v1026 = vunpack.c.l.b16 %v994
  %v1027 = vunpack.c.l.b16 %v995
  %v1028 = vunpack.c.l.b16 %v996
  %v1029 = vunpack.c.l.b16 %v997
  %v1030 = vunpack.c.l.b16 %v998
  %v1031 = vunpack.c.l.b16 %v999
  %v1032 = vunpack.c.l.b16 %v1000
  %v1033 = vunpack.c.l.b16 %v1001
  %v1034 = vunpack.c.l.b16 %v1002
  %v1035 = vunpack.c.l.b16 %v1003
  %v1036 = vunpack.c.l.b16 %v1004
  %v1037 = vunpack.c.l.b16 %v1005
  %v1038 = vunpack.c.l.b16 %v1006
  %v1039 = vunpack.c.l.b16 %v1007
  %v1040 = vpack.c.b16 %v1025, %v1024
  %v1041 = vpack.c.b16 %v1027, %v1026
  %v1042 = vpack.c.b16 %v1029, %v1028
  %v1043 = vpack.c.b16 %v1031, %v1030
  %v1044 = vpack.c.b16 %v1033, %v1032
  %v1045 = vpack.c.b16 %v1035, %v1034
  %v1046 = vpack.c.b16 %v1037, %v1036
  %v1047 = vpack.c.b16 %v1039, %v1038
  %v1049 = vsel %vm86, %v1040, 0
  %v1052 = vsel %vm86, %v1041, 0
  %v1055 = vsel %vm86, %v1042, 0
  %v1058 = vsel %vm86, %v1043, 0
  %v1061 = vsel %vm86, %v1044, 0
  %v1064 = vsel %vm86, %v1045, 0
  %v1067 = vsel %vm86, %v1046, 0
  %v1070 = vsel %vm86, %v1047, 0
  %1072 = vmatprep.subr.bf16.mxu0 0
  %1073 = vmatpush1.bf16.msra.mxu0 %v83
  %1074 = vmatprep.subr.bf16.mxu0 0
  %1075 = vmatpush1.bf16.msra.mxu0 %v116
  %1076 = vmatprep.subr.bf16.mxu0 0
  %1077 = vmatpush1.bf16.msra.mxu0 0
  %1078 = vmatprep.subr.bf16.mxu0 0
  %1079 = vmatpush1.bf16.msra.mxu0 0
  %1080 = vmatprep.subr.bf16.mxu0 0
  %1081 = vmatpush1.bf16.msra.mxu0 0
  %1082 = vmatprep.subr.bf16.mxu0 0
  %1083 = vmatpush1.bf16.msra.mxu0 0
  %1084 = vmatprep.subr.bf16.mxu0 0
  %1085 = vmatpush1.bf16.msra.mxu0 0
  %1086 = vmatprep.subr.bf16.mxu0 0
  %1087 = vmatpush1.bf16.msra.mxu0 0
  %1088 = vmatprep.subr.bf16.mxu0 0
  %1089 = vmatpush1.bf16.msra.mxu0 0
  %1090 = vmatprep.subr.bf16.mxu0 0
  %1091 = vmatpush1.bf16.msra.mxu0 0
  %1092 = vmatprep.subr.bf16.mxu0 0
  %1093 = vmatpush1.bf16.msra.mxu0 0
  %1094 = vmatprep.subr.bf16.mxu0 0
  %1095 = vmatpush1.bf16.msra.mxu0 0
  %1096 = vmatprep.subr.bf16.mxu0 0
  %1097 = vmatpush1.bf16.msra.mxu0 0
  %1098 = vmatprep.subr.bf16.mxu0 0
  %1099 = vmatpush1.bf16.msra.mxu0 0
  %1100 = vmatprep.subr.bf16.mxu0 0
  %1101 = vmatpush1.bf16.msra.mxu0 0
  %1102 = vmatprep.subr.bf16.mxu0 0
  %1103 = vmatpush1.bf16.msra.mxu0 0
  %1104 = vmatprep.mubr.bf16.mxu0 0
  %1105 = vmatmul.mubr.bf16.gmra.mrb[0].mxu0 %v1049
  %v1106 = vpop.f32.mrb[0].mxu0
  %v1107 = vadd.f32 0.0, %v1106
  %v1108 = vpop.f32.mrb[0].mxu0
  %v1109 = vpop.f32.mrb[0].mxu0
  %v1110 = vadd.f32 0.0, %v1109
  %v1111 = vpop.f32.mrb[0].mxu0
  %1112 = vmatprep.mubr.bf16.mxu0 0
  %1113 = vmatmul.mubr.bf16.gmra.mrb[0].mxu0 %v1052
  %v1114 = vpop.f32.mrb[0].mxu0
  %v1115 = vadd.f32 0.0, %v1114
  %v1116 = vpop.f32.mrb[0].mxu0
  %v1117 = vpop.f32.mrb[0].mxu0
  %v1118 = vadd.f32 0.0, %v1117
  %v1119 = vpop.f32.mrb[0].mxu0
  %1120 = vmatprep.mubr.bf16.mxu0 0
  %1121 = vmatmul.mubr.bf16.gmra.mrb[0].mxu0 %v1055
  %v1122 = vpop.f32.mrb[0].mxu0
  %v1123 = vadd.f32 0.0, %v1122
  %v1124 = vpop.f32.mrb[0].mxu0
  %v1125 = vpop.f32.mrb[0].mxu0
  %v1126 = vadd.f32 0.0, %v1125
  %v1127 = vpop.f32.mrb[0].mxu0
  %1128 = vmatprep.mubr.bf16.mxu0 0
  %1129 = vmatmul.mubr.bf16.gmra.mrb[0].mxu0 %v1058
  %v1130 = vpop.f32.mrb[0].mxu0
  %v1131 = vadd.f32 0.0, %v1130
  %v1132 = vpop.f32.mrb[0].mxu0
  %v1133 = vpop.f32.mrb[0].mxu0
  %v1134 = vadd.f32 0.0, %v1133
  %v1135 = vpop.f32.mrb[0].mxu0
  %1136 = vmatprep.mubr.bf16.mxu0 0
  %1137 = vmatmul.mubr.bf16.gmra.mrb[0].mxu0 %v1061
  %v1138 = vpop.f32.mrb[0].mxu0
  %v1139 = vadd.f32 0.0, %v1138
  %v1140 = vpop.f32.mrb[0].mxu0
  %v1141 = vpop.f32.mrb[0].mxu0
  %v1142 = vadd.f32 0.0, %v1141
  %v1143 = vpop.f32.mrb[0].mxu0
  %1144 = vmatprep.mubr.bf16.mxu0 0
  %1145 = vmatmul.mubr.bf16.gmra.mrb[0].mxu0 %v1064
  %v1146 = vpop.f32.mrb[0].mxu0
  %v1147 = vadd.f32 0.0, %v1146
  %v1148 = vpop.f32.mrb[0].mxu0
  %v1149 = vpop.f32.mrb[0].mxu0
  %v1150 = vadd.f32 0.0, %v1149
  %v1151 = vpop.f32.mrb[0].mxu0
  %1152 = vmatprep.mubr.bf16.mxu0 0
  %1153 = vmatmul.mubr.bf16.gmra.mrb[0].mxu0 %v1067
  %v1154 = vpop.f32.mrb[0].mxu0
  %v1155 = vadd.f32 0.0, %v1154
  %v1156 = vpop.f32.mrb[0].mxu0
  %v1157 = vpop.f32.mrb[0].mxu0
  %v1158 = vadd.f32 0.0, %v1157
  %v1159 = vpop.f32.mrb[0].mxu0
  %1160 = vmatprep.mubr.bf16.mxu0 0
  %1161 = vmatmul.mubr.bf16.gmra.mrb[0].mxu0 %v1070
  %v1162 = vpop.f32.mrb[0].mxu0
  %v1163 = vadd.f32 0.0, %v1162
  %v1164 = vpop.f32.mrb[0].mxu0
  %v1165 = vpop.f32.mrb[0].mxu0
  %v1166 = vadd.f32 0.0, %v1165
  %v1167 = vpop.f32.mrb[0].mxu0
  %1168 = vdwg.mxu0
  %v1169 = vmax.f32 %v975, %v1107
  %v1170 = vmax.f32 %v976, %v1110
  %v1171 = vmax.f32 %v977, %v1115
  %v1172 = vmax.f32 %v978, %v1118
  %v1173 = vmax.f32 %v979, %v1123
  %v1174 = vmax.f32 %v980, %v1126
  %v1175 = vmax.f32 %v981, %v1131
  %v1176 = vmax.f32 %v982, %v1134
  %v1177 = vmax.f32 %v983, %v1139
  %v1178 = vmax.f32 %v984, %v1142
  %v1179 = vmax.f32 %v985, %v1147
  %v1180 = vmax.f32 %v986, %v1150
  %v1181 = vmax.f32 %v987, %v1155
  %v1182 = vmax.f32 %v988, %v1158
  %v1183 = vmax.f32 %v989, %v1163
  %v1184 = vmax.f32 %v990, %v1166
  %s1185 = scalar_lea.vmem %s0, 384
  %v1186 = vld [vmem:[%s1185] sm:$0xf]
  %v1187 = vld [vmem:[%s1185 + $0x4] sm:$0xf]
  %v1188 = vld [vmem:[%s1185 + $0x8] sm:$0xf]
  %v1189 = vld [vmem:[%s1185 + $0xc] sm:$0xf]
  %v1190 = vld [vmem:[%s1185 + $0x10] sm:$0xf]
  %v1191 = vld [vmem:[%s1185 + $0x14] sm:$0xf]
  %v1192 = vld [vmem:[%s1185 + $0x18] sm:$0xf]
  %v1193 = vld [vmem:[%s1185 + $0x1c] sm:$0xf]
  %v1194 = vld [vmem:[%s1185 + $0x20] sm:$0xf]
  %v1195 = vld [vmem:[%s1185 + $0x24] sm:$0xf]
  %v1196 = vld [vmem:[%s1185 + $0x28] sm:$0xf]
  %v1197 = vld [vmem:[%s1185 + $0x2c] sm:$0xf]
  %v1198 = vld [vmem:[%s1185 + $0x30] sm:$0xf]
  %v1199 = vld [vmem:[%s1185 + $0x34] sm:$0xf]
  %v1200 = vld [vmem:[%s1185 + $0x38] sm:$0xf]
  %v1201 = vld [vmem:[%s1185 + $0x3c] sm:$0xf]
  %v1218 = vunpack.c.l.b16 %v1186
  %v1219 = vunpack.c.l.b16 %v1187
  %v1220 = vunpack.c.l.b16 %v1188
  %v1221 = vunpack.c.l.b16 %v1189
  %v1222 = vunpack.c.l.b16 %v1190
  %v1223 = vunpack.c.l.b16 %v1191
  %v1224 = vunpack.c.l.b16 %v1192
  %v1225 = vunpack.c.l.b16 %v1193
  %v1226 = vunpack.c.l.b16 %v1194
  %v1227 = vunpack.c.l.b16 %v1195
  %v1228 = vunpack.c.l.b16 %v1196
  %v1229 = vunpack.c.l.b16 %v1197
  %v1230 = vunpack.c.l.b16 %v1198
  %v1231 = vunpack.c.l.b16 %v1199
  %v1232 = vunpack.c.l.b16 %v1200
  %v1233 = vunpack.c.l.b16 %v1201
  %v1234 = vpack.c.b16 %v1219, %v1218
  %v1235 = vpack.c.b16 %v1221, %v1220
  %v1236 = vpack.c.b16 %v1223, %v1222
  %v1237 = vpack.c.b16 %v1225, %v1224
  %v1238 = vpack.c.b16 %v1227, %v1226
  %v1239 = vpack.c.b16 %v1229, %v1228
  %v1240 = vpack.c.b16 %v1231, %v1230
  %v1241 = vpack.c.b16 %v1233, %v1232
  %v1243 = vsel %vm86, %v1234, 0
  %v1246 = vsel %vm86, %v1235, 0
  %v1249 = vsel %vm86, %v1236, 0
  %v1252 = vsel %vm86, %v1237, 0
  %v1255 = vsel %vm86, %v1238, 0
  %v1258 = vsel %vm86, %v1239, 0
  %v1261 = vsel %vm86, %v1240, 0
  %v1264 = vsel %vm86, %v1241, 0
  %1266 = vmatprep.subr.bf16.mxu0 0
  %1267 = vmatpush1.bf16.msra.mxu0 %v83
  %1268 = vmatprep.subr.bf16.mxu0 0
  %1269 = vmatpush1.bf16.msra.mxu0 %v116
  %1270 = vmatprep.subr.bf16.mxu0 0
  %1271 = vmatpush1.bf16.msra.mxu0 0
  %1272 = vmatprep.subr.bf16.mxu0 0
  %1273 = vmatpush1.bf16.msra.mxu0 0
  %1274 = vmatprep.subr.bf16.mxu0 0
  %1275 = vmatpush1.bf16.msra.mxu0 0
  %1276 = vmatprep.subr.bf16.mxu0 0
  %1277 = vmatpush1.bf16.msra.mxu0 0
  %1278 = vmatprep.subr.bf16.mxu0 0
  %1279 = vmatpush1.bf16.msra.mxu0 0
  %1280 = vmatprep.subr.bf16.mxu0 0
  %1281 = vmatpush1.bf16.msra.mxu0 0
  %1282 = vmatprep.subr.bf16.mxu0 0
  %1283 = vmatpush1.bf16.msra.mxu0 0
  %1284 = vmatprep.subr.bf16.mxu0 0
  %1285 = vmatpush1.bf16.msra.mxu0 0
  %1286 = vmatprep.subr.bf16.mxu0 0
  %1287 = vmatpush1.bf16.msra.mxu0 0
  %1288 = vmatprep.subr.bf16.mxu0 0
  %1289 = vmatpush1.bf16.msra.mxu0 0
  %1290 = vmatprep.subr.bf16.mxu0 0
  %1291 = vmatpush1.bf16.msra.mxu0 0
  %1292 = vmatprep.subr.bf16.mxu0 0
  %1293 = vmatpush1.bf16.msra.mxu0 0
  %1294 = vmatprep.subr.bf16.mxu0 0
  %1295 = vmatpush1.bf16.msra.mxu0 0
  %1296 = vmatprep.subr.bf16.mxu0 0
  %1297 = vmatpush1.bf16.msra.mxu0 0
  %1298 = vmatprep.mubr.bf16.mxu0 0
  %1299 = vmatmul.mubr.bf16.gmra.mrb[0].mxu0 %v1243
  %v1300 = vpop.f32.mrb[0].mxu0
  %v1301 = vadd.f32 0.0, %v1300
  %v1302 = vpop.f32.mrb[0].mxu0
  %v1303 = vpop.f32.mrb[0].mxu0
  %v1304 = vadd.f32 0.0, %v1303
  %v1305 = vpop.f32.mrb[0].mxu0
  %1306 = vmatprep.mubr.bf16.mxu0 0
  %1307 = vmatmul.mubr.bf16.gmra.mrb[0].mxu0 %v1246
  %v1308 = vpop.f32.mrb[0].mxu0
  %v1309 = vadd.f32 0.0, %v1308
  %v1310 = vpop.f32.mrb[0].mxu0
  %v1311 = vpop.f32.mrb[0].mxu0
  %v1312 = vadd.f32 0.0, %v1311
  %v1313 = vpop.f32.mrb[0].mxu0
  %1314 = vmatprep.mubr.bf16.mxu0 0
  %1315 = vmatmul.mubr.bf16.gmra.mrb[0].mxu0 %v1249
  %v1316 = vpop.f32.mrb[0].mxu0
  %v1317 = vadd.f32 0.0, %v1316
  %v1318 = vpop.f32.mrb[0].mxu0
  %v1319 = vpop.f32.mrb[0].mxu0
  %v1320 = vadd.f32 0.0, %v1319
  %v1321 = vpop.f32.mrb[0].mxu0
  %1322 = vmatprep.mubr.bf16.mxu0 0
  %1323 = vmatmul.mubr.bf16.gmra.mrb[0].mxu0 %v1252
  %v1324 = vpop.f32.mrb[0].mxu0
  %v1325 = vadd.f32 0.0, %v1324
  %v1326 = vpop.f32.mrb[0].mxu0
  %v1327 = vpop.f32.mrb[0].mxu0
  %v1328 = vadd.f32 0.0, %v1327
  %v1329 = vpop.f32.mrb[0].mxu0
  %1330 = vmatprep.mubr.bf16.mxu0 0
  %1331 = vmatmul.mubr.bf16.gmra.mrb[0].mxu0 %v1255
  %v1332 = vpop.f32.mrb[0].mxu0
  %v1333 = vadd.f32 0.0, %v1332
  %v1334 = vpop.f32.mrb[0].mxu0
  %v1335 = vpop.f32.mrb[0].mxu0
  %v1336 = vadd.f32 0.0, %v1335
  %v1337 = vpop.f32.mrb[0].mxu0
  %1338 = vmatprep.mubr.bf16.mxu0 0
  %1339 = vmatmul.mubr.bf16.gmra.mrb[0].mxu0 %v1258
  %v1340 = vpop.f32.mrb[0].mxu0
  %v1341 = vadd.f32 0.0, %v1340
  %v1342 = vpop.f32.mrb[0].mxu0
  %v1343 = vpop.f32.mrb[0].mxu0
  %v1344 = vadd.f32 0.0, %v1343
  %v1345 = vpop.f32.mrb[0].mxu0
  %1346 = vmatprep.mubr.bf16.mxu0 0
  %1347 = vmatmul.mubr.bf16.gmra.mrb[0].mxu0 %v1261
  %v1348 = vpop.f32.mrb[0].mxu0
  %v1349 = vadd.f32 0.0, %v1348
  %v1350 = vpop.f32.mrb[0].mxu0
  %v1351 = vpop.f32.mrb[0].mxu0
  %v1352 = vadd.f32 0.0, %v1351
  %v1353 = vpop.f32.mrb[0].mxu0
  %1354 = vmatprep.mubr.bf16.mxu0 0
  %1355 = vmatmul.mubr.bf16.gmra.mrb[0].mxu0 %v1264
  %v1356 = vpop.f32.mrb[0].mxu0
  %v1357 = vadd.f32 0.0, %v1356
  %v1358 = vpop.f32.mrb[0].mxu0
  %v1359 = vpop.f32.mrb[0].mxu0
  %v1360 = vadd.f32 0.0, %v1359
  %v1361 = vpop.f32.mrb[0].mxu0
  %1362 = vdwg.mxu0
  %v1363 = vmax.f32 %v1169, %v1301
  %v1364 = vmax.f32 %v1170, %v1304
  %v1365 = vmax.f32 %v1171, %v1309
  %v1366 = vmax.f32 %v1172, %v1312
  %v1367 = vmax.f32 %v1173, %v1317
  %v1368 = vmax.f32 %v1174, %v1320
  %v1369 = vmax.f32 %v1175, %v1325
  %v1370 = vmax.f32 %v1176, %v1328
  %v1371 = vmax.f32 %v1177, %v1333
  %v1372 = vmax.f32 %v1178, %v1336
  %v1373 = vmax.f32 %v1179, %v1341
  %v1374 = vmax.f32 %v1180, %v1344
  %v1375 = vmax.f32 %v1181, %v1349
  %v1376 = vmax.f32 %v1182, %v1352
  %v1377 = vmax.f32 %v1183, %v1357
  %v1378 = vmax.f32 %v1184, %v1360
  %s1379 = scalar_lea.vmem %s0, 448
  %v1380 = vld [vmem:[%s1379] sm:$0xf]
  %v1381 = vld [vmem:[%s1379 + $0x4] sm:$0xf]
  %v1382 = vld [vmem:[%s1379 + $0x8] sm:$0xf]
  %v1383 = vld [vmem:[%s1379 + $0xc] sm:$0xf]
  %v1384 = vld [vmem:[%s1379 + $0x10] sm:$0xf]
  %v1385 = vld [vmem:[%s1379 + $0x14] sm:$0xf]
  %v1386 = vld [vmem:[%s1379 + $0x18] sm:$0xf]
  %v1387 = vld [vmem:[%s1379 + $0x1c] sm:$0xf]
  %v1388 = vld [vmem:[%s1379 + $0x20] sm:$0xf]
  %v1389 = vld [vmem:[%s1379 + $0x24] sm:$0xf]
  %v1390 = vld [vmem:[%s1379 + $0x28] sm:$0xf]
  %v1391 = vld [vmem:[%s1379 + $0x2c] sm:$0xf]
  %v1392 = vld [vmem:[%s1379 + $0x30] sm:$0xf]
  %v1393 = vld [vmem:[%s1379 + $0x34] sm:$0xf]
  %v1394 = vld [vmem:[%s1379 + $0x38] sm:$0xf]
  %v1395 = vld [vmem:[%s1379 + $0x3c] sm:$0xf]
  %v1412 = vunpack.c.l.b16 %v1380
  %v1413 = vunpack.c.l.b16 %v1381
  %v1414 = vunpack.c.l.b16 %v1382
  %v1415 = vunpack.c.l.b16 %v1383
  %v1416 = vunpack.c.l.b16 %v1384
  %v1417 = vunpack.c.l.b16 %v1385
  %v1418 = vunpack.c.l.b16 %v1386
  %v1419 = vunpack.c.l.b16 %v1387
  %v1420 = vunpack.c.l.b16 %v1388
  %v1421 = vunpack.c.l.b16 %v1389
  %v1422 = vunpack.c.l.b16 %v1390
  %v1423 = vunpack.c.l.b16 %v1391
  %v1424 = vunpack.c.l.b16 %v1392
  %v1425 = vunpack.c.l.b16 %v1393
  %v1426 = vunpack.c.l.b16 %v1394
  %v1427 = vunpack.c.l.b16 %v1395
  %v1428 = vpack.c.b16 %v1413, %v1412
  %v1429 = vpack.c.b16 %v1415, %v1414
  %v1430 = vpack.c.b16 %v1417, %v1416
  %v1431 = vpack.c.b16 %v1419, %v1418
  %v1432 = vpack.c.b16 %v1421, %v1420
  %v1433 = vpack.c.b16 %v1423, %v1422
  %v1434 = vpack.c.b16 %v1425, %v1424
  %v1435 = vpack.c.b16 %v1427, %v1426
  %v1437 = vsel %vm86, %v1428, 0
  %v1440 = vsel %vm86, %v1429, 0
  %v1443 = vsel %vm86, %v1430, 0
  %v1446 = vsel %vm86, %v1431, 0
  %v1449 = vsel %vm86, %v1432, 0
  %v1452 = vsel %vm86, %v1433, 0
  %v1455 = vsel %vm86, %v1434, 0
  %v1458 = vsel %vm86, %v1435, 0
  %1460 = vmatprep.subr.bf16.mxu0 0
  %1461 = vmatpush1.bf16.msra.mxu0 %v83
  %1462 = vmatprep.subr.bf16.mxu0 0
  %1463 = vmatpush1.bf16.msra.mxu0 %v116
  %1464 = vmatprep.subr.bf16.mxu0 0
  %1465 = vmatpush1.bf16.msra.mxu0 0
  %1466 = vmatprep.subr.bf16.mxu0 0
  %1467 = vmatpush1.bf16.msra.mxu0 0
  %1468 = vmatprep.subr.bf16.mxu0 0
  %1469 = vmatpush1.bf16.msra.mxu0 0
  %1470 = vmatprep.subr.bf16.mxu0 0
  %1471 = vmatpush1.bf16.msra.mxu0 0
  %1472 = vmatprep.subr.bf16.mxu0 0
  %1473 = vmatpush1.bf16.msra.mxu0 0
  %1474 = vmatprep.subr.bf16.mxu0 0
  %1475 = vmatpush1.bf16.msra.mxu0 0
  %1476 = vmatprep.subr.bf16.mxu0 0
  %1477 = vmatpush1.bf16.msra.mxu0 0
  %1478 = vmatprep.subr.bf16.mxu0 0
  %1479 = vmatpush1.bf16.msra.mxu0 0
  %1480 = vmatprep.subr.bf16.mxu0 0
  %1481 = vmatpush1.bf16.msra.mxu0 0
  %1482 = vmatprep.subr.bf16.mxu0 0
  %1483 = vmatpush1.bf16.msra.mxu0 0
  %1484 = vmatprep.subr.bf16.mxu0 0
  %1485 = vmatpush1.bf16.msra.mxu0 0
  %1486 = vmatprep.subr.bf16.mxu0 0
  %1487 = vmatpush1.bf16.msra.mxu0 0
  %1488 = vmatprep.subr.bf16.mxu0 0
  %1489 = vmatpush1.bf16.msra.mxu0 0
  %1490 = vmatprep.subr.bf16.mxu0 0
  %1491 = vmatpush1.bf16.msra.mxu0 0
  %1492 = vmatprep.mubr.bf16.mxu0 0
  %1493 = vmatmul.mubr.bf16.gmra.mrb[0].mxu0 %v1437
  %v1494 = vpop.f32.mrb[0].mxu0
  %v1495 = vadd.f32 0.0, %v1494
  %v1496 = vpop.f32.mrb[0].mxu0
  %v1497 = vpop.f32.mrb[0].mxu0
  %v1498 = vadd.f32 0.0, %v1497
  %v1499 = vpop.f32.mrb[0].mxu0
  %1500 = vmatprep.mubr.bf16.mxu0 0
  %1501 = vmatmul.mubr.bf16.gmra.mrb[0].mxu0 %v1440
  %v1502 = vpop.f32.mrb[0].mxu0
  %v1503 = vadd.f32 0.0, %v1502
  %v1504 = vpop.f32.mrb[0].mxu0
  %v1505 = vpop.f32.mrb[0].mxu0
  %v1506 = vadd.f32 0.0, %v1505
  %v1507 = vpop.f32.mrb[0].mxu0
  %1508 = vmatprep.mubr.bf16.mxu0 0
  %1509 = vmatmul.mubr.bf16.gmra.mrb[0].mxu0 %v1443
  %v1510 = vpop.f32.mrb[0].mxu0
  %v1511 = vadd.f32 0.0, %v1510
  %v1512 = vpop.f32.mrb[0].mxu0
  %v1513 = vpop.f32.mrb[0].mxu0
  %v1514 = vadd.f32 0.0, %v1513
  %v1515 = vpop.f32.mrb[0].mxu0
  %1516 = vmatprep.mubr.bf16.mxu0 0
  %1517 = vmatmul.mubr.bf16.gmra.mrb[0].mxu0 %v1446
  %v1518 = vpop.f32.mrb[0].mxu0
  %v1519 = vadd.f32 0.0, %v1518
  %v1520 = vpop.f32.mrb[0].mxu0
  %v1521 = vpop.f32.mrb[0].mxu0
  %v1522 = vadd.f32 0.0, %v1521
  %v1523 = vpop.f32.mrb[0].mxu0
  %1524 = vmatprep.mubr.bf16.mxu0 0
  %1525 = vmatmul.mubr.bf16.gmra.mrb[0].mxu0 %v1449
  %v1526 = vpop.f32.mrb[0].mxu0
  %v1527 = vadd.f32 0.0, %v1526
  %v1528 = vpop.f32.mrb[0].mxu0
  %v1529 = vpop.f32.mrb[0].mxu0
  %v1530 = vadd.f32 0.0, %v1529
  %v1531 = vpop.f32.mrb[0].mxu0
  %1532 = vmatprep.mubr.bf16.mxu0 0
  %1533 = vmatmul.mubr.bf16.gmra.mrb[0].mxu0 %v1452
  %v1534 = vpop.f32.mrb[0].mxu0
  %v1535 = vadd.f32 0.0, %v1534
  %v1536 = vpop.f32.mrb[0].mxu0
  %v1537 = vpop.f32.mrb[0].mxu0
  %v1538 = vadd.f32 0.0, %v1537
  %v1539 = vpop.f32.mrb[0].mxu0
  %1540 = vmatprep.mubr.bf16.mxu0 0
  %1541 = vmatmul.mubr.bf16.gmra.mrb[0].mxu0 %v1455
  %v1542 = vpop.f32.mrb[0].mxu0
  %v1543 = vadd.f32 0.0, %v1542
  %v1544 = vpop.f32.mrb[0].mxu0
  %v1545 = vpop.f32.mrb[0].mxu0
  %v1546 = vadd.f32 0.0, %v1545
  %v1547 = vpop.f32.mrb[0].mxu0
  %1548 = vmatprep.mubr.bf16.mxu0 0
  %1549 = vmatmul.mubr.bf16.gmra.mrb[0].mxu0 %v1458
  %v1550 = vpop.f32.mrb[0].mxu0
  %v1551 = vadd.f32 0.0, %v1550
  %v1552 = vpop.f32.mrb[0].mxu0
  %v1553 = vpop.f32.mrb[0].mxu0
  %v1554 = vadd.f32 0.0, %v1553
  %v1555 = vpop.f32.mrb[0].mxu0
  %1556 = vdwg.mxu0
  %v1557 = vmax.f32 %v1363, %v1495
  %v1558 = vmax.f32 %v1364, %v1498
  %v1559 = vmax.f32 %v1365, %v1503
  %v1560 = vmax.f32 %v1366, %v1506
  %v1561 = vmax.f32 %v1367, %v1511
  %v1562 = vmax.f32 %v1368, %v1514
  %v1563 = vmax.f32 %v1369, %v1519
  %v1564 = vmax.f32 %v1370, %v1522
  %v1565 = vmax.f32 %v1371, %v1527
  %v1566 = vmax.f32 %v1372, %v1530
  %v1567 = vmax.f32 %v1373, %v1535
  %v1568 = vmax.f32 %v1374, %v1538
  %v1569 = vmax.f32 %v1375, %v1543
  %v1570 = vmax.f32 %v1376, %v1546
  %v1571 = vmax.f32 %v1377, %v1551
  %v1572 = vmax.f32 %v1378, %v1554
  %s1573 = scalar_lea.vmem %s0, 512
  %v1574 = vld [vmem:[%s1573] sm:$0xf]
  %v1575 = vld [vmem:[%s1573 + $0x4] sm:$0xf]
  %v1576 = vld [vmem:[%s1573 + $0x8] sm:$0xf]
  %v1577 = vld [vmem:[%s1573 + $0xc] sm:$0xf]
  %v1578 = vld [vmem:[%s1573 + $0x10] sm:$0xf]
  %v1579 = vld [vmem:[%s1573 + $0x14] sm:$0xf]
  %v1580 = vld [vmem:[%s1573 + $0x18] sm:$0xf]
  %v1581 = vld [vmem:[%s1573 + $0x1c] sm:$0xf]
  %v1582 = vld [vmem:[%s1573 + $0x20] sm:$0xf]
  %v1583 = vld [vmem:[%s1573 + $0x24] sm:$0xf]
  %v1584 = vld [vmem:[%s1573 + $0x28] sm:$0xf]
  %v1585 = vld [vmem:[%s1573 + $0x2c] sm:$0xf]
  %v1586 = vld [vmem:[%s1573 + $0x30] sm:$0xf]
  %v1587 = vld [vmem:[%s1573 + $0x34] sm:$0xf]
  %v1588 = vld [vmem:[%s1573 + $0x38] sm:$0xf]
  %v1589 = vld [vmem:[%s1573 + $0x3c] sm:$0xf]
  %v1606 = vunpack.c.l.b16 %v1574
  %v1607 = vunpack.c.l.b16 %v1575
  %v1608 = vunpack.c.l.b16 %v1576
  %v1609 = vunpack.c.l.b16 %v1577
  %v1610 = vunpack.c.l.b16 %v1578
  %v1611 = vunpack.c.l.b16 %v1579
  %v1612 = vunpack.c.l.b16 %v1580
  %v1613 = vunpack.c.l.b16 %v1581
  %v1614 = vunpack.c.l.b16 %v1582
  %v1615 = vunpack.c.l.b16 %v1583
  %v1616 = vunpack.c.l.b16 %v1584
  %v1617 = vunpack.c.l.b16 %v1585
  %v1618 = vunpack.c.l.b16 %v1586
  %v1619 = vunpack.c.l.b16 %v1587
  %v1620 = vunpack.c.l.b16 %v1588
  %v1621 = vunpack.c.l.b16 %v1589
  %v1622 = vpack.c.b16 %v1607, %v1606
  %v1623 = vpack.c.b16 %v1609, %v1608
  %v1624 = vpack.c.b16 %v1611, %v1610
  %v1625 = vpack.c.b16 %v1613, %v1612
  %v1626 = vpack.c.b16 %v1615, %v1614
  %v1627 = vpack.c.b16 %v1617, %v1616
  %v1628 = vpack.c.b16 %v1619, %v1618
  %v1629 = vpack.c.b16 %v1621, %v1620
  %v1631 = vsel %vm86, %v1622, 0
  %v1634 = vsel %vm86, %v1623, 0
  %v1637 = vsel %vm86, %v1624, 0
  %v1640 = vsel %vm86, %v1625, 0
  %v1643 = vsel %vm86, %v1626, 0
  %v1646 = vsel %vm86, %v1627, 0
  %v1649 = vsel %vm86, %v1628, 0
  %v1652 = vsel %vm86, %v1629, 0
  %1654 = vmatprep.subr.bf16.mxu0 0
  %1655 = vmatpush1.bf16.msra.mxu0 %v83
  %1656 = vmatprep.subr.bf16.mxu0 0
  %1657 = vmatpush1.bf16.msra.mxu0 %v116
  %1658 = vmatprep.subr.bf16.mxu0 0
  %1659 = vmatpush1.bf16.msra.mxu0 0
  %1660 = vmatprep.subr.bf16.mxu0 0
  %1661 = vmatpush1.bf16.msra.mxu0 0
  %1662 = vmatprep.subr.bf16.mxu0 0
  %1663 = vmatpush1.bf16.msra.mxu0 0
  %1664 = vmatprep.subr.bf16.mxu0 0
  %1665 = vmatpush1.bf16.msra.mxu0 0
  %1666 = vmatprep.subr.bf16.mxu0 0
  %1667 = vmatpush1.bf16.msra.mxu0 0
  %1668 = vmatprep.subr.bf16.mxu0 0
  %1669 = vmatpush1.bf16.msra.mxu0 0
  %1670 = vmatprep.subr.bf16.mxu0 0
  %1671 = vmatpush1.bf16.msra.mxu0 0
  %1672 = vmatprep.subr.bf16.mxu0 0
  %1673 = vmatpush1.bf16.msra.mxu0 0
  %1674 = vmatprep.subr.bf16.mxu0 0
  %1675 = vmatpush1.bf16.msra.mxu0 0
  %1676 = vmatprep.subr.bf16.mxu0 0
  %1677 = vmatpush1.bf16.msra.mxu0 0
  %1678 = vmatprep.subr.bf16.mxu0 0
  %1679 = vmatpush1.bf16.msra.mxu0 0
  %1680 = vmatprep.subr.bf16.mxu0 0
  %1681 = vmatpush1.bf16.msra.mxu0 0
  %1682 = vmatprep.subr.bf16.mxu0 0
  %1683 = vmatpush1.bf16.msra.mxu0 0
  %1684 = vmatprep.subr.bf16.mxu0 0
  %1685 = vmatpush1.bf16.msra.mxu0 0
  %1686 = vmatprep.mubr.bf16.mxu0 0
  %1687 = vmatmul.mubr.bf16.gmra.mrb[0].mxu0 %v1631
  %v1688 = vpop.f32.mrb[0].mxu0
  %v1689 = vadd.f32 0.0, %v1688
  %v1690 = vpop.f32.mrb[0].mxu0
  %v1691 = vpop.f32.mrb[0].mxu0
  %v1692 = vadd.f32 0.0, %v1691
  %v1693 = vpop.f32.mrb[0].mxu0
  %1694 = vmatprep.mubr.bf16.mxu0 0
  %1695 = vmatmul.mubr.bf16.gmra.mrb[0].mxu0 %v1634
  %v1696 = vpop.f32.mrb[0].mxu0
  %v1697 = vadd.f32 0.0, %v1696
  %v1698 = vpop.f32.mrb[0].mxu0
  %v1699 = vpop.f32.mrb[0].mxu0
  %v1700 = vadd.f32 0.0, %v1699
  %v1701 = vpop.f32.mrb[0].mxu0
  %1702 = vmatprep.mubr.bf16.mxu0 0
  %1703 = vmatmul.mubr.bf16.gmra.mrb[0].mxu0 %v1637
  %v1704 = vpop.f32.mrb[0].mxu0
  %v1705 = vadd.f32 0.0, %v1704
  %v1706 = vpop.f32.mrb[0].mxu0
  %v1707 = vpop.f32.mrb[0].mxu0
  %v1708 = vadd.f32 0.0, %v1707
  %v1709 = vpop.f32.mrb[0].mxu0
  %1710 = vmatprep.mubr.bf16.mxu0 0
  %1711 = vmatmul.mubr.bf16.gmra.mrb[0].mxu0 %v1640
  %v1712 = vpop.f32.mrb[0].mxu0
  %v1713 = vadd.f32 0.0, %v1712
  %v1714 = vpop.f32.mrb[0].mxu0
  %v1715 = vpop.f32.mrb[0].mxu0
  %v1716 = vadd.f32 0.0, %v1715
  %v1717 = vpop.f32.mrb[0].mxu0
  %1718 = vmatprep.mubr.bf16.mxu0 0
  %1719 = vmatmul.mubr.bf16.gmra.mrb[0].mxu0 %v1643
  %v1720 = vpop.f32.mrb[0].mxu0
  %v1721 = vadd.f32 0.0, %v1720
  %v1722 = vpop.f32.mrb[0].mxu0
  %v1723 = vpop.f32.mrb[0].mxu0
  %v1724 = vadd.f32 0.0, %v1723
  %v1725 = vpop.f32.mrb[0].mxu0
  %1726 = vmatprep.mubr.bf16.mxu0 0
  %1727 = vmatmul.mubr.bf16.gmra.mrb[0].mxu0 %v1646
  %v1728 = vpop.f32.mrb[0].mxu0
  %v1729 = vadd.f32 0.0, %v1728
  %v1730 = vpop.f32.mrb[0].mxu0
  %v1731 = vpop.f32.mrb[0].mxu0
  %v1732 = vadd.f32 0.0, %v1731
  %v1733 = vpop.f32.mrb[0].mxu0
  %1734 = vmatprep.mubr.bf16.mxu0 0
  %1735 = vmatmul.mubr.bf16.gmra.mrb[0].mxu0 %v1649
  %v1736 = vpop.f32.mrb[0].mxu0
  %v1737 = vadd.f32 0.0, %v1736
  %v1738 = vpop.f32.mrb[0].mxu0
  %v1739 = vpop.f32.mrb[0].mxu0
  %v1740 = vadd.f32 0.0, %v1739
  %v1741 = vpop.f32.mrb[0].mxu0
  %1742 = vmatprep.mubr.bf16.mxu0 0
  %1743 = vmatmul.mubr.bf16.gmra.mrb[0].mxu0 %v1652
  %v1744 = vpop.f32.mrb[0].mxu0
  %v1745 = vadd.f32 0.0, %v1744
  %v1746 = vpop.f32.mrb[0].mxu0
  %v1747 = vpop.f32.mrb[0].mxu0
  %v1748 = vadd.f32 0.0, %v1747
  %v1749 = vpop.f32.mrb[0].mxu0
  %1750 = vdwg.mxu0
  %v1751 = vmax.f32 %v1557, %v1689
  %v1752 = vmax.f32 %v1558, %v1692
  %v1753 = vmax.f32 %v1559, %v1697
  %v1754 = vmax.f32 %v1560, %v1700
  %v1755 = vmax.f32 %v1561, %v1705
  %v1756 = vmax.f32 %v1562, %v1708
  %v1757 = vmax.f32 %v1563, %v1713
  %v1758 = vmax.f32 %v1564, %v1716
  %v1759 = vmax.f32 %v1565, %v1721
  %v1760 = vmax.f32 %v1566, %v1724
  %v1761 = vmax.f32 %v1567, %v1729
  %v1762 = vmax.f32 %v1568, %v1732
  %v1763 = vmax.f32 %v1569, %v1737
  %v1764 = vmax.f32 %v1570, %v1740
  %v1765 = vmax.f32 %v1571, %v1745
  %v1766 = vmax.f32 %v1572, %v1748
  %v1767 = vld [vmem:[%s2] sm:$0x1]
  %v1769 = vlaneseq
  %v1770 = vshrl.u32 %v1769, 7
  %v1771 = vsub.s32 0, %v1770
  %v1772 = vrot.slane %v1767, %v1771
  %v1774 = vadd.f32 %v1751, %v1772
  %v1775 = vadd.f32 %v1752, %v1772
  %v1776 = vadd.f32 %v1753, %v1772
  %v1777 = vadd.f32 %v1754, %v1772
  %v1778 = vadd.f32 %v1755, %v1772
  %v1779 = vadd.f32 %v1756, %v1772
  %v1780 = vadd.f32 %v1757, %v1772
  %v1781 = vadd.f32 %v1758, %v1772
  %v1782 = vadd.f32 %v1759, %v1772
  %v1783 = vadd.f32 %v1760, %v1772
  %v1784 = vadd.f32 %v1761, %v1772
  %v1785 = vadd.f32 %v1762, %v1772
  %v1786 = vadd.f32 %v1763, %v1772
  %v1787 = vadd.f32 %v1764, %v1772
  %v1788 = vadd.f32 %v1765, %v1772
  %v1789 = vadd.f32 %v1766, %v1772
  %v1790 = vmax.f32 %v1774, 0.0
  %v1791 = vmax.f32 %v1775, 0.0
  %v1792 = vmax.f32 %v1776, 0.0
  %v1793 = vmax.f32 %v1777, 0.0
  %v1794 = vmax.f32 %v1778, 0.0
  %v1795 = vmax.f32 %v1779, 0.0
  %v1796 = vmax.f32 %v1780, 0.0
  %v1797 = vmax.f32 %v1781, 0.0
  %v1798 = vmax.f32 %v1782, 0.0
  %v1799 = vmax.f32 %v1783, 0.0
  %v1800 = vmax.f32 %v1784, 0.0
  %v1801 = vmax.f32 %v1785, 0.0
  %v1802 = vmax.f32 %v1786, 0.0
  %v1803 = vmax.f32 %v1787, 0.0
  %v1804 = vmax.f32 %v1788, 0.0
  %v1805 = vmax.f32 %v1789, 0.0
  %v1806 = vpack.c.bf16 %v1791, %v1790
  %v1807 = vpack.c.bf16 %v1793, %v1792
  %v1808 = vpack.c.bf16 %v1795, %v1794
  %v1809 = vpack.c.bf16 %v1797, %v1796
  %v1810 = vpack.c.bf16 %v1799, %v1798
  %v1811 = vpack.c.bf16 %v1801, %v1800
  %v1812 = vpack.c.bf16 %v1803, %v1802
  %v1813 = vpack.c.bf16 %v1805, %v1804
  %v1822 = vunpack.c.l.b16 %v1806
  %v1823 = vunpack.c.h.b16 %v1806
  %v1824 = vunpack.c.l.b16 %v1807
  %v1825 = vunpack.c.h.b16 %v1807
  %v1826 = vunpack.c.l.b16 %v1808
  %v1827 = vunpack.c.h.b16 %v1808
  %v1828 = vunpack.c.l.b16 %v1809
  %v1829 = vunpack.c.h.b16 %v1809
  %v1830 = vunpack.c.l.b16 %v1810
  %v1831 = vunpack.c.h.b16 %v1810
  %v1832 = vunpack.c.l.b16 %v1811
  %v1833 = vunpack.c.h.b16 %v1811
  %v1834 = vunpack.c.l.b16 %v1812
  %v1835 = vunpack.c.h.b16 %v1812
  %v1836 = vunpack.c.l.b16 %v1813
  %v1837 = vunpack.c.h.b16 %v1813
  %v1838 = vpack.c.b16 %v1822, %v1822
  %v1839 = vpack.c.b16 %v1823, %v1823
  %v1840 = vpack.c.b16 %v1824, %v1824
  %v1841 = vpack.c.b16 %v1825, %v1825
  %v1842 = vpack.c.b16 %v1826, %v1826
  %v1843 = vpack.c.b16 %v1827, %v1827
  %v1844 = vpack.c.b16 %v1828, %v1828
  %v1845 = vpack.c.b16 %v1829, %v1829
  %v1846 = vpack.c.b16 %v1830, %v1830
  %v1847 = vpack.c.b16 %v1831, %v1831
  %v1848 = vpack.c.b16 %v1832, %v1832
  %v1849 = vpack.c.b16 %v1833, %v1833
  %v1850 = vpack.c.b16 %v1834, %v1834
  %v1851 = vpack.c.b16 %v1835, %v1835
  %v1852 = vpack.c.b16 %v1836, %v1836
  %v1853 = vpack.c.b16 %v1837, %v1837
  %1870 = vst [vmem:[%s3] sm:$0xf] %v1838
  %1871 = vst [vmem:[%s3 + $0x4] sm:$0xf] %v1839
  %1872 = vst [vmem:[%s3 + $0x8] sm:$0xf] %v1840
  %1873 = vst [vmem:[%s3 + $0xc] sm:$0xf] %v1841
  %1874 = vst [vmem:[%s3 + $0x10] sm:$0xf] %v1842
  %1875 = vst [vmem:[%s3 + $0x14] sm:$0xf] %v1843
  %1876 = vst [vmem:[%s3 + $0x18] sm:$0xf] %v1844
  %1877 = vst [vmem:[%s3 + $0x1c] sm:$0xf] %v1845
  %1878 = vst [vmem:[%s3 + $0x20] sm:$0xf] %v1846
  %1879 = vst [vmem:[%s3 + $0x24] sm:$0xf] %v1847
  %1880 = vst [vmem:[%s3 + $0x28] sm:$0xf] %v1848
  %1881 = vst [vmem:[%s3 + $0x2c] sm:$0xf] %v1849
  %1882 = vst [vmem:[%s3 + $0x30] sm:$0xf] %v1850
  %1883 = vst [vmem:[%s3 + $0x34] sm:$0xf] %v1851
  %1884 = vst [vmem:[%s3 + $0x38] sm:$0xf] %v1852
  %1885 = vst [vmem:[%s3 + $0x3c] sm:$0xf] %v1853
  // Predicated region
  $region14: #{classifier_forward.2} parent=0 // pred_check
    _
  $region15: #{classifier_forward.2} parent=0 // pred_check_branch
    %1887 = sbr.rel (0) target = $region17
  $region16: #{classifier_forward.2} parent=0 // pred_region
    _
  $region17: #{classifier_forward.2} parent=0 // pred_fallthru
    _
  // Predicated region
  $region18: #{classifier_forward.2} parent=0 // pred_check
    _
  $region19: #{classifier_forward.2} parent=0 // pred_check_branch
    %1889 = sbr.rel (0) target = $region21
  $region20: #{classifier_forward.2} parent=0 // pred_region
    _
  $region21: #{classifier_forward.2} parent=0 // pred_fallthru
    _

// kernel: classifier_forward.3
$region0: #{classifier_forward.3}
  #allocation0 [shape = 'u32[]', space=smem, size = 0x4, offset = 0x4, fixed_abs, tag = 'smem constant byte address 0x4 - core index']
  #allocation1 [shape = 'u32[144,128]{1,0:T(1,128)}', space=vmem, size = 0x12000, scoped, tag = 'internal scratch']
  %s0 = inlined_call_operand.vmem [shape: bf16[9,8,800], index: 0, kind: input, shape index: {}]
  %s1 = inlined_call_operand.vmem [shape: bf16[800,64], index: 1, kind: input, shape index: {}]
  %s2 = inlined_call_operand.vmem [shape: f32[1,64], index: 2, kind: input, shape index: {}]
  %s3 = inlined_call_operand.vmem [shape: bf16[64,32], index: 3, kind: input, shape index: {}]
  %s4 = inlined_call_operand.vmem [shape: f32[1,32], index: 4, kind: input, shape index: {}]
  %s5 = inlined_call_operand.vmem [shape: bf16[32,128], index: 5, kind: input, shape index: {}]
  %s6 = inlined_call_operand.vmem [shape: f32[1,128], index: 6, kind: input, shape index: {}]
  %s7 = inlined_call_operand.vmem [shape: f32[8,128], index: 7, kind: output, shape index: {}]
  %s8 = sld [smem:[#allocation0]]
  $region38: #{classifier_forward.3} parent=0
    _
  %s10 = ssub.s32 1, %s8
  %s11 = scalar_select 0, %s10, %s8
  // Predicated region
  $region2: #{classifier_forward.3} parent=0 // pred_check
    _
  $region3: #{classifier_forward.3} parent=0 // pred_check_branch
    %13 = sbr.rel (0) target = $region5
  $region4: #{classifier_forward.3} parent=0 // pred_region
    _
  $region5: #{classifier_forward.3} parent=0 // pred_fallthru
    _
  // Predicated region
  $region6: #{classifier_forward.3} parent=0 // pred_check
    _
  $region7: #{classifier_forward.3} parent=0 // pred_check_branch
    %15 = sbr.rel (0) target = $region9
  $region8: #{classifier_forward.3} parent=0 // pred_region
    _
  $region9: #{classifier_forward.3} parent=0 // pred_fallthru
    _
  // Predicated region
  $region10: #{classifier_forward.3} parent=0 // pred_check
    _
  $region11: #{classifier_forward.3} parent=0 // pred_check_branch
    %17 = sbr.rel (0) target = $region13
  $region12: #{classifier_forward.3} parent=0 // pred_region
    _
  $region13: #{classifier_forward.3} parent=0 // pred_fallthru
    _
  // Predicated region
  $region14: #{classifier_forward.3} parent=0 // pred_check
    _
  $region15: #{classifier_forward.3} parent=0 // pred_check_branch
    %19 = sbr.rel (0) target = $region17
  $region16: #{classifier_forward.3} parent=0 // pred_region
    _
  $region17: #{classifier_forward.3} parent=0 // pred_fallthru
    _
  // Predicated region
  $region18: #{classifier_forward.3} parent=0 // pred_check
    _
  $region19: #{classifier_forward.3} parent=0 // pred_check_branch
    %21 = sbr.rel (0) target = $region21
  $region20: #{classifier_forward.3} parent=0 // pred_region
    _
  $region21: #{classifier_forward.3} parent=0 // pred_fallthru
    _
  // Predicated region
  $region22: #{classifier_forward.3} parent=0 // pred_check
    _
  $region23: #{classifier_forward.3} parent=0 // pred_check_branch
    %23 = sbr.rel (0) target = $region25
  $region24: #{classifier_forward.3} parent=0 // pred_region
    _
  $region25: #{classifier_forward.3} parent=0 // pred_fallthru
    _
  // Predicated region
  $region26: #{classifier_forward.3} parent=0 // pred_check
    _
  $region27: #{classifier_forward.3} parent=0 // pred_check_branch
    %25 = sbr.rel (0) target = $region29
  $region28: #{classifier_forward.3} parent=0 // pred_region
    _
  $region29: #{classifier_forward.3} parent=0 // pred_fallthru
    _
  %v27 = vld [vmem:[%s1] sm:$0xf]
  %v28 = vld [vmem:[%s1 + $0x4] sm:$0xf]
  %v29 = vld [vmem:[%s1 + $0x8] sm:$0xf]
  %v30 = vld [vmem:[%s1 + $0xc] sm:$0xf]
  %v31 = vld [vmem:[%s1 + $0x10] sm:$0xf]
  %v32 = vld [vmem:[%s1 + $0x14] sm:$0xf]
  %v33 = vld [vmem:[%s1 + $0x18] sm:$0xf]
  %v34 = vld [vmem:[%s1 + $0x1c] sm:$0xf]
  %v35 = vld [vmem:[%s1 + $0x20] sm:$0xf]
  %v36 = vld [vmem:[%s1 + $0x24] sm:$0xf]
  %v37 = vld [vmem:[%s1 + $0x28] sm:$0xf]
  %v38 = vld [vmem:[%s1 + $0x2c] sm:$0xf]
  %v39 = vld [vmem:[%s1 + $0x30] sm:$0xf]
  %v40 = vld [vmem:[%s1 + $0x34] sm:$0xf]
  %v41 = vld [vmem:[%s1 + $0x38] sm:$0xf]
  %v42 = vld [vmem:[%s1 + $0x3c] sm:$0xf]
  %v43 = vld [vmem:[%s1 + $0x40] sm:$0xf]
  %v44 = vld [vmem:[%s1 + $0x44] sm:$0xf]
  %v45 = vld [vmem:[%s1 + $0x48] sm:$0xf]
  %v46 = vld [vmem:[%s1 + $0x4c] sm:$0xf]
  %v47 = vld [vmem:[%s1 + $0x50] sm:$0xf]
  %v48 = vld [vmem:[%s1 + $0x54] sm:$0xf]
  %v49 = vld [vmem:[%s1 + $0x58] sm:$0xf]
  %v50 = vld [vmem:[%s1 + $0x5c] sm:$0xf]
  %v51 = vld [vmem:[%s1 + $0x60] sm:$0xf]
  %v52 = vld [vmem:[%s1 + $0x64] sm:$0xf]
  %v53 = vld [vmem:[%s1 + $0x68] sm:$0xf]
  %v54 = vld [vmem:[%s1 + $0x6c] sm:$0xf]
  %v55 = vld [vmem:[%s1 + $0x70] sm:$0xf]
  %v56 = vld [vmem:[%s1 + $0x74] sm:$0xf]
  %v57 = vld [vmem:[%s1 + $0x78] sm:$0xf]
  %v58 = vld [vmem:[%s1 + $0x7c] sm:$0xf]
  %v59 = vld [vmem:[%s1 + $0x80] sm:$0xf]
  %v60 = vld [vmem:[%s1 + $0x84] sm:$0xf]
  %v61 = vld [vmem:[%s1 + $0x88] sm:$0xf]
  %v62 = vld [vmem:[%s1 + $0x8c] sm:$0xf]
  %v63 = vld [vmem:[%s1 + $0x90] sm:$0xf]
  %v64 = vld [vmem:[%s1 + $0x94] sm:$0xf]
  %v65 = vld [vmem:[%s1 + $0x98] sm:$0xf]
  %v66 = vld [vmem:[%s1 + $0x9c] sm:$0xf]
  %v67 = vld [vmem:[%s1 + $0xa0] sm:$0xf]
  %v68 = vld [vmem:[%s1 + $0xa4] sm:$0xf]
  %v69 = vld [vmem:[%s1 + $0xa8] sm:$0xf]
  %v70 = vld [vmem:[%s1 + $0xac] sm:$0xf]
  %v71 = vld [vmem:[%s1 + $0xb0] sm:$0xf]
  %v72 = vld [vmem:[%s1 + $0xb4] sm:$0xf]
  %v73 = vld [vmem:[%s1 + $0xb8] sm:$0xf]
  %v74 = vld [vmem:[%s1 + $0xbc] sm:$0xf]
  %v75 = vld [vmem:[%s1 + $0xc0] sm:$0xf]
  %v76 = vld [vmem:[%s1 + $0xc4] sm:$0xf]
  %v77 = vld [vmem:[%s1 + $0xc8] sm:$0xf]
  %v78 = vld [vmem:[%s1 + $0xcc] sm:$0xf]
  %v79 = vld [vmem:[%s1 + $0xd0] sm:$0xf]
  %v80 = vld [vmem:[%s1 + $0xd4] sm:$0xf]
  %v81 = vld [vmem:[%s1 + $0xd8] sm:$0xf]
  %v82 = vld [vmem:[%s1 + $0xdc] sm:$0xf]
  %v83 = vld [vmem:[%s1 + $0xe0] sm:$0xf]
  %v84 = vld [vmem:[%s1 + $0xe4] sm:$0xf]
  %v85 = vld [vmem:[%s1 + $0xe8] sm:$0xf]
  %v86 = vld [vmem:[%s1 + $0xec] sm:$0xf]
  %v87 = vld [vmem:[%s1 + $0xf0] sm:$0xf]
  %v88 = vld [vmem:[%s1 + $0xf4] sm:$0xf]
  %v89 = vld [vmem:[%s1 + $0xf8] sm:$0xf]
  %v90 = vld [vmem:[%s1 + $0xfc] sm:$0xf]
  %v91 = vld [vmem:[%s1 + $0x100] sm:$0xf]
  %v92 = vld [vmem:[%s1 + $0x104] sm:$0xf]
  %v93 = vld [vmem:[%s1 + $0x108] sm:$0xf]
  %v94 = vld [vmem:[%s1 + $0x10c] sm:$0xf]
  %v95 = vld [vmem:[%s1 + $0x110] sm:$0xf]
  %v96 = vld [vmem:[%s1 + $0x114] sm:$0xf]
  %v97 = vld [vmem:[%s1 + $0x118] sm:$0xf]
  %v98 = vld [vmem:[%s1 + $0x11c] sm:$0xf]
  %v99 = vld [vmem:[%s1 + $0x120] sm:$0xf]
  %v100 = vld [vmem:[%s1 + $0x124] sm:$0xf]
  %v101 = vld [vmem:[%s1 + $0x128] sm:$0xf]
  %v102 = vld [vmem:[%s1 + $0x12c] sm:$0xf]
  %v103 = vld [vmem:[%s1 + $0x130] sm:$0xf]
  %v104 = vld [vmem:[%s1 + $0x134] sm:$0xf]
  %v105 = vld [vmem:[%s1 + $0x138] sm:$0xf]
  %v106 = vld [vmem:[%s1 + $0x13c] sm:$0xf]
  %v107 = vld [vmem:[%s1 + $0x140] sm:$0xf]
  %v108 = vld [vmem:[%s1 + $0x144] sm:$0xf]
  %v109 = vld [vmem:[%s1 + $0x148] sm:$0xf]
  %v110 = vld [vmem:[%s1 + $0x14c] sm:$0xf]
  %v111 = vld [vmem:[%s1 + $0x150] sm:$0xf]
  %v112 = vld [vmem:[%s1 + $0x154] sm:$0xf]
  %v113 = vld [vmem:[%s1 + $0x158] sm:$0xf]
  %v114 = vld [vmem:[%s1 + $0x15c] sm:$0xf]
  %v115 = vld [vmem:[%s1 + $0x160] sm:$0xf]
  %v116 = vld [vmem:[%s1 + $0x164] sm:$0xf]
  %v117 = vld [vmem:[%s1 + $0x168] sm:$0xf]
  %v118 = vld [vmem:[%s1 + $0x16c] sm:$0xf]
  %v119 = vld [vmem:[%s1 + $0x170] sm:$0xf]
  %v120 = vld [vmem:[%s1 + $0x174] sm:$0xf]
  %v121 = vld [vmem:[%s1 + $0x178] sm:$0xf]
  %v122 = vld [vmem:[%s1 + $0x17c] sm:$0xf]
  %v123 = vld [vmem:[%s1 + $0x180] sm:$0xf]
  %v124 = vld [vmem:[%s1 + $0x184] sm:$0xf]
  %v125 = vld [vmem:[%s1 + $0x188] sm:$0xf]
  %v126 = vld [vmem:[%s1 + $0x18c] sm:$0xf]
  %v127 = vld [vmem:[%s0] sm:$0xff]
  %v128 = vld [vmem:[%s0 + $0x8] sm:$0xff]
  %v129 = vld [vmem:[%s0 + $0x10] sm:$0xff]
  %v130 = vld [vmem:[%s0 + $0x18] sm:$0xf]
  %v135 = vunpack.c.l.b16 %v127
  %v136 = vunpack.c.h.b16 %v127
  %v137 = vunpack.c.l.b16 %v128
  %v138 = vunpack.c.h.b16 %v128
  %v139 = vunpack.c.l.b16 %v129
  %v140 = vunpack.c.h.b16 %v129
  %v141 = vunpack.c.l.b16 %v130
  %v142 = vpack.c.b16 %v135, %v135
  %v143 = vpack.c.b16 %v136, %v136
  %v144 = vpack.c.b16 %v137, %v137
  %v145 = vpack.c.b16 %v138, %v138
  %v146 = vpack.c.b16 %v139, %v139
  %v147 = vpack.c.b16 %v140, %v140
  %v148 = vpack.c.b16 %v141, %v141
  %v255 = vunpack.c.l.b16 %v27
  %v256 = vunpack.c.l.b16 %v28
  %v257 = vunpack.c.l.b16 %v29
  %v258 = vunpack.c.l.b16 %v30
  %v259 = vunpack.c.l.b16 %v31
  %v260 = vunpack.c.l.b16 %v32
  %v261 = vunpack.c.l.b16 %v33
  %v262 = vunpack.c.l.b16 %v34
  %v263 = vunpack.c.l.b16 %v35
  %v264 = vunpack.c.l.b16 %v36
  %v265 = vunpack.c.l.b16 %v37
  %v266 = vunpack.c.l.b16 %v38
  %v267 = vunpack.c.l.b16 %v39
  %v268 = vunpack.c.l.b16 %v40
  %v269 = vunpack.c.l.b16 %v41
  %v270 = vunpack.c.l.b16 %v42
  %v271 = vunpack.c.l.b16 %v43
  %v272 = vunpack.c.l.b16 %v44
  %v273 = vunpack.c.l.b16 %v45
  %v274 = vunpack.c.l.b16 %v46
  %v275 = vunpack.c.l.b16 %v47
  %v276 = vunpack.c.l.b16 %v48
  %v277 = vunpack.c.l.b16 %v49
  %v278 = vunpack.c.l.b16 %v50
  %v279 = vunpack.c.l.b16 %v51
  %v280 = vunpack.c.l.b16 %v52
  %v281 = vunpack.c.l.b16 %v53
  %v282 = vunpack.c.l.b16 %v54
  %v283 = vunpack.c.l.b16 %v55
  %v284 = vunpack.c.l.b16 %v56
  %v285 = vunpack.c.l.b16 %v57
  %v286 = vunpack.c.l.b16 %v58
  %v287 = vunpack.c.l.b16 %v59
  %v288 = vunpack.c.l.b16 %v60
  %v289 = vunpack.c.l.b16 %v61
  %v290 = vunpack.c.l.b16 %v62
  %v291 = vunpack.c.l.b16 %v63
  %v292 = vunpack.c.l.b16 %v64
  %v293 = vunpack.c.l.b16 %v65
  %v294 = vunpack.c.l.b16 %v66
  %v295 = vunpack.c.l.b16 %v67
  %v296 = vunpack.c.l.b16 %v68
  %v297 = vunpack.c.l.b16 %v69
  %v298 = vunpack.c.l.b16 %v70
  %v299 = vunpack.c.l.b16 %v71
  %v300 = vunpack.c.l.b16 %v72
  %v301 = vunpack.c.l.b16 %v73
  %v302 = vunpack.c.l.b16 %v74
  %v303 = vunpack.c.l.b16 %v75
  %v304 = vunpack.c.l.b16 %v76
  %v305 = vunpack.c.l.b16 %v77
  %v306 = vunpack.c.l.b16 %v78
  %v307 = vunpack.c.l.b16 %v79
  %v308 = vunpack.c.l.b16 %v80
  %v309 = vunpack.c.l.b16 %v81
  %v310 = vunpack.c.l.b16 %v82
  %v311 = vunpack.c.l.b16 %v83
  %v312 = vunpack.c.l.b16 %v84
  %v313 = vunpack.c.l.b16 %v85
  %v314 = vunpack.c.l.b16 %v86
  %v315 = vunpack.c.l.b16 %v87
  %v316 = vunpack.c.l.b16 %v88
  %v317 = vunpack.c.l.b16 %v89
  %v318 = vunpack.c.l.b16 %v90
  %v319 = vunpack.c.l.b16 %v91
  %v320 = vunpack.c.l.b16 %v92
  %v321 = vunpack.c.l.b16 %v93
  %v322 = vunpack.c.l.b16 %v94
  %v323 = vunpack.c.l.b16 %v95
  %v324 = vunpack.c.l.b16 %v96
  %v325 = vunpack.c.l.b16 %v97
  %v326 = vunpack.c.l.b16 %v98
  %v327 = vunpack.c.l.b16 %v99
  %v328 = vunpack.c.l.b16 %v100
  %v329 = vunpack.c.l.b16 %v101
  %v330 = vunpack.c.l.b16 %v102
  %v331 = vunpack.c.l.b16 %v103
  %v332 = vunpack.c.l.b16 %v104
  %v333 = vunpack.c.l.b16 %v105
  %v334 = vunpack.c.l.b16 %v106
  %v335 = vunpack.c.l.b16 %v107
  %v336 = vunpack.c.l.b16 %v108
  %v337 = vunpack.c.l.b16 %v109
  %v338 = vunpack.c.l.b16 %v110
  %v339 = vunpack.c.l.b16 %v111
  %v340 = vunpack.c.l.b16 %v112
  %v341 = vunpack.c.l.b16 %v113
  %v342 = vunpack.c.l.b16 %v114
  %v343 = vunpack.c.l.b16 %v115
  %v344 = vunpack.c.l.b16 %v116
  %v345 = vunpack.c.l.b16 %v117
  %v346 = vunpack.c.l.b16 %v118
  %v347 = vunpack.c.l.b16 %v119
  %v348 = vunpack.c.l.b16 %v120
  %v349 = vunpack.c.l.b16 %v121
  %v350 = vunpack.c.l.b16 %v122
  %v351 = vunpack.c.l.b16 %v123
  %v352 = vunpack.c.l.b16 %v124
  %v353 = vunpack.c.l.b16 %v125
  %v354 = vunpack.c.l.b16 %v126
  %v355 = vpack.c.b16 %v256, %v255
  %v356 = vpack.c.b16 %v258, %v257
  %v357 = vpack.c.b16 %v260, %v259
  %v358 = vpack.c.b16 %v262, %v261
  %v359 = vpack.c.b16 %v264, %v263
  %v360 = vpack.c.b16 %v266, %v265
  %v361 = vpack.c.b16 %v268, %v267
  %v362 = vpack.c.b16 %v270, %v269
  %v363 = vpack.c.b16 %v272, %v271
  %v364 = vpack.c.b16 %v274, %v273
  %v365 = vpack.c.b16 %v276, %v275
  %v366 = vpack.c.b16 %v278, %v277
  %v367 = vpack.c.b16 %v280, %v279
  %v368 = vpack.c.b16 %v282, %v281
  %v369 = vpack.c.b16 %v284, %v283
  %v370 = vpack.c.b16 %v286, %v285
  %v371 = vpack.c.b16 %v288, %v287
  %v372 = vpack.c.b16 %v290, %v289
  %v373 = vpack.c.b16 %v292, %v291
  %v374 = vpack.c.b16 %v294, %v293
  %v375 = vpack.c.b16 %v296, %v295
  %v376 = vpack.c.b16 %v298, %v297
  %v377 = vpack.c.b16 %v300, %v299
  %v378 = vpack.c.b16 %v302, %v301
  %v379 = vpack.c.b16 %v304, %v303
  %v380 = vpack.c.b16 %v306, %v305
  %v381 = vpack.c.b16 %v308, %v307
  %v382 = vpack.c.b16 %v310, %v309
  %v383 = vpack.c.b16 %v312, %v311
  %v384 = vpack.c.b16 %v314, %v313
  %v385 = vpack.c.b16 %v316, %v315
  %v386 = vpack.c.b16 %v318, %v317
  %v387 = vpack.c.b16 %v320, %v319
  %v388 = vpack.c.b16 %v322, %v321
  %v389 = vpack.c.b16 %v324, %v323
  %v390 = vpack.c.b16 %v326, %v325
  %v391 = vpack.c.b16 %v328, %v327
  %v392 = vpack.c.b16 %v330, %v329
  %v393 = vpack.c.b16 %v332, %v331
  %v394 = vpack.c.b16 %v334, %v333
  %v395 = vpack.c.b16 %v336, %v335
  %v396 = vpack.c.b16 %v338, %v337
  %v397 = vpack.c.b16 %v340, %v339
  %v398 = vpack.c.b16 %v342, %v341
  %v399 = vpack.c.b16 %v344, %v343
  %v400 = vpack.c.b16 %v346, %v345
  %v401 = vpack.c.b16 %v348, %v347
  %v402 = vpack.c.b16 %v350, %v349
  %v403 = vpack.c.b16 %v352, %v351
  %v404 = vpack.c.b16 %v354, %v353
  %vm455 = vcmask 261120
  %v457 = vsel %vm455, %v148, 0
  %459 = vmatprep.subr.bf16.mxu0 0
  %460 = vmatpush1.bf16.msra.mxu0 %v355
  %461 = vmatprep.subr.bf16.mxu0 0
  %462 = vmatpush1.bf16.msra.mxu0 %v356
  %463 = vmatprep.subr.bf16.mxu0 0
  %464 = vmatpush1.bf16.msra.mxu0 %v357
  %465 = vmatprep.subr.bf16.mxu0 0
  %466 = vmatpush1.bf16.msra.mxu0 %v358
  %467 = vmatprep.subr.bf16.mxu0 0
  %468 = vmatpush1.bf16.msra.mxu0 %v359
  %469 = vmatprep.subr.bf16.mxu0 0
  %470 = vmatpush1.bf16.msra.mxu0 %v360
  %471 = vmatprep.subr.bf16.mxu0 0
  %472 = vmatpush1.bf16.msra.mxu0 %v361
  %473 = vmatprep.subr.bf16.mxu0 0
  %474 = vmatpush1.bf16.msra.mxu0 %v362
  %475 = vmatprep.subr.bf16.mxu0 0
  %476 = vmatpush1.bf16.msra.mxu0 %v363
  %477 = vmatprep.subr.bf16.mxu0 0
  %478 = vmatpush1.bf16.msra.mxu0 %v364
  %479 = vmatprep.subr.bf16.mxu0 0
  %480 = vmatpush1.bf16.msra.mxu0 %v365
  %481 = vmatprep.subr.bf16.mxu0 0
  %482 = vmatpush1.bf16.msra.mxu0 %v366
  %483 = vmatprep.subr.bf16.mxu0 0
  %484 = vmatpush1.bf16.msra.mxu0 %v367
  %485 = vmatprep.subr.bf16.mxu0 0
  %486 = vmatpush1.bf16.msra.mxu0 %v368
  %487 = vmatprep.subr.bf16.mxu0 0
  %488 = vmatpush1.bf16.msra.mxu0 %v369
  %489 = vmatprep.subr.bf16.mxu0 0
  %490 = vmatpush1.bf16.msra.mxu0 %v370
  %491 = vmatprep.mubr.bf16.mxu0 %v143
  %492 = vmatmul.mubr.bf16.gmra.mrb[0].mxu0 %v142
  %v493 = vpop.f32.mrb[0].mxu0
  %v494 = vadd.f32 0.0, %v493
  %v495 = vpop.f32.mrb[0].mxu0
  %v496 = vpop.f32.mrb[0].mxu0
  %v497 = vpop.f32.mrb[0].mxu0
  %498 = vdwg.mxu0
  %499 = vmatprep.subr.bf16.mxu0 0
  %500 = vmatpush1.bf16.msra.mxu0 %v371
  %501 = vmatprep.subr.bf16.mxu0 0
  %502 = vmatpush1.bf16.msra.mxu0 %v372
  %503 = vmatprep.subr.bf16.mxu0 0
  %504 = vmatpush1.bf16.msra.mxu0 %v373
  %505 = vmatprep.subr.bf16.mxu0 0
  %506 = vmatpush1.bf16.msra.mxu0 %v374
  %507 = vmatprep.subr.bf16.mxu0 0
  %508 = vmatpush1.bf16.msra.mxu0 %v375
  %509 = vmatprep.subr.bf16.mxu0 0
  %510 = vmatpush1.bf16.msra.mxu0 %v376
  %511 = vmatprep.subr.bf16.mxu0 0
  %512 = vmatpush1.bf16.msra.mxu0 %v377
  %513 = vmatprep.subr.bf16.mxu0 0
  %514 = vmatpush1.bf16.msra.mxu0 %v378
  %515 = vmatprep.subr.bf16.mxu0 0
  %516 = vmatpush1.bf16.msra.mxu0 %v379
  %517 = vmatprep.subr.bf16.mxu0 0
  %518 = vmatpush1.bf16.msra.mxu0 %v380
  %519 = vmatprep.subr.bf16.mxu0 0
  %520 = vmatpush1.bf16.msra.mxu0 %v381
  %521 = vmatprep.subr.bf16.mxu0 0
  %522 = vmatpush1.bf16.msra.mxu0 %v382
  %523 = vmatprep.subr.bf16.mxu0 0
  %524 = vmatpush1.bf16.msra.mxu0 %v383
  %525 = vmatprep.subr.bf16.mxu0 0
  %526 = vmatpush1.bf16.msra.mxu0 %v384
  %527 = vmatprep.subr.bf16.mxu0 0
  %528 = vmatpush1.bf16.msra.mxu0 %v385
  %529 = vmatprep.subr.bf16.mxu0 0
  %530 = vmatpush1.bf16.msra.mxu0 %v386
  %531 = vmatprep.mubr.bf16.mxu0 %v145
  %532 = vmatmul.mubr.bf16.gmra.mrb[0].mxu0 %v144
  %v533 = vpop.f32.mrb[0].mxu0
  %v534 = vadd.f32 %v494, %v533
  %v535 = vpop.f32.mrb[0].mxu0
  %v536 = vpop.f32.mrb[0].mxu0
  %v537 = vpop.f32.mrb[0].mxu0
  %538 = vdwg.mxu0
  %539 = vmatprep.subr.bf16.mxu0 0
  %540 = vmatpush1.bf16.msra.mxu0 %v387
  %541 = vmatprep.subr.bf16.mxu0 0
  %542 = vmatpush1.bf16.msra.mxu0 %v388
  %543 = vmatprep.subr.bf16.mxu0 0
  %544 = vmatpush1.bf16.msra.mxu0 %v389
  %545 = vmatprep.subr.bf16.mxu0 0
  %546 = vmatpush1.bf16.msra.mxu0 %v390
  %547 = vmatprep.subr.bf16.mxu0 0
  %548 = vmatpush1.bf16.msra.mxu0 %v391
  %549 = vmatprep.subr.bf16.mxu0 0
  %550 = vmatpush1.bf16.msra.mxu0 %v392
  %551 = vmatprep.subr.bf16.mxu0 0
  %552 = vmatpush1.bf16.msra.mxu0 %v393
  %553 = vmatprep.subr.bf16.mxu0 0
  %554 = vmatpush1.bf16.msra.mxu0 %v394
  %555 = vmatprep.subr.bf16.mxu0 0
  %556 = vmatpush1.bf16.msra.mxu0 %v395
  %557 = vmatprep.subr.bf16.mxu0 0
  %558 = vmatpush1.bf16.msra.mxu0 %v396
  %559 = vmatprep.subr.bf16.mxu0 0
  %560 = vmatpush1.bf16.msra.mxu0 %v397
  %561 = vmatprep.subr.bf16.mxu0 0
  %562 = vmatpush1.bf16.msra.mxu0 %v398
  %563 = vmatprep.subr.bf16.mxu0 0
  %564 = vmatpush1.bf16.msra.mxu0 %v399
  %565 = vmatprep.subr.bf16.mxu0 0
  %566 = vmatpush1.bf16.msra.mxu0 %v400
  %567 = vmatprep.subr.bf16.mxu0 0
  %568 = vmatpush1.bf16.msra.mxu0 %v401
  %569 = vmatprep.subr.bf16.mxu0 0
  %570 = vmatpush1.bf16.msra.mxu0 %v402
  %571 = vmatprep.mubr.bf16.mxu0 %v147
  %572 = vmatmul.mubr.bf16.gmra.mrb[0].mxu0 %v146
  %v573 = vpop.f32.mrb[0].mxu0
  %v574 = vadd.f32 %v534, %v573
  %v575 = vpop.f32.mrb[0].mxu0
  %v576 = vpop.f32.mrb[0].mxu0
  %v577 = vpop.f32.mrb[0].mxu0
  %578 = vdwg.mxu0
  %579 = vmatprep.subr.bf16.mxu0 0
  %580 = vmatpush1.bf16.msra.mxu0 %v403
  %581 = vmatprep.subr.bf16.mxu0 0
  %582 = vmatpush1.bf16.msra.mxu0 %v404
  %583 = vmatprep.subr.bf16.mxu0 0
  %584 = vmatpush1.bf16.msra.mxu0 0
  %585 = vmatprep.subr.bf16.mxu0 0
  %586 = vmatpush1.bf16.msra.mxu0 0
  %587 = vmatprep.subr.bf16.mxu0 0
  %588 = vmatpush1.bf16.msra.mxu0 0
  %589 = vmatprep.subr.bf16.mxu0 0
  %590 = vmatpush1.bf16.msra.mxu0 0
  %591 = vmatprep.subr.bf16.mxu0 0
  %592 = vmatpush1.bf16.msra.mxu0 0
  %593 = vmatprep.subr.bf16.mxu0 0
  %594 = vmatpush1.bf16.msra.mxu0 0
  %595 = vmatprep.subr.bf16.mxu0 0
  %596 = vmatpush1.bf16.msra.mxu0 0
  %597 = vmatprep.subr.bf16.mxu0 0
  %598 = vmatpush1.bf16.msra.mxu0 0
  %599 = vmatprep.subr.bf16.mxu0 0
  %600 = vmatpush1.bf16.msra.mxu0 0
  %601 = vmatprep.subr.bf16.mxu0 0
  %602 = vmatpush1.bf16.msra.mxu0 0
  %603 = vmatprep.subr.bf16.mxu0 0
  %604 = vmatpush1.bf16.msra.mxu0 0
  %605 = vmatprep.subr.bf16.mxu0 0
  %606 = vmatpush1.bf16.msra.mxu0 0
  %607 = vmatprep.subr.bf16.mxu0 0
  %608 = vmatpush1.bf16.msra.mxu0 0
  %609 = vmatprep.subr.bf16.mxu0 0
  %610 = vmatpush1.bf16.msra.mxu0 0
  %611 = vmatprep.mubr.bf16.mxu0 0
  %612 = vmatmul.mubr.bf16.gmra.mrb[0].mxu0 %v457
  %v613 = vpop.f32.mrb[0].mxu0
  %v614 = vadd.f32 %v574, %v613
  %v615 = vpop.f32.mrb[0].mxu0
  %v616 = vpop.f32.mrb[0].mxu0
  %v617 = vpop.f32.mrb[0].mxu0
  %618 = vdwg.mxu0
  %s619 = scalar_lea.vmem %s0, 28
  %v620 = vld [vmem:[%s619] sm:$0xff]
  %v621 = vld [vmem:[%s619 + $0x8] sm:$0xff]
  %v622 = vld [vmem:[%s619 + $0x10] sm:$0xff]
  %v623 = vld [vmem:[%s619 + $0x18] sm:$0xf]
  %v628 = vunpack.c.l.b16 %v620
  %v629 = vunpack.c.h.b16 %v620
  %v630 = vunpack.c.l.b16 %v621
  %v631 = vunpack.c.h.b16 %v621
  %v632 = vunpack.c.l.b16 %v622
  %v633 = vunpack.c.h.b16 %v622
  %v634 = vunpack.c.l.b16 %v623
  %v635 = vpack.c.b16 %v628, %v628
  %v636 = vpack.c.b16 %v629, %v629
  %v637 = vpack.c.b16 %v630, %v630
  %v638 = vpack.c.b16 %v631, %v631
  %v639 = vpack.c.b16 %v632, %v632
  %v640 = vpack.c.b16 %v633, %v633
  %v641 = vpack.c.b16 %v634, %v634
  %v649 = vsel %vm455, %v641, 0
  %651 = vmatprep.subr.bf16.mxu0 0
  %652 = vmatpush1.bf16.msra.mxu0 %v355
  %653 = vmatprep.subr.bf16.mxu0 0
  %654 = vmatpush1.bf16.msra.mxu0 %v356
  %655 = vmatprep.subr.bf16.mxu0 0
  %656 = vmatpush1.bf16.msra.mxu0 %v357
  %657 = vmatprep.subr.bf16.mxu0 0
  %658 = vmatpush1.bf16.msra.mxu0 %v358
  %659 = vmatprep.subr.bf16.mxu0 0
  %660 = vmatpush1.bf16.msra.mxu0 %v359
  %661 = vmatprep.subr.bf16.mxu0 0
  %662 = vmatpush1.bf16.msra.mxu0 %v360
  %663 = vmatprep.subr.bf16.mxu0 0
  %664 = vmatpush1.bf16.msra.mxu0 %v361
  %665 = vmatprep.subr.bf16.mxu0 0
  %666 = vmatpush1.bf16.msra.mxu0 %v362
  %667 = vmatprep.subr.bf16.mxu0 0
  %668 = vmatpush1.bf16.msra.mxu0 %v363
  %669 = vmatprep.subr.bf16.mxu0 0
  %670 = vmatpush1.bf16.msra.mxu0 %v364
  %671 = vmatprep.subr.bf16.mxu0 0
  %672 = vmatpush1.bf16.msra.mxu0 %v365
  %673 = vmatprep.subr.bf16.mxu0 0
  %674 = vmatpush1.bf16.msra.mxu0 %v366
  %675 = vmatprep.subr.bf16.mxu0 0
  %676 = vmatpush1.bf16.msra.mxu0 %v367
  %677 = vmatprep.subr.bf16.mxu0 0
  %678 = vmatpush1.bf16.msra.mxu0 %v368
  %679 = vmatprep.subr.bf16.mxu0 0
  %680 = vmatpush1.bf16.msra.mxu0 %v369
  %681 = vmatprep.subr.bf16.mxu0 0
  %682 = vmatpush1.bf16.msra.mxu0 %v370
  %683 = vmatprep.mubr.bf16.mxu0 %v636
  %684 = vmatmul.mubr.bf16.gmra.mrb[0].mxu0 %v635
  %v685 = vpop.f32.mrb[0].mxu0
  %v686 = vadd.f32 0.0, %v685
  %v687 = vpop.f32.mrb[0].mxu0
  %v688 = vpop.f32.mrb[0].mxu0
  %v689 = vpop.f32.mrb[0].mxu0
  %690 = vdwg.mxu0
  %691 = vmatprep.subr.bf16.mxu0 0
  %692 = vmatpush1.bf16.msra.mxu0 %v371
  %693 = vmatprep.subr.bf16.mxu0 0
  %694 = vmatpush1.bf16.msra.mxu0 %v372
  %695 = vmatprep.subr.bf16.mxu0 0
  %696 = vmatpush1.bf16.msra.mxu0 %v373
  %697 = vmatprep.subr.bf16.mxu0 0
  %698 = vmatpush1.bf16.msra.mxu0 %v374
  %699 = vmatprep.subr.bf16.mxu0 0
  %700 = vmatpush1.bf16.msra.mxu0 %v375
  %701 = vmatprep.subr.bf16.mxu0 0
  %702 = vmatpush1.bf16.msra.mxu0 %v376
  %703 = vmatprep.subr.bf16.mxu0 0
  %704 = vmatpush1.bf16.msra.mxu0 %v377
  %705 = vmatprep.subr.bf16.mxu0 0
  %706 = vmatpush1.bf16.msra.mxu0 %v378
  %707 = vmatprep.subr.bf16.mxu0 0
  %708 = vmatpush1.bf16.msra.mxu0 %v379
  %709 = vmatprep.subr.bf16.mxu0 0
  %710 = vmatpush1.bf16.msra.mxu0 %v380
  %711 = vmatprep.subr.bf16.mxu0 0
  %712 = vmatpush1.bf16.msra.mxu0 %v381
  %713 = vmatprep.subr.bf16.mxu0 0
  %714 = vmatpush1.bf16.msra.mxu0 %v382
  %715 = vmatprep.subr.bf16.mxu0 0
  %716 = vmatpush1.bf16.msra.mxu0 %v383
  %717 = vmatprep.subr.bf16.mxu0 0
  %718 = vmatpush1.bf16.msra.mxu0 %v384
  %719 = vmatprep.subr.bf16.mxu0 0
  %720 = vmatpush1.bf16.msra.mxu0 %v385
  %721 = vmatprep.subr.bf16.mxu0 0
  %722 = vmatpush1.bf16.msra.mxu0 %v386
  %723 = vmatprep.mubr.bf16.mxu0 %v638
  %724 = vmatmul.mubr.bf16.gmra.mrb[0].mxu0 %v637
  %v725 = vpop.f32.mrb[0].mxu0
  %v726 = vadd.f32 %v686, %v725
  %v727 = vpop.f32.mrb[0].mxu0
  %v728 = vpop.f32.mrb[0].mxu0
  %v729 = vpop.f32.mrb[0].mxu0
  %730 = vdwg.mxu0
  %731 = vmatprep.subr.bf16.mxu0 0
  %732 = vmatpush1.bf16.msra.mxu0 %v387
  %733 = vmatprep.subr.bf16.mxu0 0
  %734 = vmatpush1.bf16.msra.mxu0 %v388
  %735 = vmatprep.subr.bf16.mxu0 0
  %736 = vmatpush1.bf16.msra.mxu0 %v389
  %737 = vmatprep.subr.bf16.mxu0 0
  %738 = vmatpush1.bf16.msra.mxu0 %v390
  %739 = vmatprep.subr.bf16.mxu0 0
  %740 = vmatpush1.bf16.msra.mxu0 %v391
  %741 = vmatprep.subr.bf16.mxu0 0
  %742 = vmatpush1.bf16.msra.mxu0 %v392
  %743 = vmatprep.subr.bf16.mxu0 0
  %744 = vmatpush1.bf16.msra.mxu0 %v393
  %745 = vmatprep.subr.bf16.mxu0 0
  %746 = vmatpush1.bf16.msra.mxu0 %v394
  %747 = vmatprep.subr.bf16.mxu0 0
  %748 = vmatpush1.bf16.msra.mxu0 %v395
  %749 = vmatprep.subr.bf16.mxu0 0
  %750 = vmatpush1.bf16.msra.mxu0 %v396
  %751 = vmatprep.subr.bf16.mxu0 0
  %752 = vmatpush1.bf16.msra.mxu0 %v397
  %753 = vmatprep.subr.bf16.mxu0 0
  %754 = vmatpush1.bf16.msra.mxu0 %v398
  %755 = vmatprep.subr.bf16.mxu0 0
  %756 = vmatpush1.bf16.msra.mxu0 %v399
  %757 = vmatprep.subr.bf16.mxu0 0
  %758 = vmatpush1.bf16.msra.mxu0 %v400
  %759 = vmatprep.subr.bf16.mxu0 0
  %760 = vmatpush1.bf16.msra.mxu0 %v401
  %761 = vmatprep.subr.bf16.mxu0 0
  %762 = vmatpush1.bf16.msra.mxu0 %v402
  %763 = vmatprep.mubr.bf16.mxu0 %v640
  %764 = vmatmul.mubr.bf16.gmra.mrb[0].mxu0 %v639
  %v765 = vpop.f32.mrb[0].mxu0
  %v766 = vadd.f32 %v726, %v765
  %v767 = vpop.f32.mrb[0].mxu0
  %v768 = vpop.f32.mrb[0].mxu0
  %v769 = vpop.f32.mrb[0].mxu0
  %770 = vdwg.mxu0
  %771 = vmatprep.subr.bf16.mxu0 0
  %772 = vmatpush1.bf16.msra.mxu0 %v403
  %773 = vmatprep.subr.bf16.mxu0 0
  %774 = vmatpush1.bf16.msra.mxu0 %v404
  %775 = vmatprep.subr.bf16.mxu0 0
  %776 = vmatpush1.bf16.msra.mxu0 0
  %777 = vmatprep.subr.bf16.mxu0 0
  %778 = vmatpush1.bf16.msra.mxu0 0
  %779 = vmatprep.subr.bf16.mxu0 0
  %780 = vmatpush1.bf16.msra.mxu0 0
  %781 = vmatprep.subr.bf16.mxu0 0
  %782 = vmatpush1.bf16.msra.mxu0 0
  %783 = vmatprep.subr.bf16.mxu0 0
  %784 = vmatpush1.bf16.msra.mxu0 0
  %785 = vmatprep.subr.bf16.mxu0 0
  %786 = vmatpush1.bf16.msra.mxu0 0
  %787 = vmatprep.subr.bf16.mxu0 0
  %788 = vmatpush1.bf16.msra.mxu0 0
  %789 = vmatprep.subr.bf16.mxu0 0
  %790 = vmatpush1.bf16.msra.mxu0 0
  %791 = vmatprep.subr.bf16.mxu0 0
  %792 = vmatpush1.bf16.msra.mxu0 0
  %793 = vmatprep.subr.bf16.mxu0 0
  %794 = vmatpush1.bf16.msra.mxu0 0
  %795 = vmatprep.subr.bf16.mxu0 0
  %796 = vmatpush1.bf16.msra.mxu0 0
  %797 = vmatprep.subr.bf16.mxu0 0
  %798 = vmatpush1.bf16.msra.mxu0 0
  %799 = vmatprep.subr.bf16.mxu0 0
  %800 = vmatpush1.bf16.msra.mxu0 0
  %801 = vmatprep.subr.bf16.mxu0 0
  %802 = vmatpush1.bf16.msra.mxu0 0
  %803 = vmatprep.mubr.bf16.mxu0 0
  %804 = vmatmul.mubr.bf16.gmra.mrb[0].mxu0 %v649
  %v805 = vpop.f32.mrb[0].mxu0
  %v806 = vadd.f32 %v766, %v805
  %v807 = vpop.f32.mrb[0].mxu0
  %v808 = vpop.f32.mrb[0].mxu0
  %v809 = vpop.f32.mrb[0].mxu0
  %810 = vdwg.mxu0
  %v811 = vmax.f32 %v614, %v806
  %s812 = scalar_lea.vmem %s0, 56
  %v813 = vld [vmem:[%s812] sm:$0xff]
  %v814 = vld [vmem:[%s812 + $0x8] sm:$0xff]
  %v815 = vld [vmem:[%s812 + $0x10] sm:$0xff]
  %v816 = vld [vmem:[%s812 + $0x18] sm:$0xf]
  %v821 = vunpack.c.l.b16 %v813
  %v822 = vunpack.c.h.b16 %v813
  %v823 = vunpack.c.l.b16 %v814
  %v824 = vunpack.c.h.b16 %v814
  %v825 = vunpack.c.l.b16 %v815
  %v826 = vunpack.c.h.b16 %v815
  %v827 = vunpack.c.l.b16 %v816
  %v828 = vpack.c.b16 %v821, %v821
  %v829 = vpack.c.b16 %v822, %v822
  %v830 = vpack.c.b16 %v823, %v823
  %v831 = vpack.c.b16 %v824, %v824
  %v832 = vpack.c.b16 %v825, %v825
  %v833 = vpack.c.b16 %v826, %v826
  %v834 = vpack.c.b16 %v827, %v827
  %v842 = vsel %vm455, %v834, 0
  %844 = vmatprep.subr.bf16.mxu0 0
  %845 = vmatpush1.bf16.msra.mxu0 %v355
  %846 = vmatprep.subr.bf16.mxu0 0
  %847 = vmatpush1.bf16.msra.mxu0 %v356
  %848 = vmatprep.subr.bf16.mxu0 0
  %849 = vmatpush1.bf16.msra.mxu0 %v357
  %850 = vmatprep.subr.bf16.mxu0 0
  %851 = vmatpush1.bf16.msra.mxu0 %v358
  %852 = vmatprep.subr.bf16.mxu0 0
  %853 = vmatpush1.bf16.msra.mxu0 %v359
  %854 = vmatprep.subr.bf16.mxu0 0
  %855 = vmatpush1.bf16.msra.mxu0 %v360
  %856 = vmatprep.subr.bf16.mxu0 0
  %857 = vmatpush1.bf16.msra.mxu0 %v361
  %858 = vmatprep.subr.bf16.mxu0 0
  %859 = vmatpush1.bf16.msra.mxu0 %v362
  %860 = vmatprep.subr.bf16.mxu0 0
  %861 = vmatpush1.bf16.msra.mxu0 %v363
  %862 = vmatprep.subr.bf16.mxu0 0
  %863 = vmatpush1.bf16.msra.mxu0 %v364
  %864 = vmatprep.subr.bf16.mxu0 0
  %865 = vmatpush1.bf16.msra.mxu0 %v365
  %866 = vmatprep.subr.bf16.mxu0 0
  %867 = vmatpush1.bf16.msra.mxu0 %v366
  %868 = vmatprep.subr.bf16.mxu0 0
  %869 = vmatpush1.bf16.msra.mxu0 %v367
  %870 = vmatprep.subr.bf16.mxu0 0
  %871 = vmatpush1.bf16.msra.mxu0 %v368
  %872 = vmatprep.subr.bf16.mxu0 0
  %873 = vmatpush1.bf16.msra.mxu0 %v369
  %874 = vmatprep.subr.bf16.mxu0 0
  %875 = vmatpush1.bf16.msra.mxu0 %v370
  %876 = vmatprep.mubr.bf16.mxu0 %v829
  %877 = vmatmul.mubr.bf16.gmra.mrb[0].mxu0 %v828
  %v878 = vpop.f32.mrb[0].mxu0
  %v879 = vadd.f32 0.0, %v878
  %v880 = vpop.f32.mrb[0].mxu0
  %v881 = vpop.f32.mrb[0].mxu0
  %v882 = vpop.f32.mrb[0].mxu0
  %883 = vdwg.mxu0
  %884 = vmatprep.subr.bf16.mxu0 0
  %885 = vmatpush1.bf16.msra.mxu0 %v371
  %886 = vmatprep.subr.bf16.mxu0 0
  %887 = vmatpush1.bf16.msra.mxu0 %v372
  %888 = vmatprep.subr.bf16.mxu0 0
  %889 = vmatpush1.bf16.msra.mxu0 %v373
  %890 = vmatprep.subr.bf16.mxu0 0
  %891 = vmatpush1.bf16.msra.mxu0 %v374
  %892 = vmatprep.subr.bf16.mxu0 0
  %893 = vmatpush1.bf16.msra.mxu0 %v375
  %894 = vmatprep.subr.bf16.mxu0 0
  %895 = vmatpush1.bf16.msra.mxu0 %v376
  %896 = vmatprep.subr.bf16.mxu0 0
  %897 = vmatpush1.bf16.msra.mxu0 %v377
  %898 = vmatprep.subr.bf16.mxu0 0
  %899 = vmatpush1.bf16.msra.mxu0 %v378
  %900 = vmatprep.subr.bf16.mxu0 0
  %901 = vmatpush1.bf16.msra.mxu0 %v379
  %902 = vmatprep.subr.bf16.mxu0 0
  %903 = vmatpush1.bf16.msra.mxu0 %v380
  %904 = vmatprep.subr.bf16.mxu0 0
  %905 = vmatpush1.bf16.msra.mxu0 %v381
  %906 = vmatprep.subr.bf16.mxu0 0
  %907 = vmatpush1.bf16.msra.mxu0 %v382
  %908 = vmatprep.subr.bf16.mxu0 0
  %909 = vmatpush1.bf16.msra.mxu0 %v383
  %910 = vmatprep.subr.bf16.mxu0 0
  %911 = vmatpush1.bf16.msra.mxu0 %v384
  %912 = vmatprep.subr.bf16.mxu0 0
  %913 = vmatpush1.bf16.msra.mxu0 %v385
  %914 = vmatprep.subr.bf16.mxu0 0
  %915 = vmatpush1.bf16.msra.mxu0 %v386
  %916 = vmatprep.mubr.bf16.mxu0 %v831
  %917 = vmatmul.mubr.bf16.gmra.mrb[0].mxu0 %v830
  %v918 = vpop.f32.mrb[0].mxu0
  %v919 = vadd.f32 %v879, %v918
  %v920 = vpop.f32.mrb[0].mxu0
  %v921 = vpop.f32.mrb[0].mxu0
  %v922 = vpop.f32.mrb[0].mxu0
  %923 = vdwg.mxu0
  %924 = vmatprep.subr.bf16.mxu0 0
  %925 = vmatpush1.bf16.msra.mxu0 %v387
  %926 = vmatprep.subr.bf16.mxu0 0
  %927 = vmatpush1.bf16.msra.mxu0 %v388
  %928 = vmatprep.subr.bf16.mxu0 0
  %929 = vmatpush1.bf16.msra.mxu0 %v389
  %930 = vmatprep.subr.bf16.mxu0 0
  %931 = vmatpush1.bf16.msra.mxu0 %v390
  %932 = vmatprep.subr.bf16.mxu0 0
  %933 = vmatpush1.bf16.msra.mxu0 %v391
  %934 = vmatprep.subr.bf16.mxu0 0
  %935 = vmatpush1.bf16.msra.mxu0 %v392
  %936 = vmatprep.subr.bf16.mxu0 0
  %937 = vmatpush1.bf16.msra.mxu0 %v393
  %938 = vmatprep.subr.bf16.mxu0 0
  %939 = vmatpush1.bf16.msra.mxu0 %v394
  %940 = vmatprep.subr.bf16.mxu0 0
  %941 = vmatpush1.bf16.msra.mxu0 %v395
  %942 = vmatprep.subr.bf16.mxu0 0
  %943 = vmatpush1.bf16.msra.mxu0 %v396
  %944 = vmatprep.subr.bf16.mxu0 0
  %945 = vmatpush1.bf16.msra.mxu0 %v397
  %946 = vmatprep.subr.bf16.mxu0 0
  %947 = vmatpush1.bf16.msra.mxu0 %v398
  %948 = vmatprep.subr.bf16.mxu0 0
  %949 = vmatpush1.bf16.msra.mxu0 %v399
  %950 = vmatprep.subr.bf16.mxu0 0
  %951 = vmatpush1.bf16.msra.mxu0 %v400
  %952 = vmatprep.subr.bf16.mxu0 0
  %953 = vmatpush1.bf16.msra.mxu0 %v401
  %954 = vmatprep.subr.bf16.mxu0 0
  %955 = vmatpush1.bf16.msra.mxu0 %v402
  %956 = vmatprep.mubr.bf16.mxu0 %v833
  %957 = vmatmul.mubr.bf16.gmra.mrb[0].mxu0 %v832
  %v958 = vpop.f32.mrb[0].mxu0
  %v959 = vadd.f32 %v919, %v958
  %v960 = vpop.f32.mrb[0].mxu0
  %v961 = vpop.f32.mrb[0].mxu0
  %v962 = vpop.f32.mrb[0].mxu0
  %963 = vdwg.mxu0
  %964 = vmatprep.subr.bf16.mxu0 0
  %965 = vmatpush1.bf16.msra.mxu0 %v403
  %966 = vmatprep.subr.bf16.mxu0 0
  %967 = vmatpush1.bf16.msra.mxu0 %v404
  %968 = vmatprep.subr.bf16.mxu0 0
  %969 = vmatpush1.bf16.msra.mxu0 0
  %970 = vmatprep.subr.bf16.mxu0 0
  %971 = vmatpush1.bf16.msra.mxu0 0
  %972 = vmatprep.subr.bf16.mxu0 0
  %973 = vmatpush1.bf16.msra.mxu0 0
  %974 = vmatprep.subr.bf16.mxu0 0
  %975 = vmatpush1.bf16.msra.mxu0 0
  %976 = vmatprep.subr.bf16.mxu0 0
  %977 = vmatpush1.bf16.msra.mxu0 0
  %978 = vmatprep.subr.bf16.mxu0 0
  %979 = vmatpush1.bf16.msra.mxu0 0
  %980 = vmatprep.subr.bf16.mxu0 0
  %981 = vmatpush1.bf16.msra.mxu0 0
  %982 = vmatprep.subr.bf16.mxu0 0
  %983 = vmatpush1.bf16.msra.mxu0 0
  %984 = vmatprep.subr.bf16.mxu0 0
  %985 = vmatpush1.bf16.msra.mxu0 0
  %986 = vmatprep.subr.bf16.mxu0 0
  %987 = vmatpush1.bf16.msra.mxu0 0
  %988 = vmatprep.subr.bf16.mxu0 0
  %989 = vmatpush1.bf16.msra.mxu0 0
  %990 = vmatprep.subr.bf16.mxu0 0
  %991 = vmatpush1.bf16.msra.mxu0 0
  %992 = vmatprep.subr.bf16.mxu0 0
  %993 = vmatpush1.bf16.msra.mxu0 0
  %994 = vmatprep.subr.bf16.mxu0 0
  %995 = vmatpush1.bf16.msra.mxu0 0
  %996 = vmatprep.mubr.bf16.mxu0 0
  %997 = vmatmul.mubr.bf16.gmra.mrb[0].mxu0 %v842
  %v998 = vpop.f32.mrb[0].mxu0
  %v999 = vadd.f32 %v959, %v998
  %v1000 = vpop.f32.mrb[0].mxu0
  %v1001 = vpop.f32.mrb[0].mxu0
  %v1002 = vpop.f32.mrb[0].mxu0
  %1003 = vdwg.mxu0
  %v1004 = vmax.f32 %v811, %v999
  %s1005 = scalar_lea.vmem %s0, 84
  %v1006 = vld [vmem:[%s1005] sm:$0xff]
  %v1007 = vld [vmem:[%s1005 + $0x8] sm:$0xff]
  %v1008 = vld [vmem:[%s1005 + $0x10] sm:$0xff]
  %v1009 = vld [vmem:[%s1005 + $0x18] sm:$0xf]
  %v1014 = vunpack.c.l.b16 %v1006
  %v1015 = vunpack.c.h.b16 %v1006
  %v1016 = vunpack.c.l.b16 %v1007
  %v1017 = vunpack.c.h.b16 %v1007
  %v1018 = vunpack.c.l.b16 %v1008
  %v1019 = vunpack.c.h.b16 %v1008
  %v1020 = vunpack.c.l.b16 %v1009
  %v1021 = vpack.c.b16 %v1014, %v1014
  %v1022 = vpack.c.b16 %v1015, %v1015
  %v1023 = vpack.c.b16 %v1016, %v1016
  %v1024 = vpack.c.b16 %v1017, %v1017
  %v1025 = vpack.c.b16 %v1018, %v1018
  %v1026 = vpack.c.b16 %v1019, %v1019
  %v1027 = vpack.c.b16 %v1020, %v1020
  %v1035 = vsel %vm455, %v1027, 0
  %1037 = vmatprep.subr.bf16.mxu0 0
  %1038 = vmatpush1.bf16.msra.mxu0 %v355
  %1039 = vmatprep.subr.bf16.mxu0 0
  %1040 = vmatpush1.bf16.msra.mxu0 %v356
  %1041 = vmatprep.subr.bf16.mxu0 0
  %1042 = vmatpush1.bf16.msra.mxu0 %v357
  %1043 = vmatprep.subr.bf16.mxu0 0
  %1044 = vmatpush1.bf16.msra.mxu0 %v358
  %1045 = vmatprep.subr.bf16.mxu0 0
  %1046 = vmatpush1.bf16.msra.mxu0 %v359
  %1047 = vmatprep.subr.bf16.mxu0 0
  %1048 = vmatpush1.bf16.msra.mxu0 %v360
  %1049 = vmatprep.subr.bf16.mxu0 0
  %1050 = vmatpush1.bf16.msra.mxu0 %v361
  %1051 = vmatprep.subr.bf16.mxu0 0
  %1052 = vmatpush1.bf16.msra.mxu0 %v362
  %1053 = vmatprep.subr.bf16.mxu0 0
  %1054 = vmatpush1.bf16.msra.mxu0 %v363
  %1055 = vmatprep.subr.bf16.mxu0 0
  %1056 = vmatpush1.bf16.msra.mxu0 %v364
  %1057 = vmatprep.subr.bf16.mxu0 0
  %1058 = vmatpush1.bf16.msra.mxu0 %v365
  %1059 = vmatprep.subr.bf16.mxu0 0
  %1060 = vmatpush1.bf16.msra.mxu0 %v366
  %1061 = vmatprep.subr.bf16.mxu0 0
  %1062 = vmatpush1.bf16.msra.mxu0 %v367
  %1063 = vmatprep.subr.bf16.mxu0 0
  %1064 = vmatpush1.bf16.msra.mxu0 %v368
  %1065 = vmatprep.subr.bf16.mxu0 0
  %1066 = vmatpush1.bf16.msra.mxu0 %v369
  %1067 = vmatprep.subr.bf16.mxu0 0
  %1068 = vmatpush1.bf16.msra.mxu0 %v370
  %1069 = vmatprep.mubr.bf16.mxu0 %v1022
  %1070 = vmatmul.mubr.bf16.gmra.mrb[0].mxu0 %v1021
  %v1071 = vpop.f32.mrb[0].mxu0
  %v1072 = vadd.f32 0.0, %v1071
  %v1073 = vpop.f32.mrb[0].mxu0
  %v1074 = vpop.f32.mrb[0].mxu0
  %v1075 = vpop.f32.mrb[0].mxu0
  %1076 = vdwg.mxu0
  %1077 = vmatprep.subr.bf16.mxu0 0
  %1078 = vmatpush1.bf16.msra.mxu0 %v371
  %1079 = vmatprep.subr.bf16.mxu0 0
  %1080 = vmatpush1.bf16.msra.mxu0 %v372
  %1081 = vmatprep.subr.bf16.mxu0 0
  %1082 = vmatpush1.bf16.msra.mxu0 %v373
  %1083 = vmatprep.subr.bf16.mxu0 0
  %1084 = vmatpush1.bf16.msra.mxu0 %v374
  %1085 = vmatprep.subr.bf16.mxu0 0
  %1086 = vmatpush1.bf16.msra.mxu0 %v375
  %1087 = vmatprep.subr.bf16.mxu0 0
  %1088 = vmatpush1.bf16.msra.mxu0 %v376
  %1089 = vmatprep.subr.bf16.mxu0 0
  %1090 = vmatpush1.bf16.msra.mxu0 %v377
  %1091 = vmatprep.subr.bf16.mxu0 0
  %1092 = vmatpush1.bf16.msra.mxu0 %v378
  %1093 = vmatprep.subr.bf16.mxu0 0
  %1094 = vmatpush1.bf16.msra.mxu0 %v379
  %1095 = vmatprep.subr.bf16.mxu0 0
  %1096 = vmatpush1.bf16.msra.mxu0 %v380
  %1097 = vmatprep.subr.bf16.mxu0 0
  %1098 = vmatpush1.bf16.msra.mxu0 %v381
  %1099 = vmatprep.subr.bf16.mxu0 0
  %1100 = vmatpush1.bf16.msra.mxu0 %v382
  %1101 = vmatprep.subr.bf16.mxu0 0
  %1102 = vmatpush1.bf16.msra.mxu0 %v383
  %1103 = vmatprep.subr.bf16.mxu0 0
  %1104 = vmatpush1.bf16.msra.mxu0 %v384
  %1105 = vmatprep.subr.bf16.mxu0 0
  %1106 = vmatpush1.bf16.msra.mxu0 %v385
  %1107 = vmatprep.subr.bf16.mxu0 0
  %1108 = vmatpush1.bf16.msra.mxu0 %v386
  %1109 = vmatprep.mubr.bf16.mxu0 %v1024
  %1110 = vmatmul.mubr.bf16.gmra.mrb[0].mxu0 %v1023
  %v1111 = vpop.f32.mrb[0].mxu0
  %v1112 = vadd.f32 %v1072, %v1111
  %v1113 = vpop.f32.mrb[0].mxu0
  %v1114 = vpop.f32.mrb[0].mxu0
  %v1115 = vpop.f32.mrb[0].mxu0
  %1116 = vdwg.mxu0
  %1117 = vmatprep.subr.bf16.mxu0 0
  %1118 = vmatpush1.bf16.msra.mxu0 %v387
  %1119 = vmatprep.subr.bf16.mxu0 0
  %1120 = vmatpush1.bf16.msra.mxu0 %v388
  %1121 = vmatprep.subr.bf16.mxu0 0
  %1122 = vmatpush1.bf16.msra.mxu0 %v389
  %1123 = vmatprep.subr.bf16.mxu0 0
  %1124 = vmatpush1.bf16.msra.mxu0 %v390
  %1125 = vmatprep.subr.bf16.mxu0 0
  %1126 = vmatpush1.bf16.msra.mxu0 %v391
  %1127 = vmatprep.subr.bf16.mxu0 0
  %1128 = vmatpush1.bf16.msra.mxu0 %v392
  %1129 = vmatprep.subr.bf16.mxu0 0
  %1130 = vmatpush1.bf16.msra.mxu0 %v393
  %1131 = vmatprep.subr.bf16.mxu0 0
  %1132 = vmatpush1.bf16.msra.mxu0 %v394
  %1133 = vmatprep.subr.bf16.mxu0 0
  %1134 = vmatpush1.bf16.msra.mxu0 %v395
  %1135 = vmatprep.subr.bf16.mxu0 0
  %1136 = vmatpush1.bf16.msra.mxu0 %v396
  %1137 = vmatprep.subr.bf16.mxu0 0
  %1138 = vmatpush1.bf16.msra.mxu0 %v397
  %1139 = vmatprep.subr.bf16.mxu0 0
  %1140 = vmatpush1.bf16.msra.mxu0 %v398
  %1141 = vmatprep.subr.bf16.mxu0 0
  %1142 = vmatpush1.bf16.msra.mxu0 %v399
  %1143 = vmatprep.subr.bf16.mxu0 0
  %1144 = vmatpush1.bf16.msra.mxu0 %v400
  %1145 = vmatprep.subr.bf16.mxu0 0
  %1146 = vmatpush1.bf16.msra.mxu0 %v401
  %1147 = vmatprep.subr.bf16.mxu0 0
  %1148 = vmatpush1.bf16.msra.mxu0 %v402
  %1149 = vmatprep.mubr.bf16.mxu0 %v1026
  %1150 = vmatmul.mubr.bf16.gmra.mrb[0].mxu0 %v1025
  %v1151 = vpop.f32.mrb[0].mxu0
  %v1152 = vadd.f32 %v1112, %v1151
  %v1153 = vpop.f32.mrb[0].mxu0
  %v1154 = vpop.f32.mrb[0].mxu0
  %v1155 = vpop.f32.mrb[0].mxu0
  %1156 = vdwg.mxu0
  %1157 = vmatprep.subr.bf16.mxu0 0
  %1158 = vmatpush1.bf16.msra.mxu0 %v403
  %1159 = vmatprep.subr.bf16.mxu0 0
  %1160 = vmatpush1.bf16.msra.mxu0 %v404
  %1161 = vmatprep.subr.bf16.mxu0 0
  %1162 = vmatpush1.bf16.msra.mxu0 0
  %1163 = vmatprep.subr.bf16.mxu0 0
  %1164 = vmatpush1.bf16.msra.mxu0 0
  %1165 = vmatprep.subr.bf16.mxu0 0
  %1166 = vmatpush1.bf16.msra.mxu0 0
  %1167 = vmatprep.subr.bf16.mxu0 0
  %1168 = vmatpush1.bf16.msra.mxu0 0
  %1169 = vmatprep.subr.bf16.mxu0 0
  %1170 = vmatpush1.bf16.msra.mxu0 0
  %1171 = vmatprep.subr.bf16.mxu0 0
  %1172 = vmatpush1.bf16.msra.mxu0 0
  %1173 = vmatprep.subr.bf16.mxu0 0
  %1174 = vmatpush1.bf16.msra.mxu0 0
  %1175 = vmatprep.subr.bf16.mxu0 0
  %1176 = vmatpush1.bf16.msra.mxu0 0
  %1177 = vmatprep.subr.bf16.mxu0 0
  %1178 = vmatpush1.bf16.msra.mxu0 0
  %1179 = vmatprep.subr.bf16.mxu0 0
  %1180 = vmatpush1.bf16.msra.mxu0 0
  %1181 = vmatprep.subr.bf16.mxu0 0
  %1182 = vmatpush1.bf16.msra.mxu0 0
  %1183 = vmatprep.subr.bf16.mxu0 0
  %1184 = vmatpush1.bf16.msra.mxu0 0
  %1185 = vmatprep.subr.bf16.mxu0 0
  %1186 = vmatpush1.bf16.msra.mxu0 0
  %1187 = vmatprep.subr.bf16.mxu0 0
  %1188 = vmatpush1.bf16.msra.mxu0 0
  %1189 = vmatprep.mubr.bf16.mxu0 0
  %1190 = vmatmul.mubr.bf16.gmra.mrb[0].mxu0 %v1035
  %v1191 = vpop.f32.mrb[0].mxu0
  %v1192 = vadd.f32 %v1152, %v1191
  %v1193 = vpop.f32.mrb[0].mxu0
  %v1194 = vpop.f32.mrb[0].mxu0
  %v1195 = vpop.f32.mrb[0].mxu0
  %1196 = vdwg.mxu0
  %v1197 = vmax.f32 %v1004, %v1192
  %s1198 = scalar_lea.vmem %s0, 112
  %v1199 = vld [vmem:[%s1198] sm:$0xff]
  %v1200 = vld [vmem:[%s1198 + $0x8] sm:$0xff]
  %v1201 = vld [vmem:[%s1198 + $0x10] sm:$0xff]
  %v1202 = vld [vmem:[%s1198 + $0x18] sm:$0xf]
  %v1207 = vunpack.c.l.b16 %v1199
  %v1208 = vunpack.c.h.b16 %v1199
  %v1209 = vunpack.c.l.b16 %v1200
  %v1210 = vunpack.c.h.b16 %v1200
  %v1211 = vunpack.c.l.b16 %v1201
  %v1212 = vunpack.c.h.b16 %v1201
  %v1213 = vunpack.c.l.b16 %v1202
  %v1214 = vpack.c.b16 %v1207, %v1207
  %v1215 = vpack.c.b16 %v1208, %v1208
  %v1216 = vpack.c.b16 %v1209, %v1209
  %v1217 = vpack.c.b16 %v1210, %v1210
  %v1218 = vpack.c.b16 %v1211, %v1211
  %v1219 = vpack.c.b16 %v1212, %v1212
  %v1220 = vpack.c.b16 %v1213, %v1213
  %v1228 = vsel %vm455, %v1220, 0
  %1230 = vmatprep.subr.bf16.mxu0 0
  %1231 = vmatpush1.bf16.msra.mxu0 %v355
  %1232 = vmatprep.subr.bf16.mxu0 0
  %1233 = vmatpush1.bf16.msra.mxu0 %v356
  %1234 = vmatprep.subr.bf16.mxu0 0
  %1235 = vmatpush1.bf16.msra.mxu0 %v357
  %1236 = vmatprep.subr.bf16.mxu0 0
  %1237 = vmatpush1.bf16.msra.mxu0 %v358
  %1238 = vmatprep.subr.bf16.mxu0 0
  %1239 = vmatpush1.bf16.msra.mxu0 %v359
  %1240 = vmatprep.subr.bf16.mxu0 0
  %1241 = vmatpush1.bf16.msra.mxu0 %v360
  %1242 = vmatprep.subr.bf16.mxu0 0
  %1243 = vmatpush1.bf16.msra.mxu0 %v361
  %1244 = vmatprep.subr.bf16.mxu0 0
  %1245 = vmatpush1.bf16.msra.mxu0 %v362
  %1246 = vmatprep.subr.bf16.mxu0 0
  %1247 = vmatpush1.bf16.msra.mxu0 %v363
  %1248 = vmatprep.subr.bf16.mxu0 0
  %1249 = vmatpush1.bf16.msra.mxu0 %v364
  %1250 = vmatprep.subr.bf16.mxu0 0
  %1251 = vmatpush1.bf16.msra.mxu0 %v365
  %1252 = vmatprep.subr.bf16.mxu0 0
  %1253 = vmatpush1.bf16.msra.mxu0 %v366
  %1254 = vmatprep.subr.bf16.mxu0 0
  %1255 = vmatpush1.bf16.msra.mxu0 %v367
  %1256 = vmatprep.subr.bf16.mxu0 0
  %1257 = vmatpush1.bf16.msra.mxu0 %v368
  %1258 = vmatprep.subr.bf16.mxu0 0
  %1259 = vmatpush1.bf16.msra.mxu0 %v369
  %1260 = vmatprep.subr.bf16.mxu0 0
  %1261 = vmatpush1.bf16.msra.mxu0 %v370
  %1262 = vmatprep.mubr.bf16.mxu0 %v1215
  %1263 = vmatmul.mubr.bf16.gmra.mrb[0].mxu0 %v1214
  %v1264 = vpop.f32.mrb[0].mxu0
  %v1265 = vadd.f32 0.0, %v1264
  %v1266 = vpop.f32.mrb[0].mxu0
  %v1267 = vpop.f32.mrb[0].mxu0
  %v1268 = vpop.f32.mrb[0].mxu0
  %1269 = vdwg.mxu0
  %1270 = vmatprep.subr.bf16.mxu0 0
  %1271 = vmatpush1.bf16.msra.mxu0 %v371
  %1272 = vmatprep.subr.bf16.mxu0 0
  %1273 = vmatpush1.bf16.msra.mxu0 %v372
  %1274 = vmatprep.subr.bf16.mxu0 0
  %1275 = vmatpush1.bf16.msra.mxu0 %v373
  %1276 = vmatprep.subr.bf16.mxu0 0
  %1277 = vmatpush1.bf16.msra.mxu0 %v374
  %1278 = vmatprep.subr.bf16.mxu0 0
  %1279 = vmatpush1.bf16.msra.mxu0 %v375
  %1280 = vmatprep.subr.bf16.mxu0 0
  %1281 = vmatpush1.bf16.msra.mxu0 %v376
  %1282 = vmatprep.subr.bf16.mxu0 0
  %1283 = vmatpush1.bf16.msra.mxu0 %v377
  %1284 = vmatprep.subr.bf16.mxu0 0
  %1285 = vmatpush1.bf16.msra.mxu0 %v378
  %1286 = vmatprep.subr.bf16.mxu0 0
  %1287 = vmatpush1.bf16.msra.mxu0 %v379
  %1288 = vmatprep.subr.bf16.mxu0 0
  %1289 = vmatpush1.bf16.msra.mxu0 %v380
  %1290 = vmatprep.subr.bf16.mxu0 0
  %1291 = vmatpush1.bf16.msra.mxu0 %v381
  %1292 = vmatprep.subr.bf16.mxu0 0
  %1293 = vmatpush1.bf16.msra.mxu0 %v382
  %1294 = vmatprep.subr.bf16.mxu0 0
  %1295 = vmatpush1.bf16.msra.mxu0 %v383
  %1296 = vmatprep.subr.bf16.mxu0 0
  %1297 = vmatpush1.bf16.msra.mxu0 %v384
  %1298 = vmatprep.subr.bf16.mxu0 0
  %1299 = vmatpush1.bf16.msra.mxu0 %v385
  %1300 = vmatprep.subr.bf16.mxu0 0
  %1301 = vmatpush1.bf16.msra.mxu0 %v386
  %1302 = vmatprep.mubr.bf16.mxu0 %v1217
  %1303 = vmatmul.mubr.bf16.gmra.mrb[0].mxu0 %v1216
  %v1304 = vpop.f32.mrb[0].mxu0
  %v1305 = vadd.f32 %v1265, %v1304
  %v1306 = vpop.f32.mrb[0].mxu0
  %v1307 = vpop.f32.mrb[0].mxu0
  %v1308 = vpop.f32.mrb[0].mxu0
  %1309 = vdwg.mxu0
  %1310 = vmatprep.subr.bf16.mxu0 0
  %1311 = vmatpush1.bf16.msra.mxu0 %v387
  %1312 = vmatprep.subr.bf16.mxu0 0
  %1313 = vmatpush1.bf16.msra.mxu0 %v388
  %1314 = vmatprep.subr.bf16.mxu0 0
  %1315 = vmatpush1.bf16.msra.mxu0 %v389
  %1316 = vmatprep.subr.bf16.mxu0 0
  %1317 = vmatpush1.bf16.msra.mxu0 %v390
  %1318 = vmatprep.subr.bf16.mxu0 0
  %1319 = vmatpush1.bf16.msra.mxu0 %v391
  %1320 = vmatprep.subr.bf16.mxu0 0
  %1321 = vmatpush1.bf16.msra.mxu0 %v392
  %1322 = vmatprep.subr.bf16.mxu0 0
  %1323 = vmatpush1.bf16.msra.mxu0 %v393
  %1324 = vmatprep.subr.bf16.mxu0 0
  %1325 = vmatpush1.bf16.msra.mxu0 %v394
  %1326 = vmatprep.subr.bf16.mxu0 0
  %1327 = vmatpush1.bf16.msra.mxu0 %v395
  %1328 = vmatprep.subr.bf16.mxu0 0
  %1329 = vmatpush1.bf16.msra.mxu0 %v396
  %1330 = vmatprep.subr.bf16.mxu0 0
  %1331 = vmatpush1.bf16.msra.mxu0 %v397
  %1332 = vmatprep.subr.bf16.mxu0 0
  %1333 = vmatpush1.bf16.msra.mxu0 %v398
  %1334 = vmatprep.subr.bf16.mxu0 0
  %1335 = vmatpush1.bf16.msra.mxu0 %v399
  %1336 = vmatprep.subr.bf16.mxu0 0
  %1337 = vmatpush1.bf16.msra.mxu0 %v400
  %1338 = vmatprep.subr.bf16.mxu0 0
  %1339 = vmatpush1.bf16.msra.mxu0 %v401
  %1340 = vmatprep.subr.bf16.mxu0 0
  %1341 = vmatpush1.bf16.msra.mxu0 %v402
  %1342 = vmatprep.mubr.bf16.mxu0 %v1219
  %1343 = vmatmul.mubr.bf16.gmra.mrb[0].mxu0 %v1218
  %v1344 = vpop.f32.mrb[0].mxu0
  %v1345 = vadd.f32 %v1305, %v1344
  %v1346 = vpop.f32.mrb[0].mxu0
  %v1347 = vpop.f32.mrb[0].mxu0
  %v1348 = vpop.f32.mrb[0].mxu0
  %1349 = vdwg.mxu0
  %1350 = vmatprep.subr.bf16.mxu0 0
  %1351 = vmatpush1.bf16.msra.mxu0 %v403
  %1352 = vmatprep.subr.bf16.mxu0 0
  %1353 = vmatpush1.bf16.msra.mxu0 %v404
  %1354 = vmatprep.subr.bf16.mxu0 0
  %1355 = vmatpush1.bf16.msra.mxu0 0
  %1356 = vmatprep.subr.bf16.mxu0 0
  %1357 = vmatpush1.bf16.msra.mxu0 0
  %1358 = vmatprep.subr.bf16.mxu0 0
  %1359 = vmatpush1.bf16.msra.mxu0 0
  %1360 = vmatprep.subr.bf16.mxu0 0
  %1361 = vmatpush1.bf16.msra.mxu0 0
  %1362 = vmatprep.subr.bf16.mxu0 0
  %1363 = vmatpush1.bf16.msra.mxu0 0
  %1364 = vmatprep.subr.bf16.mxu0 0
  %1365 = vmatpush1.bf16.msra.mxu0 0
  %1366 = vmatprep.subr.bf16.mxu0 0
  %1367 = vmatpush1.bf16.msra.mxu0 0
  %1368 = vmatprep.subr.bf16.mxu0 0
  %1369 = vmatpush1.bf16.msra.mxu0 0
  %1370 = vmatprep.subr.bf16.mxu0 0
  %1371 = vmatpush1.bf16.msra.mxu0 0
  %1372 = vmatprep.subr.bf16.mxu0 0
  %1373 = vmatpush1.bf16.msra.mxu0 0
  %1374 = vmatprep.subr.bf16.mxu0 0
  %1375 = vmatpush1.bf16.msra.mxu0 0
  %1376 = vmatprep.subr.bf16.mxu0 0
  %1377 = vmatpush1.bf16.msra.mxu0 0
  %1378 = vmatprep.subr.bf16.mxu0 0
  %1379 = vmatpush1.bf16.msra.mxu0 0
  %1380 = vmatprep.subr.bf16.mxu0 0
  %1381 = vmatpush1.bf16.msra.mxu0 0
  %1382 = vmatprep.mubr.bf16.mxu0 0
  %1383 = vmatmul.mubr.bf16.gmra.mrb[0].mxu0 %v1228
  %v1384 = vpop.f32.mrb[0].mxu0
  %v1385 = vadd.f32 %v1345, %v1384
  %v1386 = vpop.f32.mrb[0].mxu0
  %v1387 = vpop.f32.mrb[0].mxu0
  %v1388 = vpop.f32.mrb[0].mxu0
  %1389 = vdwg.mxu0
  %v1390 = vmax.f32 %v1197, %v1385
  %s1391 = scalar_lea.vmem %s0, 140
  %v1392 = vld [vmem:[%s1391] sm:$0xff]
  %v1393 = vld [vmem:[%s1391 + $0x8] sm:$0xff]
  %v1394 = vld [vmem:[%s1391 + $0x10] sm:$0xff]
  %v1395 = vld [vmem:[%s1391 + $0x18] sm:$0xf]
  %v1400 = vunpack.c.l.b16 %v1392
  %v1401 = vunpack.c.h.b16 %v1392
  %v1402 = vunpack.c.l.b16 %v1393
  %v1403 = vunpack.c.h.b16 %v1393
  %v1404 = vunpack.c.l.b16 %v1394
  %v1405 = vunpack.c.h.b16 %v1394
  %v1406 = vunpack.c.l.b16 %v1395
  %v1407 = vpack.c.b16 %v1400, %v1400
  %v1408 = vpack.c.b16 %v1401, %v1401
  %v1409 = vpack.c.b16 %v1402, %v1402
  %v1410 = vpack.c.b16 %v1403, %v1403
  %v1411 = vpack.c.b16 %v1404, %v1404
  %v1412 = vpack.c.b16 %v1405, %v1405
  %v1413 = vpack.c.b16 %v1406, %v1406
  %v1421 = vsel %vm455, %v1413, 0
  %1423 = vmatprep.subr.bf16.mxu0 0
  %1424 = vmatpush1.bf16.msra.mxu0 %v355
  %1425 = vmatprep.subr.bf16.mxu0 0
  %1426 = vmatpush1.bf16.msra.mxu0 %v356
  %1427 = vmatprep.subr.bf16.mxu0 0
  %1428 = vmatpush1.bf16.msra.mxu0 %v357
  %1429 = vmatprep.subr.bf16.mxu0 0
  %1430 = vmatpush1.bf16.msra.mxu0 %v358
  %1431 = vmatprep.subr.bf16.mxu0 0
  %1432 = vmatpush1.bf16.msra.mxu0 %v359
  %1433 = vmatprep.subr.bf16.mxu0 0
  %1434 = vmatpush1.bf16.msra.mxu0 %v360
  %1435 = vmatprep.subr.bf16.mxu0 0
  %1436 = vmatpush1.bf16.msra.mxu0 %v361
  %1437 = vmatprep.subr.bf16.mxu0 0
  %1438 = vmatpush1.bf16.msra.mxu0 %v362
  %1439 = vmatprep.subr.bf16.mxu0 0
  %1440 = vmatpush1.bf16.msra.mxu0 %v363
  %1441 = vmatprep.subr.bf16.mxu0 0
  %1442 = vmatpush1.bf16.msra.mxu0 %v364
  %1443 = vmatprep.subr.bf16.mxu0 0
  %1444 = vmatpush1.bf16.msra.mxu0 %v365
  %1445 = vmatprep.subr.bf16.mxu0 0
  %1446 = vmatpush1.bf16.msra.mxu0 %v366
  %1447 = vmatprep.subr.bf16.mxu0 0
  %1448 = vmatpush1.bf16.msra.mxu0 %v367
  %1449 = vmatprep.subr.bf16.mxu0 0
  %1450 = vmatpush1.bf16.msra.mxu0 %v368
  %1451 = vmatprep.subr.bf16.mxu0 0
  %1452 = vmatpush1.bf16.msra.mxu0 %v369
  %1453 = vmatprep.subr.bf16.mxu0 0
  %1454 = vmatpush1.bf16.msra.mxu0 %v370
  %1455 = vmatprep.mubr.bf16.mxu0 %v1408
  %1456 = vmatmul.mubr.bf16.gmra.mrb[0].mxu0 %v1407
  %v1457 = vpop.f32.mrb[0].mxu0
  %v1458 = vadd.f32 0.0, %v1457
  %v1459 = vpop.f32.mrb[0].mxu0
  %v1460 = vpop.f32.mrb[0].mxu0
  %v1461 = vpop.f32.mrb[0].mxu0
  %1462 = vdwg.mxu0
  %1463 = vmatprep.subr.bf16.mxu0 0
  %1464 = vmatpush1.bf16.msra.mxu0 %v371
  %1465 = vmatprep.subr.bf16.mxu0 0
  %1466 = vmatpush1.bf16.msra.mxu0 %v372
  %1467 = vmatprep.subr.bf16.mxu0 0
  %1468 = vmatpush1.bf16.msra.mxu0 %v373
  %1469 = vmatprep.subr.bf16.mxu0 0
  %1470 = vmatpush1.bf16.msra.mxu0 %v374
  %1471 = vmatprep.subr.bf16.mxu0 0
  %1472 = vmatpush1.bf16.msra.mxu0 %v375
  %1473 = vmatprep.subr.bf16.mxu0 0
  %1474 = vmatpush1.bf16.msra.mxu0 %v376
  %1475 = vmatprep.subr.bf16.mxu0 0
  %1476 = vmatpush1.bf16.msra.mxu0 %v377
  %1477 = vmatprep.subr.bf16.mxu0 0
  %1478 = vmatpush1.bf16.msra.mxu0 %v378
  %1479 = vmatprep.subr.bf16.mxu0 0
  %1480 = vmatpush1.bf16.msra.mxu0 %v379
  %1481 = vmatprep.subr.bf16.mxu0 0
  %1482 = vmatpush1.bf16.msra.mxu0 %v380
  %1483 = vmatprep.subr.bf16.mxu0 0
  %1484 = vmatpush1.bf16.msra.mxu0 %v381
  %1485 = vmatprep.subr.bf16.mxu0 0
  %1486 = vmatpush1.bf16.msra.mxu0 %v382
  %1487 = vmatprep.subr.bf16.mxu0 0
  %1488 = vmatpush1.bf16.msra.mxu0 %v383
  %1489 = vmatprep.subr.bf16.mxu0 0
  %1490 = vmatpush1.bf16.msra.mxu0 %v384
  %1491 = vmatprep.subr.bf16.mxu0 0
  %1492 = vmatpush1.bf16.msra.mxu0 %v385
  %1493 = vmatprep.subr.bf16.mxu0 0
  %1494 = vmatpush1.bf16.msra.mxu0 %v386
  %1495 = vmatprep.mubr.bf16.mxu0 %v1410
  %1496 = vmatmul.mubr.bf16.gmra.mrb[0].mxu0 %v1409
  %v1497 = vpop.f32.mrb[0].mxu0
  %v1498 = vadd.f32 %v1458, %v1497
  %v1499 = vpop.f32.mrb[0].mxu0
  %v1500 = vpop.f32.mrb[0].mxu0
  %v1501 = vpop.f32.mrb[0].mxu0
  %1502 = vdwg.mxu0
  %1503 = vmatprep.subr.bf16.mxu0 0
  %1504 = vmatpush1.bf16.msra.mxu0 %v387
  %1505 = vmatprep.subr.bf16.mxu0 0
  %1506 = vmatpush1.bf16.msra.mxu0 %v388
  %1507 = vmatprep.subr.bf16.mxu0 0
  %1508 = vmatpush1.bf16.msra.mxu0 %v389
  %1509 = vmatprep.subr.bf16.mxu0 0
  %1510 = vmatpush1.bf16.msra.mxu0 %v390
  %1511 = vmatprep.subr.bf16.mxu0 0
  %1512 = vmatpush1.bf16.msra.mxu0 %v391
  %1513 = vmatprep.subr.bf16.mxu0 0
  %1514 = vmatpush1.bf16.msra.mxu0 %v392
  %1515 = vmatprep.subr.bf16.mxu0 0
  %1516 = vmatpush1.bf16.msra.mxu0 %v393
  %1517 = vmatprep.subr.bf16.mxu0 0
  %1518 = vmatpush1.bf16.msra.mxu0 %v394
  %1519 = vmatprep.subr.bf16.mxu0 0
  %1520 = vmatpush1.bf16.msra.mxu0 %v395
  %1521 = vmatprep.subr.bf16.mxu0 0
  %1522 = vmatpush1.bf16.msra.mxu0 %v396
  %1523 = vmatprep.subr.bf16.mxu0 0
  %1524 = vmatpush1.bf16.msra.mxu0 %v397
  %1525 = vmatprep.subr.bf16.mxu0 0
  %1526 = vmatpush1.bf16.msra.mxu0 %v398
  %1527 = vmatprep.subr.bf16.mxu0 0
  %1528 = vmatpush1.bf16.msra.mxu0 %v399
  %1529 = vmatprep.subr.bf16.mxu0 0
  %1530 = vmatpush1.bf16.msra.mxu0 %v400
  %1531 = vmatprep.subr.bf16.mxu0 0
  %1532 = vmatpush1.bf16.msra.mxu0 %v401
  %1533 = vmatprep.subr.bf16.mxu0 0
  %1534 = vmatpush1.bf16.msra.mxu0 %v402
  %1535 = vmatprep.mubr.bf16.mxu0 %v1412
  %1536 = vmatmul.mubr.bf16.gmra.mrb[0].mxu0 %v1411
  %v1537 = vpop.f32.mrb[0].mxu0
  %v1538 = vadd.f32 %v1498, %v1537
  %v1539 = vpop.f32.mrb[0].mxu0
  %v1540 = vpop.f32.mrb[0].mxu0
  %v1541 = vpop.f32.mrb[0].mxu0
  %1542 = vdwg.mxu0
  %1543 = vmatprep.subr.bf16.mxu0 0
  %1544 = vmatpush1.bf16.msra.mxu0 %v403
  %1545 = vmatprep.subr.bf16.mxu0 0
  %1546 = vmatpush1.bf16.msra.mxu0 %v404
  %1547 = vmatprep.subr.bf16.mxu0 0
  %1548 = vmatpush1.bf16.msra.mxu0 0
  %1549 = vmatprep.subr.bf16.mxu0 0
  %1550 = vmatpush1.bf16.msra.mxu0 0
  %1551 = vmatprep.subr.bf16.mxu0 0
  %1552 = vmatpush1.bf16.msra.mxu0 0
  %1553 = vmatprep.subr.bf16.mxu0 0
  %1554 = vmatpush1.bf16.msra.mxu0 0
  %1555 = vmatprep.subr.bf16.mxu0 0
  %1556 = vmatpush1.bf16.msra.mxu0 0
  %1557 = vmatprep.subr.bf16.mxu0 0
  %1558 = vmatpush1.bf16.msra.mxu0 0
  %1559 = vmatprep.subr.bf16.mxu0 0
  %1560 = vmatpush1.bf16.msra.mxu0 0
  %1561 = vmatprep.subr.bf16.mxu0 0
  %1562 = vmatpush1.bf16.msra.mxu0 0
  %1563 = vmatprep.subr.bf16.mxu0 0
  %1564 = vmatpush1.bf16.msra.mxu0 0
  %1565 = vmatprep.subr.bf16.mxu0 0
  %1566 = vmatpush1.bf16.msra.mxu0 0
  %1567 = vmatprep.subr.bf16.mxu0 0
  %1568 = vmatpush1.bf16.msra.mxu0 0
  %1569 = vmatprep.subr.bf16.mxu0 0
  %1570 = vmatpush1.bf16.msra.mxu0 0
  %1571 = vmatprep.subr.bf16.mxu0 0
  %1572 = vmatpush1.bf16.msra.mxu0 0
  %1573 = vmatprep.subr.bf16.mxu0 0
  %1574 = vmatpush1.bf16.msra.mxu0 0
  %1575 = vmatprep.mubr.bf16.mxu0 0
  %1576 = vmatmul.mubr.bf16.gmra.mrb[0].mxu0 %v1421
  %v1577 = vpop.f32.mrb[0].mxu0
  %v1578 = vadd.f32 %v1538, %v1577
  %v1579 = vpop.f32.mrb[0].mxu0
  %v1580 = vpop.f32.mrb[0].mxu0
  %v1581 = vpop.f32.mrb[0].mxu0
  %1582 = vdwg.mxu0
  %v1583 = vmax.f32 %v1390, %v1578
  %s1584 = scalar_lea.vmem %s0, 168
  %v1585 = vld [vmem:[%s1584] sm:$0xff]
  %v1586 = vld [vmem:[%s1584 + $0x8] sm:$0xff]
  %v1587 = vld [vmem:[%s1584 + $0x10] sm:$0xff]
  %v1588 = vld [vmem:[%s1584 + $0x18] sm:$0xf]
  %v1593 = vunpack.c.l.b16 %v1585
  %v1594 = vunpack.c.h.b16 %v1585
  %v1595 = vunpack.c.l.b16 %v1586
  %v1596 = vunpack.c.h.b16 %v1586
  %v1597 = vunpack.c.l.b16 %v1587
  %v1598 = vunpack.c.h.b16 %v1587
  %v1599 = vunpack.c.l.b16 %v1588
  %v1600 = vpack.c.b16 %v1593, %v1593
  %v1601 = vpack.c.b16 %v1594, %v1594
  %v1602 = vpack.c.b16 %v1595, %v1595
  %v1603 = vpack.c.b16 %v1596, %v1596
  %v1604 = vpack.c.b16 %v1597, %v1597
  %v1605 = vpack.c.b16 %v1598, %v1598
  %v1606 = vpack.c.b16 %v1599, %v1599
  %v1614 = vsel %vm455, %v1606, 0
  %1616 = vmatprep.subr.bf16.mxu0 0
  %1617 = vmatpush1.bf16.msra.mxu0 %v355
  %1618 = vmatprep.subr.bf16.mxu0 0
  %1619 = vmatpush1.bf16.msra.mxu0 %v356
  %1620 = vmatprep.subr.bf16.mxu0 0
  %1621 = vmatpush1.bf16.msra.mxu0 %v357
  %1622 = vmatprep.subr.bf16.mxu0 0
  %1623 = vmatpush1.bf16.msra.mxu0 %v358
  %1624 = vmatprep.subr.bf16.mxu0 0
  %1625 = vmatpush1.bf16.msra.mxu0 %v359
  %1626 = vmatprep.subr.bf16.mxu0 0
  %1627 = vmatpush1.bf16.msra.mxu0 %v360
  %1628 = vmatprep.subr.bf16.mxu0 0
  %1629 = vmatpush1.bf16.msra.mxu0 %v361
  %1630 = vmatprep.subr.bf16.mxu0 0
  %1631 = vmatpush1.bf16.msra.mxu0 %v362
  %1632 = vmatprep.subr.bf16.mxu0 0
  %1633 = vmatpush1.bf16.msra.mxu0 %v363
  %1634 = vmatprep.subr.bf16.mxu0 0
  %1635 = vmatpush1.bf16.msra.mxu0 %v364
  %1636 = vmatprep.subr.bf16.mxu0 0
  %1637 = vmatpush1.bf16.msra.mxu0 %v365
  %1638 = vmatprep.subr.bf16.mxu0 0
  %1639 = vmatpush1.bf16.msra.mxu0 %v366
  %1640 = vmatprep.subr.bf16.mxu0 0
  %1641 = vmatpush1.bf16.msra.mxu0 %v367
  %1642 = vmatprep.subr.bf16.mxu0 0
  %1643 = vmatpush1.bf16.msra.mxu0 %v368
  %1644 = vmatprep.subr.bf16.mxu0 0
  %1645 = vmatpush1.bf16.msra.mxu0 %v369
  %1646 = vmatprep.subr.bf16.mxu0 0
  %1647 = vmatpush1.bf16.msra.mxu0 %v370
  %1648 = vmatprep.mubr.bf16.mxu0 %v1601
  %1649 = vmatmul.mubr.bf16.gmra.mrb[0].mxu0 %v1600
  %v1650 = vpop.f32.mrb[0].mxu0
  %v1651 = vadd.f32 0.0, %v1650
  %v1652 = vpop.f32.mrb[0].mxu0
  %v1653 = vpop.f32.mrb[0].mxu0
  %v1654 = vpop.f32.mrb[0].mxu0
  %1655 = vdwg.mxu0
  %1656 = vmatprep.subr.bf16.mxu0 0
  %1657 = vmatpush1.bf16.msra.mxu0 %v371
  %1658 = vmatprep.subr.bf16.mxu0 0
  %1659 = vmatpush1.bf16.msra.mxu0 %v372
  %1660 = vmatprep.subr.bf16.mxu0 0
  %1661 = vmatpush1.bf16.msra.mxu0 %v373
  %1662 = vmatprep.subr.bf16.mxu0 0
  %1663 = vmatpush1.bf16.msra.mxu0 %v374
  %1664 = vmatprep.subr.bf16.mxu0 0
  %1665 = vmatpush1.bf16.msra.mxu0 %v375
  %1666 = vmatprep.subr.bf16.mxu0 0
  %1667 = vmatpush1.bf16.msra.mxu0 %v376
  %1668 = vmatprep.subr.bf16.mxu0 0
  %1669 = vmatpush1.bf16.msra.mxu0 %v377
  %1670 = vmatprep.subr.bf16.mxu0 0
  %1671 = vmatpush1.bf16.msra.mxu0 %v378
  %1672 = vmatprep.subr.bf16.mxu0 0
  %1673 = vmatpush1.bf16.msra.mxu0 %v379
  %1674 = vmatprep.subr.bf16.mxu0 0
  %1675 = vmatpush1.bf16.msra.mxu0 %v380
  %1676 = vmatprep.subr.bf16.mxu0 0
  %1677 = vmatpush1.bf16.msra.mxu0 %v381
  %1678 = vmatprep.subr.bf16.mxu0 0
  %1679 = vmatpush1.bf16.msra.mxu0 %v382
  %1680 = vmatprep.subr.bf16.mxu0 0
  %1681 = vmatpush1.bf16.msra.mxu0 %v383
  %1682 = vmatprep.subr.bf16.mxu0 0
  %1683 = vmatpush1.bf16.msra.mxu0 %v384
  %1684 = vmatprep.subr.bf16.mxu0 0
  %1685 = vmatpush1.bf16.msra.mxu0 %v385
  %1686 = vmatprep.subr.bf16.mxu0 0
  %1687 = vmatpush1.bf16.msra.mxu0 %v386
  %1688 = vmatprep.mubr.bf16.mxu0 %v1603
  %1689 = vmatmul.mubr.bf16.gmra.mrb[0].mxu0 %v1602
  %v1690 = vpop.f32.mrb[0].mxu0
  %v1691 = vadd.f32 %v1651, %v1690
  %v1692 = vpop.f32.mrb[0].mxu0
  %v1693 = vpop.f32.mrb[0].mxu0
  %v1694 = vpop.f32.mrb[0].mxu0
  %1695 = vdwg.mxu0
  %1696 = vmatprep.subr.bf16.mxu0 0
  %1697 = vmatpush1.bf16.msra.mxu0 %v387
  %1698 = vmatprep.subr.bf16.mxu0 0
  %1699 = vmatpush1.bf16.msra.mxu0 %v388
  %1700 = vmatprep.subr.bf16.mxu0 0
  %1701 = vmatpush1.bf16.msra.mxu0 %v389
  %1702 = vmatprep.subr.bf16.mxu0 0
  %1703 = vmatpush1.bf16.msra.mxu0 %v390
  %1704 = vmatprep.subr.bf16.mxu0 0
  %1705 = vmatpush1.bf16.msra.mxu0 %v391
  %1706 = vmatprep.subr.bf16.mxu0 0
  %1707 = vmatpush1.bf16.msra.mxu0 %v392
  %1708 = vmatprep.subr.bf16.mxu0 0
  %1709 = vmatpush1.bf16.msra.mxu0 %v393
  %1710 = vmatprep.subr.bf16.mxu0 0
  %1711 = vmatpush1.bf16.msra.mxu0 %v394
  %1712 = vmatprep.subr.bf16.mxu0 0
  %1713 = vmatpush1.bf16.msra.mxu0 %v395
  %1714 = vmatprep.subr.bf16.mxu0 0
  %1715 = vmatpush1.bf16.msra.mxu0 %v396
  %1716 = vmatprep.subr.bf16.mxu0 0
  %1717 = vmatpush1.bf16.msra.mxu0 %v397
  %1718 = vmatprep.subr.bf16.mxu0 0
  %1719 = vmatpush1.bf16.msra.mxu0 %v398
  %1720 = vmatprep.subr.bf16.mxu0 0
  %1721 = vmatpush1.bf16.msra.mxu0 %v399
  %1722 = vmatprep.subr.bf16.mxu0 0
  %1723 = vmatpush1.bf16.msra.mxu0 %v400
  %1724 = vmatprep.subr.bf16.mxu0 0
  %1725 = vmatpush1.bf16.msra.mxu0 %v401
  %1726 = vmatprep.subr.bf16.mxu0 0
  %1727 = vmatpush1.bf16.msra.mxu0 %v402
  %1728 = vmatprep.mubr.bf16.mxu0 %v1605
  %1729 = vmatmul.mubr.bf16.gmra.mrb[0].mxu0 %v1604
  %v1730 = vpop.f32.mrb[0].mxu0
  %v1731 = vadd.f32 %v1691, %v1730
  %v1732 = vpop.f32.mrb[0].mxu0
  %v1733 = vpop.f32.mrb[0].mxu0
  %v1734 = vpop.f32.mrb[0].mxu0
  %1735 = vdwg.mxu0
  %1736 = vmatprep.subr.bf16.mxu0 0
  %1737 = vmatpush1.bf16.msra.mxu0 %v403
  %1738 = vmatprep.subr.bf16.mxu0 0
  %1739 = vmatpush1.bf16.msra.mxu0 %v404
  %1740 = vmatprep.subr.bf16.mxu0 0
  %1741 = vmatpush1.bf16.msra.mxu0 0
  %1742 = vmatprep.subr.bf16.mxu0 0
  %1743 = vmatpush1.bf16.msra.mxu0 0
  %1744 = vmatprep.subr.bf16.mxu0 0
  %1745 = vmatpush1.bf16.msra.mxu0 0
  %1746 = vmatprep.subr.bf16.mxu0 0
  %1747 = vmatpush1.bf16.msra.mxu0 0
  %1748 = vmatprep.subr.bf16.mxu0 0
  %1749 = vmatpush1.bf16.msra.mxu0 0
  %1750 = vmatprep.subr.bf16.mxu0 0
  %1751 = vmatpush1.bf16.msra.mxu0 0
  %1752 = vmatprep.subr.bf16.mxu0 0
  %1753 = vmatpush1.bf16.msra.mxu0 0
  %1754 = vmatprep.subr.bf16.mxu0 0
  %1755 = vmatpush1.bf16.msra.mxu0 0
  %1756 = vmatprep.subr.bf16.mxu0 0
  %1757 = vmatpush1.bf16.msra.mxu0 0
  %1758 = vmatprep.subr.bf16.mxu0 0
  %1759 = vmatpush1.bf16.msra.mxu0 0
  %1760 = vmatprep.subr.bf16.mxu0 0
  %1761 = vmatpush1.bf16.msra.mxu0 0
  %1762 = vmatprep.subr.bf16.mxu0 0
  %1763 = vmatpush1.bf16.msra.mxu0 0
  %1764 = vmatprep.subr.bf16.mxu0 0
  %1765 = vmatpush1.bf16.msra.mxu0 0
  %1766 = vmatprep.subr.bf16.mxu0 0
  %1767 = vmatpush1.bf16.msra.mxu0 0
  %1768 = vmatprep.mubr.bf16.mxu0 0
  %1769 = vmatmul.mubr.bf16.gmra.mrb[0].mxu0 %v1614
  %v1770 = vpop.f32.mrb[0].mxu0
  %v1771 = vadd.f32 %v1731, %v1770
  %v1772 = vpop.f32.mrb[0].mxu0
  %v1773 = vpop.f32.mrb[0].mxu0
  %v1774 = vpop.f32.mrb[0].mxu0
  %1775 = vdwg.mxu0
  %v1776 = vmax.f32 %v1583, %v1771
  %s1777 = scalar_lea.vmem %s0, 196
  %v1778 = vld [vmem:[%s1777] sm:$0xff]
  %v1779 = vld [vmem:[%s1777 + $0x8] sm:$0xff]
  %v1780 = vld [vmem:[%s1777 + $0x10] sm:$0xff]
  %v1781 = vld [vmem:[%s1777 + $0x18] sm:$0xf]
  %v1786 = vunpack.c.l.b16 %v1778
  %v1787 = vunpack.c.h.b16 %v1778
  %v1788 = vunpack.c.l.b16 %v1779
  %v1789 = vunpack.c.h.b16 %v1779
  %v1790 = vunpack.c.l.b16 %v1780
  %v1791 = vunpack.c.h.b16 %v1780
  %v1792 = vunpack.c.l.b16 %v1781
  %v1793 = vpack.c.b16 %v1786, %v1786
  %v1794 = vpack.c.b16 %v1787, %v1787
  %v1795 = vpack.c.b16 %v1788, %v1788
  %v1796 = vpack.c.b16 %v1789, %v1789
  %v1797 = vpack.c.b16 %v1790, %v1790
  %v1798 = vpack.c.b16 %v1791, %v1791
  %v1799 = vpack.c.b16 %v1792, %v1792
  %v1807 = vsel %vm455, %v1799, 0
  %1809 = vmatprep.subr.bf16.mxu0 0
  %1810 = vmatpush1.bf16.msra.mxu0 %v355
  %1811 = vmatprep.subr.bf16.mxu0 0
  %1812 = vmatpush1.bf16.msra.mxu0 %v356
  %1813 = vmatprep.subr.bf16.mxu0 0
  %1814 = vmatpush1.bf16.msra.mxu0 %v357
  %1815 = vmatprep.subr.bf16.mxu0 0
  %1816 = vmatpush1.bf16.msra.mxu0 %v358
  %1817 = vmatprep.subr.bf16.mxu0 0
  %1818 = vmatpush1.bf16.msra.mxu0 %v359
  %1819 = vmatprep.subr.bf16.mxu0 0
  %1820 = vmatpush1.bf16.msra.mxu0 %v360
  %1821 = vmatprep.subr.bf16.mxu0 0
  %1822 = vmatpush1.bf16.msra.mxu0 %v361
  %1823 = vmatprep.subr.bf16.mxu0 0
  %1824 = vmatpush1.bf16.msra.mxu0 %v362
  %1825 = vmatprep.subr.bf16.mxu0 0
  %1826 = vmatpush1.bf16.msra.mxu0 %v363
  %1827 = vmatprep.subr.bf16.mxu0 0
  %1828 = vmatpush1.bf16.msra.mxu0 %v364
  %1829 = vmatprep.subr.bf16.mxu0 0
  %1830 = vmatpush1.bf16.msra.mxu0 %v365
  %1831 = vmatprep.subr.bf16.mxu0 0
  %1832 = vmatpush1.bf16.msra.mxu0 %v366
  %1833 = vmatprep.subr.bf16.mxu0 0
  %1834 = vmatpush1.bf16.msra.mxu0 %v367
  %1835 = vmatprep.subr.bf16.mxu0 0
  %1836 = vmatpush1.bf16.msra.mxu0 %v368
  %1837 = vmatprep.subr.bf16.mxu0 0
  %1838 = vmatpush1.bf16.msra.mxu0 %v369
  %1839 = vmatprep.subr.bf16.mxu0 0
  %1840 = vmatpush1.bf16.msra.mxu0 %v370
  %1841 = vmatprep.mubr.bf16.mxu0 %v1794
  %1842 = vmatmul.mubr.bf16.gmra.mrb[0].mxu0 %v1793
  %v1843 = vpop.f32.mrb[0].mxu0
  %v1844 = vadd.f32 0.0, %v1843
  %v1845 = vpop.f32.mrb[0].mxu0
  %v1846 = vpop.f32.mrb[0].mxu0
  %v1847 = vpop.f32.mrb[0].mxu0
  %1848 = vdwg.mxu0
  %1849 = vmatprep.subr.bf16.mxu0 0
  %1850 = vmatpush1.bf16.msra.mxu0 %v371
  %1851 = vmatprep.subr.bf16.mxu0 0
  %1852 = vmatpush1.bf16.msra.mxu0 %v372
  %1853 = vmatprep.subr.bf16.mxu0 0
  %1854 = vmatpush1.bf16.msra.mxu0 %v373
  %1855 = vmatprep.subr.bf16.mxu0 0
  %1856 = vmatpush1.bf16.msra.mxu0 %v374
  %1857 = vmatprep.subr.bf16.mxu0 0
  %1858 = vmatpush1.bf16.msra.mxu0 %v375
  %1859 = vmatprep.subr.bf16.mxu0 0
  %1860 = vmatpush1.bf16.msra.mxu0 %v376
  %1861 = vmatprep.subr.bf16.mxu0 0
  %1862 = vmatpush1.bf16.msra.mxu0 %v377
  %1863 = vmatprep.subr.bf16.mxu0 0
  %1864 = vmatpush1.bf16.msra.mxu0 %v378
  %1865 = vmatprep.subr.bf16.mxu0 0
  %1866 = vmatpush1.bf16.msra.mxu0 %v379
  %1867 = vmatprep.subr.bf16.mxu0 0
  %1868 = vmatpush1.bf16.msra.mxu0 %v380
  %1869 = vmatprep.subr.bf16.mxu0 0
  %1870 = vmatpush1.bf16.msra.mxu0 %v381
  %1871 = vmatprep.subr.bf16.mxu0 0
  %1872 = vmatpush1.bf16.msra.mxu0 %v382
  %1873 = vmatprep.subr.bf16.mxu0 0
  %1874 = vmatpush1.bf16.msra.mxu0 %v383
  %1875 = vmatprep.subr.bf16.mxu0 0
  %1876 = vmatpush1.bf16.msra.mxu0 %v384
  %1877 = vmatprep.subr.bf16.mxu0 0
  %1878 = vmatpush1.bf16.msra.mxu0 %v385
  %1879 = vmatprep.subr.bf16.mxu0 0
  %1880 = vmatpush1.bf16.msra.mxu0 %v386
  %1881 = vmatprep.mubr.bf16.mxu0 %v1796
  %1882 = vmatmul.mubr.bf16.gmra.mrb[0].mxu0 %v1795
  %v1883 = vpop.f32.mrb[0].mxu0
  %v1884 = vadd.f32 %v1844, %v1883
  %v1885 = vpop.f32.mrb[0].mxu0
  %v1886 = vpop.f32.mrb[0].mxu0
  %v1887 = vpop.f32.mrb[0].mxu0
  %1888 = vdwg.mxu0
  %1889 = vmatprep.subr.bf16.mxu0 0
  %1890 = vmatpush1.bf16.msra.mxu0 %v387
  %1891 = vmatprep.subr.bf16.mxu0 0
  %1892 = vmatpush1.bf16.msra.mxu0 %v388
  %1893 = vmatprep.subr.bf16.mxu0 0
  %1894 = vmatpush1.bf16.msra.mxu0 %v389
  %1895 = vmatprep.subr.bf16.mxu0 0
  %1896 = vmatpush1.bf16.msra.mxu0 %v390
  %1897 = vmatprep.subr.bf16.mxu0 0
  %1898 = vmatpush1.bf16.msra.mxu0 %v391
  %1899 = vmatprep.subr.bf16.mxu0 0
  %1900 = vmatpush1.bf16.msra.mxu0 %v392
  %1901 = vmatprep.subr.bf16.mxu0 0
  %1902 = vmatpush1.bf16.msra.mxu0 %v393
  %1903 = vmatprep.subr.bf16.mxu0 0
  %1904 = vmatpush1.bf16.msra.mxu0 %v394
  %1905 = vmatprep.subr.bf16.mxu0 0
  %1906 = vmatpush1.bf16.msra.mxu0 %v395
  %1907 = vmatprep.subr.bf16.mxu0 0
  %1908 = vmatpush1.bf16.msra.mxu0 %v396
  %1909 = vmatprep.subr.bf16.mxu0 0
  %1910 = vmatpush1.bf16.msra.mxu0 %v397
  %1911 = vmatprep.subr.bf16.mxu0 0
  %1912 = vmatpush1.bf16.msra.mxu0 %v398
  %1913 = vmatprep.subr.bf16.mxu0 0
  %1914 = vmatpush1.bf16.msra.mxu0 %v399
  %1915 = vmatprep.subr.bf16.mxu0 0
  %1916 = vmatpush1.bf16.msra.mxu0 %v400
  %1917 = vmatprep.subr.bf16.mxu0 0
  %1918 = vmatpush1.bf16.msra.mxu0 %v401
  %1919 = vmatprep.subr.bf16.mxu0 0
  %1920 = vmatpush1.bf16.msra.mxu0 %v402
  %1921 = vmatprep.mubr.bf16.mxu0 %v1798
  %1922 = vmatmul.mubr.bf16.gmra.mrb[0].mxu0 %v1797
  %v1923 = vpop.f32.mrb[0].mxu0
  %v1924 = vadd.f32 %v1884, %v1923
  %v1925 = vpop.f32.mrb[0].mxu0
  %v1926 = vpop.f32.mrb[0].mxu0
  %v1927 = vpop.f32.mrb[0].mxu0
  %1928 = vdwg.mxu0
  %1929 = vmatprep.subr.bf16.mxu0 0
  %1930 = vmatpush1.bf16.msra.mxu0 %v403
  %1931 = vmatprep.subr.bf16.mxu0 0
  %1932 = vmatpush1.bf16.msra.mxu0 %v404
  %1933 = vmatprep.subr.bf16.mxu0 0
  %1934 = vmatpush1.bf16.msra.mxu0 0
  %1935 = vmatprep.subr.bf16.mxu0 0
  %1936 = vmatpush1.bf16.msra.mxu0 0
  %1937 = vmatprep.subr.bf16.mxu0 0
  %1938 = vmatpush1.bf16.msra.mxu0 0
  %1939 = vmatprep.subr.bf16.mxu0 0
  %1940 = vmatpush1.bf16.msra.mxu0 0
  %1941 = vmatprep.subr.bf16.mxu0 0
  %1942 = vmatpush1.bf16.msra.mxu0 0
  %1943 = vmatprep.subr.bf16.mxu0 0
  %1944 = vmatpush1.bf16.msra.mxu0 0
  %1945 = vmatprep.subr.bf16.mxu0 0
  %1946 = vmatpush1.bf16.msra.mxu0 0
  %1947 = vmatprep.subr.bf16.mxu0 0
  %1948 = vmatpush1.bf16.msra.mxu0 0
  %1949 = vmatprep.subr.bf16.mxu0 0
  %1950 = vmatpush1.bf16.msra.mxu0 0
  %1951 = vmatprep.subr.bf16.mxu0 0
  %1952 = vmatpush1.bf16.msra.mxu0 0
  %1953 = vmatprep.subr.bf16.mxu0 0
  %1954 = vmatpush1.bf16.msra.mxu0 0
  %1955 = vmatprep.subr.bf16.mxu0 0
  %1956 = vmatpush1.bf16.msra.mxu0 0
  %1957 = vmatprep.subr.bf16.mxu0 0
  %1958 = vmatpush1.bf16.msra.mxu0 0
  %1959 = vmatprep.subr.bf16.mxu0 0
  %1960 = vmatpush1.bf16.msra.mxu0 0
  %1961 = vmatprep.mubr.bf16.mxu0 0
  %1962 = vmatmul.mubr.bf16.gmra.mrb[0].mxu0 %v1807
  %v1963 = vpop.f32.mrb[0].mxu0
  %v1964 = vadd.f32 %v1924, %v1963
  %v1965 = vpop.f32.mrb[0].mxu0
  %v1966 = vpop.f32.mrb[0].mxu0
  %v1967 = vpop.f32.mrb[0].mxu0
  %1968 = vdwg.mxu0
  %v1969 = vmax.f32 %v1776, %v1964
  %s1970 = scalar_lea.vmem %s0, 224
  %v1971 = vld [vmem:[%s1970] sm:$0xff]
  %v1972 = vld [vmem:[%s1970 + $0x8] sm:$0xff]
  %v1973 = vld [vmem:[%s1970 + $0x10] sm:$0xff]
  %v1974 = vld [vmem:[%s1970 + $0x18] sm:$0xf]
  %v1979 = vunpack.c.l.b16 %v1971
  %v1980 = vunpack.c.h.b16 %v1971
  %v1981 = vunpack.c.l.b16 %v1972
  %v1982 = vunpack.c.h.b16 %v1972
  %v1983 = vunpack.c.l.b16 %v1973
  %v1984 = vunpack.c.h.b16 %v1973
  %v1985 = vunpack.c.l.b16 %v1974
  %v1986 = vpack.c.b16 %v1979, %v1979
  %v1987 = vpack.c.b16 %v1980, %v1980
  %v1988 = vpack.c.b16 %v1981, %v1981
  %v1989 = vpack.c.b16 %v1982, %v1982
  %v1990 = vpack.c.b16 %v1983, %v1983
  %v1991 = vpack.c.b16 %v1984, %v1984
  %v1992 = vpack.c.b16 %v1985, %v1985
  %v2000 = vsel %vm455, %v1992, 0
  %2002 = vmatprep.subr.bf16.mxu0 0
  %2003 = vmatpush1.bf16.msra.mxu0 %v355
  %2004 = vmatprep.subr.bf16.mxu0 0
  %2005 = vmatpush1.bf16.msra.mxu0 %v356
  %2006 = vmatprep.subr.bf16.mxu0 0
  %2007 = vmatpush1.bf16.msra.mxu0 %v357
  %2008 = vmatprep.subr.bf16.mxu0 0
  %2009 = vmatpush1.bf16.msra.mxu0 %v358
  %2010 = vmatprep.subr.bf16.mxu0 0
  %2011 = vmatpush1.bf16.msra.mxu0 %v359
  %2012 = vmatprep.subr.bf16.mxu0 0
  %2013 = vmatpush1.bf16.msra.mxu0 %v360
  %2014 = vmatprep.subr.bf16.mxu0 0
  %2015 = vmatpush1.bf16.msra.mxu0 %v361
  %2016 = vmatprep.subr.bf16.mxu0 0
  %2017 = vmatpush1.bf16.msra.mxu0 %v362
  %2018 = vmatprep.subr.bf16.mxu0 0
  %2019 = vmatpush1.bf16.msra.mxu0 %v363
  %2020 = vmatprep.subr.bf16.mxu0 0
  %2021 = vmatpush1.bf16.msra.mxu0 %v364
  %2022 = vmatprep.subr.bf16.mxu0 0
  %2023 = vmatpush1.bf16.msra.mxu0 %v365
  %2024 = vmatprep.subr.bf16.mxu0 0
  %2025 = vmatpush1.bf16.msra.mxu0 %v366
  %2026 = vmatprep.subr.bf16.mxu0 0
  %2027 = vmatpush1.bf16.msra.mxu0 %v367
  %2028 = vmatprep.subr.bf16.mxu0 0
  %2029 = vmatpush1.bf16.msra.mxu0 %v368
  %2030 = vmatprep.subr.bf16.mxu0 0
  %2031 = vmatpush1.bf16.msra.mxu0 %v369
  %2032 = vmatprep.subr.bf16.mxu0 0
  %2033 = vmatpush1.bf16.msra.mxu0 %v370
  %2034 = vmatprep.mubr.bf16.mxu0 %v1987
  %2035 = vmatmul.mubr.bf16.gmra.mrb[0].mxu0 %v1986
  %v2036 = vpop.f32.mrb[0].mxu0
  %v2037 = vadd.f32 0.0, %v2036
  %v2038 = vpop.f32.mrb[0].mxu0
  %v2039 = vpop.f32.mrb[0].mxu0
  %v2040 = vpop.f32.mrb[0].mxu0
  %2041 = vdwg.mxu0
  %2042 = vmatprep.subr.bf16.mxu0 0
  %2043 = vmatpush1.bf16.msra.mxu0 %v371
  %2044 = vmatprep.subr.bf16.mxu0 0
  %2045 = vmatpush1.bf16.msra.mxu0 %v372
  %2046 = vmatprep.subr.bf16.mxu0 0
  %2047 = vmatpush1.bf16.msra.mxu0 %v373
  %2048 = vmatprep.subr.bf16.mxu0 0
  %2049 = vmatpush1.bf16.msra.mxu0 %v374
  %2050 = vmatprep.subr.bf16.mxu0 0
  %2051 = vmatpush1.bf16.msra.mxu0 %v375
  %2052 = vmatprep.subr.bf16.mxu0 0
  %2053 = vmatpush1.bf16.msra.mxu0 %v376
  %2054 = vmatprep.subr.bf16.mxu0 0
  %2055 = vmatpush1.bf16.msra.mxu0 %v377
  %2056 = vmatprep.subr.bf16.mxu0 0
  %2057 = vmatpush1.bf16.msra.mxu0 %v378
  %2058 = vmatprep.subr.bf16.mxu0 0
  %2059 = vmatpush1.bf16.msra.mxu0 %v379
  %2060 = vmatprep.subr.bf16.mxu0 0
  %2061 = vmatpush1.bf16.msra.mxu0 %v380
  %2062 = vmatprep.subr.bf16.mxu0 0
  %2063 = vmatpush1.bf16.msra.mxu0 %v381
  %2064 = vmatprep.subr.bf16.mxu0 0
  %2065 = vmatpush1.bf16.msra.mxu0 %v382
  %2066 = vmatprep.subr.bf16.mxu0 0
  %2067 = vmatpush1.bf16.msra.mxu0 %v383
  %2068 = vmatprep.subr.bf16.mxu0 0
  %2069 = vmatpush1.bf16.msra.mxu0 %v384
  %2070 = vmatprep.subr.bf16.mxu0 0
  %2071 = vmatpush1.bf16.msra.mxu0 %v385
  %2072 = vmatprep.subr.bf16.mxu0 0
  %2073 = vmatpush1.bf16.msra.mxu0 %v386
  %2074 = vmatprep.mubr.bf16.mxu0 %v1989
  %2075 = vmatmul.mubr.bf16.gmra.mrb[0].mxu0 %v1988
  %v2076 = vpop.f32.mrb[0].mxu0
  %v2077 = vadd.f32 %v2037, %v2076
  %v2078 = vpop.f32.mrb[0].mxu0
  %v2079 = vpop.f32.mrb[0].mxu0
  %v2080 = vpop.f32.mrb[0].mxu0
  %2081 = vdwg.mxu0
  %2082 = vmatprep.subr.bf16.mxu0 0
  %2083 = vmatpush1.bf16.msra.mxu0 %v387
  %2084 = vmatprep.subr.bf16.mxu0 0
  %2085 = vmatpush1.bf16.msra.mxu0 %v388
  %2086 = vmatprep.subr.bf16.mxu0 0
  %2087 = vmatpush1.bf16.msra.mxu0 %v389
  %2088 = vmatprep.subr.bf16.mxu0 0
  %2089 = vmatpush1.bf16.msra.mxu0 %v390
  %2090 = vmatprep.subr.bf16.mxu0 0
  %2091 = vmatpush1.bf16.msra.mxu0 %v391
  %2092 = vmatprep.subr.bf16.mxu0 0
  %2093 = vmatpush1.bf16.msra.mxu0 %v392
  %2094 = vmatprep.subr.bf16.mxu0 0
  %2095 = vmatpush1.bf16.msra.mxu0 %v393
  %2096 = vmatprep.subr.bf16.mxu0 0
  %2097 = vmatpush1.bf16.msra.mxu0 %v394
  %2098 = vmatprep.subr.bf16.mxu0 0
  %2099 = vmatpush1.bf16.msra.mxu0 %v395
  %2100 = vmatprep.subr.bf16.mxu0 0
  %2101 = vmatpush1.bf16.msra.mxu0 %v396
  %2102 = vmatprep.subr.bf16.mxu0 0
  %2103 = vmatpush1.bf16.msra.mxu0 %v397
  %2104 = vmatprep.subr.bf16.mxu0 0
  %2105 = vmatpush1.bf16.msra.mxu0 %v398
  %2106 = vmatprep.subr.bf16.mxu0 0
  %2107 = vmatpush1.bf16.msra.mxu0 %v399
  %2108 = vmatprep.subr.bf16.mxu0 0
  %2109 = vmatpush1.bf16.msra.mxu0 %v400
  %2110 = vmatprep.subr.bf16.mxu0 0
  %2111 = vmatpush1.bf16.msra.mxu0 %v401
  %2112 = vmatprep.subr.bf16.mxu0 0
  %2113 = vmatpush1.bf16.msra.mxu0 %v402
  %2114 = vmatprep.mubr.bf16.mxu0 %v1991
  %2115 = vmatmul.mubr.bf16.gmra.mrb[0].mxu0 %v1990
  %v2116 = vpop.f32.mrb[0].mxu0
  %v2117 = vadd.f32 %v2077, %v2116
  %v2118 = vpop.f32.mrb[0].mxu0
  %v2119 = vpop.f32.mrb[0].mxu0
  %v2120 = vpop.f32.mrb[0].mxu0
  %2121 = vdwg.mxu0
  %2122 = vmatprep.subr.bf16.mxu0 0
  %2123 = vmatpush1.bf16.msra.mxu0 %v403
  %2124 = vmatprep.subr.bf16.mxu0 0
  %2125 = vmatpush1.bf16.msra.mxu0 %v404
  %2126 = vmatprep.subr.bf16.mxu0 0
  %2127 = vmatpush1.bf16.msra.mxu0 0
  %2128 = vmatprep.subr.bf16.mxu0 0
  %2129 = vmatpush1.bf16.msra.mxu0 0
  %2130 = vmatprep.subr.bf16.mxu0 0
  %2131 = vmatpush1.bf16.msra.mxu0 0
  %2132 = vmatprep.subr.bf16.mxu0 0
  %2133 = vmatpush1.bf16.msra.mxu0 0
  %2134 = vmatprep.subr.bf16.mxu0 0
  %2135 = vmatpush1.bf16.msra.mxu0 0
  %2136 = vmatprep.subr.bf16.mxu0 0
  %2137 = vmatpush1.bf16.msra.mxu0 0
  %2138 = vmatprep.subr.bf16.mxu0 0
  %2139 = vmatpush1.bf16.msra.mxu0 0
  %2140 = vmatprep.subr.bf16.mxu0 0
  %2141 = vmatpush1.bf16.msra.mxu0 0
  %2142 = vmatprep.subr.bf16.mxu0 0
  %2143 = vmatpush1.bf16.msra.mxu0 0
  %2144 = vmatprep.subr.bf16.mxu0 0
  %2145 = vmatpush1.bf16.msra.mxu0 0
  %2146 = vmatprep.subr.bf16.mxu0 0
  %2147 = vmatpush1.bf16.msra.mxu0 0
  %2148 = vmatprep.subr.bf16.mxu0 0
  %2149 = vmatpush1.bf16.msra.mxu0 0
  %2150 = vmatprep.subr.bf16.mxu0 0
  %2151 = vmatpush1.bf16.msra.mxu0 0
  %2152 = vmatprep.subr.bf16.mxu0 0
  %2153 = vmatpush1.bf16.msra.mxu0 0
  %2154 = vmatprep.mubr.bf16.mxu0 0
  %2155 = vmatmul.mubr.bf16.gmra.mrb[0].mxu0 %v2000
  %v2156 = vpop.f32.mrb[0].mxu0
  %v2157 = vadd.f32 %v2117, %v2156
  %v2158 = vpop.f32.mrb[0].mxu0
  %v2159 = vpop.f32.mrb[0].mxu0
  %v2160 = vpop.f32.mrb[0].mxu0
  %2161 = vdwg.mxu0
  %v2162 = vmax.f32 %v1969, %v2157
  %v2163 = vld [vmem:[%s2] sm:$0x1]
  %v2165 = vlaneseq
  %v2166 = vshrl.u32 %v2165, 7
  %v2167 = vsub.s32 0, %v2166
  %v2168 = vrot.slane %v2163, %v2167
  %v2170 = vadd.f32 %v2162, %v2168
  %v2171 = vmax.f32 %v2170, 0.0
  %v2172 = vpack.c.bf16 %v2171, %v2171
  %v2173 = vld [vmem:[%s3] sm:$0xf]
  %v2174 = vld [vmem:[%s3 + $0x4] sm:$0xf]
  %v2175 = vld [vmem:[%s3 + $0x8] sm:$0xf]
  %v2176 = vld [vmem:[%s3 + $0xc] sm:$0xf]
  %v2177 = vld [vmem:[%s3 + $0x10] sm:$0xf]
  %v2178 = vld [vmem:[%s3 + $0x14] sm:$0xf]
  %v2179 = vld [vmem:[%s3 + $0x18] sm:$0xf]
  %v2180 = vld [vmem:[%s3 + $0x1c] sm:$0xf]
  %v2181 = vld [vmem:[%s4] sm:$0x1]
  %v2183 = vlaneseq
  %v2184 = vshrl.u32 %v2183, 7
  %v2185 = vsub.s32 0, %v2184
  %v2186 = vrot.slane %v2181, %v2185
  %v2196 = vunpack.c.l.b16 %v2173
  %v2197 = vunpack.c.l.b16 %v2174
  %v2198 = vunpack.c.l.b16 %v2175
  %v2199 = vunpack.c.l.b16 %v2176
  %v2200 = vunpack.c.l.b16 %v2177
  %v2201 = vunpack.c.l.b16 %v2178
  %v2202 = vunpack.c.l.b16 %v2179
  %v2203 = vunpack.c.l.b16 %v2180
  %v2204 = vpack.c.b16 %v2197, %v2196
  %v2205 = vpack.c.b16 %v2199, %v2198
  %v2206 = vpack.c.b16 %v2201, %v2200
  %v2207 = vpack.c.b16 %v2203, %v2202
  %vm2212 = vcmask 523264
  %v2214 = vsel %vm2212, %v2172, 0
  %2216 = vmatprep.subr.bf16.mxu0 0
  %2217 = vmatpush1.bf16.msra.mxu0 %v2204
  %2218 = vmatprep.subr.bf16.mxu0 0
  %2219 = vmatpush1.bf16.msra.mxu0 %v2205
  %2220 = vmatprep.subr.bf16.mxu0 0
  %2221 = vmatpush1.bf16.msra.mxu0 %v2206
  %2222 = vmatprep.subr.bf16.mxu0 0
  %2223 = vmatpush1.bf16.msra.mxu0 %v2207
  %2224 = vmatprep.subr.bf16.mxu0 0
  %2225 = vmatpush1.bf16.msra.mxu0 0
  %2226 = vmatprep.subr.bf16.mxu0 0
  %2227 = vmatpush1.bf16.msra.mxu0 0
  %2228 = vmatprep.subr.bf16.mxu0 0
  %2229 = vmatpush1.bf16.msra.mxu0 0
  %2230 = vmatprep.subr.bf16.mxu0 0
  %2231 = vmatpush1.bf16.msra.mxu0 0
  %2232 = vmatprep.subr.bf16.mxu0 0
  %2233 = vmatpush1.bf16.msra.mxu0 0
  %2234 = vmatprep.subr.bf16.mxu0 0
  %2235 = vmatpush1.bf16.msra.mxu0 0
  %2236 = vmatprep.subr.bf16.mxu0 0
  %2237 = vmatpush1.bf16.msra.mxu0 0
  %2238 = vmatprep.subr.bf16.mxu0 0
  %2239 = vmatpush1.bf16.msra.mxu0 0
  %2240 = vmatprep.subr.bf16.mxu0 0
  %2241 = vmatpush1.bf16.msra.mxu0 0
  %2242 = vmatprep.subr.bf16.mxu0 0
  %2243 = vmatpush1.bf16.msra.mxu0 0
  %2244 = vmatprep.subr.bf16.mxu0 0
  %2245 = vmatpush1.bf16.msra.mxu0 0
  %2246 = vmatprep.subr.bf16.mxu0 0
  %2247 = vmatpush1.bf16.msra.mxu0 0
  %2248 = vmatprep.mubr.bf16.mxu0 0
  %2249 = vmatmul.mubr.bf16.gmra.mrb[0].mxu0 %v2214
  %v2250 = vpop.f32.mrb[0].mxu0
  %v2251 = vadd.f32 %v2186, %v2250
  %v2252 = vpop.f32.mrb[0].mxu0
  %v2253 = vpop.f32.mrb[0].mxu0
  %v2254 = vpop.f32.mrb[0].mxu0
  %2255 = vdwg.mxu0
  %v2256 = vpack.c.bf16 %v2251, %v2251
  %v2257 = vld [vmem:[%s5] sm:$0xf]
  %v2258 = vld [vmem:[%s5 + $0x4] sm:$0xf]
  %v2259 = vld [vmem:[%s5 + $0x8] sm:$0xf]
  %v2260 = vld [vmem:[%s5 + $0xc] sm:$0xf]
  %v2261 = vld [vmem:[%s6] sm:$0x1]
  %v2263 = vlaneseq
  %v2264 = vshrl.u32 %v2263, 7
  %v2265 = vsub.s32 0, %v2264
  %v2266 = vrot.slane %v2261, %v2265
  %v2272 = vunpack.c.l.b16 %v2257
  %v2273 = vunpack.c.l.b16 %v2258
  %v2274 = vunpack.c.l.b16 %v2259
  %v2275 = vunpack.c.l.b16 %v2260
  %v2276 = vpack.c.b16 %v2273, %v2272
  %v2277 = vpack.c.b16 %v2275, %v2274
  %v2281 = vsel %vm455, %v2256, 0
  %2283 = vmatprep.subr.bf16.mxu0 0
  %2284 = vmatpush1.bf16.msra.mxu0 %v2276
  %2285 = vmatprep.subr.bf16.mxu0 0
  %2286 = vmatpush1.bf16.msra.mxu0 %v2277
  %2287 = vmatprep.subr.bf16.mxu0 0
  %2288 = vmatpush1.bf16.msra.mxu0 0
  %2289 = vmatprep.subr.bf16.mxu0 0
  %2290 = vmatpush1.bf16.msra.mxu0 0
  %2291 = vmatprep.subr.bf16.mxu0 0
  %2292 = vmatpush1.bf16.msra.mxu0 0
  %2293 = vmatprep.subr.bf16.mxu0 0
  %2294 = vmatpush1.bf16.msra.mxu0 0
  %2295 = vmatprep.subr.bf16.mxu0 0
  %2296 = vmatpush1.bf16.msra.mxu0 0
  %2297 = vmatprep.subr.bf16.mxu0 0
  %2298 = vmatpush1.bf16.msra.mxu0 0
  %2299 = vmatprep.subr.bf16.mxu0 0
  %2300 = vmatpush1.bf16.msra.mxu0 0
  %2301 = vmatprep.subr.bf16.mxu0 0
  %2302 = vmatpush1.bf16.msra.mxu0 0
  %2303 = vmatprep.subr.bf16.mxu0 0
  %2304 = vmatpush1.bf16.msra.mxu0 0
  %2305 = vmatprep.subr.bf16.mxu0 0
  %2306 = vmatpush1.bf16.msra.mxu0 0
  %2307 = vmatprep.subr.bf16.mxu0 0
  %2308 = vmatpush1.bf16.msra.mxu0 0
  %2309 = vmatprep.subr.bf16.mxu0 0
  %2310 = vmatpush1.bf16.msra.mxu0 0
  %2311 = vmatprep.subr.bf16.mxu0 0
  %2312 = vmatpush1.bf16.msra.mxu0 0
  %2313 = vmatprep.subr.bf16.mxu0 0
  %2314 = vmatpush1.bf16.msra.mxu0 0
  %2315 = vmatprep.mubr.bf16.mxu0 0
  %2316 = vmatmul.mubr.bf16.gmra.mrb[0].mxu0 %v2281
  %v2317 = vpop.f32.mrb[0].mxu0
  %v2318 = vadd.f32 %v2266, %v2317
  %v2319 = vpop.f32.mrb[0].mxu0
  %v2320 = vpop.f32.mrb[0].mxu0
  %v2321 = vpop.f32.mrb[0].mxu0
  %2322 = vdwg.mxu0
  %2323 = vst [vmem:[%s7] sm:$0xff] %v2318
  // Predicated region
  $region30: #{classifier_forward.3} parent=0 // pred_check
    _
  $region31: #{classifier_forward.3} parent=0 // pred_check_branch
    %2325 = sbr.rel (0) target = $region33
  $region32: #{classifier_forward.3} parent=0 // pred_region
    _
  $region33: #{classifier_forward.3} parent=0 // pred_fallthru
    _
  // Predicated region
  $region34: #{classifier_forward.3} parent=0 // pred_check
    _
  $region35: #{classifier_forward.3} parent=0 // pred_check_branch
    %2327 = sbr.rel (0) target = $region37
  $region36: #{classifier_forward.3} parent=0 // pred_region
    _
  $region37: #{classifier_forward.3} parent=0 // pred_fallthru
    _

</llo_original>
